<compile_context>
chip_gen: v7x
topology: tpu7x:2x2x1
jax: 0.10.0
libtpu: 0.0.40
codegen_flags: <defaults>
</compile_context>

<pallas_src>
import functools
import math

import jax
import jax.numpy as jnp
import numpy as np
from jax import lax
from jax.experimental import pallas as pl
from jax.experimental.pallas import tpu as pltpu

EPS = 1e-5
_MM_VMEM_LIMIT = 32 * 1024 * 1024


# ----------------------------------------------------------------------------
# Pallas kernel 1: tiled bf16 matmul, fp32 accumulation, fused activations
# ----------------------------------------------------------------------------
def _matmul_kernel(a_ref, b_ref, o_ref, acc_ref, *, in_act, out_act):
    k = pl.program_id(2)

    @pl.when(k == 0)
    def _():
        acc_ref[...] = jnp.zeros_like(acc_ref)

    a = a_ref[...]
    if in_act == "leaky":
        a = jnp.where(a >= 0, a, 0.2 * a)
    elif in_act == "relu":
        a = jnp.maximum(a, 0.0)
    acc_ref[...] += jnp.dot(a, b_ref[...], preferred_element_type=jnp.float32)

    @pl.when(k == pl.num_programs(2) - 1)
    def _():
        acc = acc_ref[...]
        if out_act == "relu":
            acc = jnp.maximum(acc, 0.0)
        o_ref[...] = acc.astype(o_ref.dtype)


def _round_up(v, m):
    return ((v + m - 1) // m) * m


def _choose_tile(dim, cap, prefs):
    """Return (tile, padded_dim): full block if small, else an exact divisor, else zero-pad."""
    if dim <= cap:
        return dim, dim
    for c in prefs:
        if dim % c == 0:
            return c, dim
    padded = _round_up(dim, 256)      # zero-padded lanes stay 128/256-aligned (never a huge block)
    return 256, padded


def matmul_act(a, b, *, in_act="none", out_act="none", out_dtype=jnp.float32):
    """(M, K) @ (K, N) with fused input/output activation.

    K / N that are large and not 128-divisible are zero-padded (safe for the fp32 accumulator);
    partial M blocks rely on Pallas discarding out-of-bounds output rows.
    """
    M, K = a.shape
    K2, N = b.shape
    assert K == K2
    tm = min(1024, _round_up(M, 128))                       # bf16 sublane packing => >= 16-aligned
    tk, Kp = _choose_tile(K, 1024, (1024, 512, 256, 128))
    tn, Np = _choose_tile(N, 1024, (1024, 512, 256, 128))
    if Kp != K:
        a = jnp.pad(a, ((0, 0), (0, Kp - K)))
        b = jnp.pad(b, ((0, Kp - K), (0, 0)))
    if Np != N:
        b = jnp.pad(b, ((0, 0), (0, Np - N)))
    grid = (pl.cdiv(M, tm), Np // tn, Kp // tk)
    out = pl.pallas_call(
        functools.partial(_matmul_kernel, in_act=in_act, out_act=out_act),
        out_shape=jax.ShapeDtypeStruct((M, Np), out_dtype),
        grid_spec=pltpu.PrefetchScalarGridSpec(
            num_scalar_prefetch=0,
            grid=grid,
            in_specs=[
                pl.BlockSpec((tm, tk), lambda i, j, k: (i, k)),
                pl.BlockSpec((tk, tn), lambda i, j, k: (k, j)),
            ],
            out_specs=pl.BlockSpec((tm, tn), lambda i, j, k: (i, j)),
            scratch_shapes=[pltpu.VMEM((tm, tn), jnp.float32)],
        ),
        compiler_params=pltpu.CompilerParams(
            dimension_semantics=("parallel", "parallel", "arbitrary"),
            vmem_limit_bytes=_MM_VMEM_LIMIT),
    )(a, b)
    if Np != N:
        out = out[:, :N]
    return out


# ----------------------------------------------------------------------------
# Pallas kernel 2: fused sub-pixel ConvTranspose2d(k=4, s=2, p=1)
#   One grid step = one image (x one block of output channels).  The whole
#   H-padded, row-flattened low-res map lives in VMEM; the nine 3x3 taps are
#   contiguous static slices of it, so no im2col intermediate ever hits HBM.
# ----------------------------------------------------------------------------
def _upconv_kernel(h_ref, w_ref, em_ref, o_ref, *, S, Ci, Wo):
    tn = o_ref.shape[-1]
    left = em_ref[:, 0:1]                   # 0 where c == 0       (kills the W wrap of tap v=0)
    right = em_ref[:, 1:2]                  # 0 where c == Wo - 1  (kills the W wrap of tap v=2)
    acc = jnp.zeros((S, tn), jnp.float32)
    for u in range(3):
        for v in range(3):
            s = u * Wo + v                  # static slice start into the flat padded map
            a = h_ref[0, s:s + S, :]        # (S, Ci) bf16
            if v == 0:
                a = a * left
            elif v == 2:
                a = a * right
            t = u * 3 + v
            w_t = w_ref[t * Ci:(t + 1) * Ci, :]
            acc = acc + jnp.dot(a, w_t, preferred_element_type=jnp.float32)
    o_ref[0] = acc.astype(o_ref.dtype)


def upconv_subpixel(h_flat, w_pack, *, N, Ho, Wo, Ci):
    """h_flat: (N*Ho*Wo, Ci) bf16, w_pack: (9*Ci, 4*Cout) bf16 -> (N, Ho*Wo, 4*Cout) bf16."""
    S = Ho * Wo
    TNtot = w_pack.shape[1]
    h3 = h_flat.reshape(N, S, Ci)
    hp = jnp.pad(h3, ((0, 0), (Wo + 1, Wo + 1), (0, 0)))       # H-pad rows + 1 guard elem each end
    L = S + 2 * Wo + 2
    col = jnp.arange(S) % Wo
    em = jnp.stack([col != 0, col != Wo - 1], axis=1).astype(jnp.bfloat16)   # (S, 2)
    if TNtot <= 512:
        tn = TNtot
    else:
        tn = next((c for c in (512, 256, 128) if TNtot % c == 0), TNtot)
    return pl.pallas_call(
        functools.partial(_upconv_kernel, S=S, Ci=Ci, Wo=Wo),
        out_shape=jax.ShapeDtypeStruct((N, S, TNtot), jnp.bfloat16),
        grid_spec=pltpu.PrefetchScalarGridSpec(
            num_scalar_prefetch=0,
            grid=(N, TNtot // tn),
            in_specs=[
                pl.BlockSpec((1, L, Ci), lambda n, j: (n, 0, 0)),
                pl.BlockSpec((9 * Ci, tn), lambda n, j: (0, j)),
                pl.BlockSpec((S, 2), lambda n, j: (0, 0)),
            ],
            out_specs=pl.BlockSpec((1, S, tn), lambda n, j: (n, 0, j)),
        ),
        compiler_params=pltpu.CompilerParams(
            dimension_semantics=("parallel", "parallel")),
    )(hp, w_pack, em)


# ----------------------------------------------------------------------------
# Pallas kernel 3: fused RAIN (masked fg/bg instance norm) + skip concat
#   Channel-first (C, H*W) blocks: spatial on the 128 lanes.  One-pass stats
#   (sum / sum-sq, background sums by subtraction), lax.rsqrt, single packed
#   (Cout, 4) affine-parameter input.  The grid is (N, channel-blocks); blocks
#   j < nxb copy the x skip slab, the rest normalize their r channel block.
# ----------------------------------------------------------------------------
def _rain_affine(y, m, g_f, be_f, g_b, be_b, hw):
    """y: (C, HW) f32, m: (1, HW) f32 in {0,1}; returns RAIN(y) in the reference's eps placement."""
    n_f = jnp.sum(m, axis=-1, keepdims=True)
    n_b = float(hw) - n_f
    yy = y * y
    s1f = jnp.sum(y * m, axis=-1, keepdims=True)
    s2f = jnp.sum(yy * m, axis=-1, keepdims=True)
    s1 = jnp.sum(y, axis=-1, keepdims=True)
    s2 = jnp.sum(yy, axis=-1, keepdims=True)
    s1b = s1 - s1f
    s2b = s2 - s2f
    inv_nf = 1.0 / (n_f + EPS)
    inv_nb = 1.0 / (n_b + EPS)
    mu_f = s1f * inv_nf
    mu_b = s1b * inv_nb
    var_f = (s2f - (2.0 * mu_f) * s1f + (mu_f * mu_f) * n_f) * inv_nf
    var_b = (s2b - (2.0 * mu_b) * s1b + (mu_b * mu_b) * n_b) * inv_nb
    inv_std_b = lax.rsqrt(var_b + EPS)
    inv_std_f = lax.rsqrt(var_f + EPS)
    std_b = (var_b + EPS) * inv_std_b
    a_b = inv_std_b * g_b
    b_b = be_b - mu_b * a_b
    s_f = inv_std_f * std_b
    a_f = s_f * g_f
    b_f = (mu_b - mu_f * s_f) * g_f + be_f
    A = a_b + m * (a_f - a_b)
    B = b_b + m * (b_f - b_b)
    return y * A + B


def _rain_concat_blocked_kernel(x_ref, r_ref, m_ref, p_ref, o_ref, *, nxb, hw):
    j = pl.program_id(1)

    @pl.when(j < nxb)
    def _():                                   # skip-connection slab: out[:Cin] = x
        o_ref[0] = x_ref[0].astype(o_ref.dtype)

    @pl.when(j >= nxb)
    def _():                                   # RAIN slab (per-channel stats are block-local)
        y = r_ref[0].astype(jnp.float32)
        m = m_ref[0]
        ret = _rain_affine(y, m,
                           1.0 + p_ref[:, 0:1], p_ref[:, 1:2],
                           1.0 + p_ref[:, 2:3], p_ref[:, 3:4], hw)
        o_ref[0] = ret.astype(o_ref.dtype)


def _rain_concat_full_kernel(x_ref, r_ref, m_ref, p_ref, o_ref, *, cin, cout, hw):
    y = r_ref[0].astype(jnp.float32)
    m = m_ref[0]
    ret = _rain_affine(y, m,
                       1.0 + p_ref[:, 0:1], p_ref[:, 1:2],
                       1.0 + p_ref[:, 2:3], p_ref[:, 3:4], hw)
    o_ref[0, 0:cin, :] = x_ref[0].astype(o_ref.dtype)
    o_ref[0, cin:cin + cout, :] = ret.astype(o_ref.dtype)


def rain_concat(x_cf, r_cf, m_cf, params4):
    """x_cf: (N,Cin,HW) f32, r_cf: (N,Cout,HW) bf16, m_cf: (N,1,HW) f32, params4: (Cout,4) f32."""
    N, Cin, HW = x_cf.shape
    Cout = r_cf.shape[1]
    g = math.gcd(Cin, Cout)
    cb = next((c for c in (512, 256, 128, 64, 32, 16, 8) if g % c == 0), 0)
    if cb:
        nxb = Cin // cb
        grid = (N, nxb + Cout // cb)
        kernel = functools.partial(_rain_concat_blocked_kernel, nxb=nxb, hw=HW)
        in_specs = [
            pl.BlockSpec((1, cb, HW), lambda n, j: (n, jnp.minimum(j, nxb - 1), 0)),
            pl.BlockSpec((1, cb, HW), lambda n, j: (n, jnp.maximum(j - nxb, 0), 0)),
            pl.BlockSpec((1, 1, HW), lambda n, j: (n, 0, 0)),
            pl.BlockSpec((cb, 4), lambda n, j: (jnp.maximum(j - nxb, 0), 0)),
        ]
        out_spec = pl.BlockSpec((1, cb, HW), lambda n, j: (n, j, 0))
        dims = ("parallel", "parallel")
    else:
        # Fallback for channel counts with no multiple-of-8 common divisor: one image per step.
        grid = (N,)
        kernel = functools.partial(_rain_concat_full_kernel, cin=Cin, cout=Cout, hw=HW)
        in_specs = [
            pl.BlockSpec((1, Cin, HW), lambda n: (n, 0, 0)),
            pl.BlockSpec((1, Cout, HW), lambda n: (n, 0, 0)),
            pl.BlockSpec((1, 1, HW), lambda n: (n, 0, 0)),
            pl.BlockSpec((Cout, 4), lambda n: (0, 0)),
        ]
        out_spec = pl.BlockSpec((1, Cin + Cout, HW), lambda n: (n, 0, 0))
        dims = ("parallel",)
    return pl.pallas_call(
        kernel,
        out_shape=jax.ShapeDtypeStruct((N, Cin + Cout, HW), jnp.float32),
        grid_spec=pltpu.PrefetchScalarGridSpec(
            num_scalar_prefetch=0, grid=grid, in_specs=in_specs, out_specs=out_spec),
        compiler_params=pltpu.CompilerParams(dimension_semantics=dims),
    )(x_cf, r_cf, m_cf, params4)


# ----------------------------------------------------------------------------
# JAX layout glue: im2col (down path), sub-pixel weight packing, nearest resize
# ----------------------------------------------------------------------------
def im2col(x, k, stride, pad):
    """x: (N,H,W,C) -> patches (N*Ho*Wo, k*k*C), column order (kh, kw, c)."""
    N, H, W, C = x.shape
    xp = jnp.pad(x, ((0, 0), (pad, pad), (pad, pad), (0, 0)))
    Ho = (H + 2 * pad - k) // stride + 1
    Wo = (W + 2 * pad - k) // stride + 1
    cols = []
    for kh in range(k):
        for kw in range(k):
            cols.append(xp[:, kh:kh + stride * Ho:stride, kw:kw + stride * Wo:stride, :])
    patches = jnp.stack(cols, axis=3)               # (N, Ho, Wo, k*k, C)
    return patches.reshape(N * Ho * Wo, k * k * C), (N, Ho, Wo)


def build_subpixel_weight(w_up):
    """Phase-packed weight for ConvTranspose2d(k=4, s=2, p=1).

    Row blocks are the nine 3x3 window taps (u, v) over the 1-padded input; columns are ordered
    (a, b, cout) over the 2x2 output phases.  w_up: (inner, outer, 4, 4) -> (9*inner, 4*outer).
    """
    inner, outer = w_up.shape[0], w_up.shape[1]
    kmap = {(0, 0): 3, (0, 1): 1, (1, 1): 2, (1, 2): 0}   # (phase, window offset) -> kernel tap
    w2 = jnp.zeros((3, 3, inner, 2, 2, outer), w_up.dtype)
    for a in (0, 1):
        for b in (0, 1):
            for u in (0, 1, 2):
                for v in (0, 1, 2):
                    kh = kmap.get((a, u))
                    kw = kmap.get((b, v))
                    if kh is None or kw is None:
                        continue
                    w2 = w2.at[u, v, :, a, b, :].set(w_up[:, :, kh, kw])
    return w2.reshape(9 * inner, 4 * outer)


def nearest_resize_mask(mask_nchw, H, W):
    """PyTorch F.interpolate(mode='nearest') on an NCHW mask."""
    _, _, Hm, Wm = mask_nchw.shape
    idx_h = (jnp.arange(H) * Hm) // H
    idx_w = (jnp.arange(W) * Wm) // W
    return mask_nchw[:, :, idx_h[:, None], idx_w[None, :]]


# ----------------------------------------------------------------------------
# Module forward (innermost UnetBlockCodec with RAIN upnorm)
# ----------------------------------------------------------------------------
def unet_block_codec_innermost(x_nchw, mask_nchw, params):
    w_down = params["w_down"]    # (inner_nc, input_nc, 4, 4)   Conv2d OIHW
    w_up = params["w_up"]        # (inner_nc, outer_nc, 4, 4)   ConvTranspose2d (in,out,kh,kw)
    N, Cin, H, W = x_nchw.shape
    inner_nc = w_down.shape[0]
    outer_nc = w_up.shape[1]
    Ho, Wo = H // 2, W // 2

    # --- down: LeakyReLU(0.2) -> Conv2d(4,2,1,bias=False) -> ReLU (activations fused in matmul)
    x_nhwc = jnp.transpose(x_nchw, (0, 2, 3, 1)).astype(jnp.bfloat16)
    p1, _ = im2col(x_nhwc, k=4, stride=2, pad=1)                        # (N*Ho*Wo, 16*Cin)
    b1 = jnp.transpose(w_down, (2, 3, 1, 0)).reshape(16 * Cin, inner_nc).astype(jnp.bfloat16)
    h = matmul_act(p1, b1, in_act="leaky", out_act="relu", out_dtype=jnp.bfloat16)

    # --- up: ConvTranspose2d(4,2,1,bias=False) via fused sub-pixel kernel (no im2col in HBM)
    w_pack = build_subpixel_weight(w_up).astype(jnp.bfloat16)           # (9*inner, 4*outer)
    up = upconv_subpixel(h, w_pack, N=N, Ho=Ho, Wo=Wo, Ci=inner_nc)     # (N, Ho*Wo, 4*outer) bf16

    # depth-to-space phase interleave on the bf16 intermediate (single XLA permute).
    # TODO(synk): fold this permute into the RAIN kernel (strided stores) to drop the round trip.
    r = up.reshape(N, Ho, Wo, 2, 2, outer_nc)
    r = jnp.transpose(r, (0, 5, 1, 3, 2, 4)).reshape(N, outer_nc, H * W)

    # --- RAIN + skip concat, fused; writes the final (N, Cin+Cout, H*W) layout directly
    m = nearest_resize_mask(mask_nchw, H, W).reshape(N, 1, H * W).astype(jnp.float32)
    p4 = jnp.stack([params["fg_gamma"], params["fg_beta"],
                    params["bg_gamma"], params["bg_beta"]], axis=1).astype(jnp.float32)
    out = rain_concat(x_nchw.reshape(N, Cin, H * W).astype(jnp.float32), r, m, p4)
    return out.reshape(N, Cin + outer_nc, H, W)


# ----------------------------------------------------------------------------
# Pure-JAX fp32 reference (mirrors the PyTorch forward) for correctness check
# ----------------------------------------------------------------------------
def reference_forward(x, mask, params):
    w_down, w_up = params["w_down"], params["w_up"]
    y = jnp.where(x >= 0, x, 0.2 * x)
    h = lax.conv_general_dilated(y, w_down, (2, 2), ((1, 1), (1, 1)),
                                 dimension_numbers=("NCHW", "OIHW", "NCHW"))
    h = jnp.maximum(h, 0.0)
    w_conv = jnp.transpose(w_up, (1, 0, 2, 3))[:, :, ::-1, ::-1]
    r = lax.conv_general_dilated(h, w_conv, (1, 1), ((2, 2), (2, 2)),
                                 lhs_dilation=(2, 2),
                                 dimension_numbers=("NCHW", "OIHW", "NCHW"))
    m = nearest_resize_mask(mask, r.shape[2], r.shape[3])

    def stats(region, msk):
        s = region.sum((2, 3))
        num = msk.sum((2, 3))
        mu = s / (num + EPS)
        mean = mu[:, :, None, None]
        var = ((region + (1 - msk) * mean - mean) ** 2).sum((2, 3)) / (num + EPS)
        return mean, jnp.sqrt(var[:, :, None, None] + EPS)

    mean_b, std_b = stats(r * (1 - m), 1 - m)
    nb = (((r - mean_b) / std_b) * (1 + params["bg_gamma"][None, :, None, None])
          + params["bg_beta"][None, :, None, None]) * (1 - m)
    mean_f, std_f = stats(r * m, m)
    nf = ((((r - mean_f) / std_f) * std_b + mean_b)
          * (1 + params["fg_gamma"][None, :, None, None])
          + params["fg_beta"][None, :, None, None]) * m
    ret = nf + nb
    return jnp.concatenate([x, ret], axis=1)


if __name__ == "__main__":
    key = jax.random.PRNGKey(0)
    keys = jax.random.split(key, 8)

    N, input_nc, inner_nc, outer_nc = 2, 8, 16, 8
    H = W = 16

    x = jax.random.normal(keys[0], (N, input_nc, H, W), jnp.float32)
    mask = (jax.random.uniform(keys[1], (N, 1, 32, 32)) > 0.5).astype(jnp.float32)

    params = {
        "w_down": 0.1 * jax.random.normal(keys[2], (inner_nc, input_nc, 4, 4), jnp.float32),
        "w_up": 0.1 * jax.random.normal(keys[3], (inner_nc, outer_nc, 4, 4), jnp.float32),
        "fg_gamma": 0.05 * jax.random.normal(keys[4], (outer_nc,), jnp.float32),
        "fg_beta": 0.05 * jax.random.normal(keys[5], (outer_nc,), jnp.float32),
        "bg_gamma": 0.05 * jax.random.normal(keys[6], (outer_nc,), jnp.float32),
        "bg_beta": 0.05 * jax.random.normal(keys[7], (outer_nc,), jnp.float32),
    }

    fwd = jax.jit(unet_block_codec_innermost)
    out = jax.block_until_ready(fwd(x, mask, params))

    ref = jax.block_until_ready(reference_forward(x, mask, params))
    assert out.shape == (N, input_nc + outer_nc, H, W), out.shape
    # bf16 MXU inputs + bf16 h/r intermediates; RAIN stats are exact fp32 (rsqrt, exact counts).
    np.testing.assert_allclose(np.asarray(out), np.asarray(ref), rtol=4e-2, atol=4e-2)

    print("KERNEL_OK")
</pallas_src>

<mosaic_0001>
module attributes {stable_mosaic.version = 11 : i64} {
  func.func @_matmul_kernel(%arg0: i32, %arg1: i32, %arg2: i32, %arg3: memref<128x128xbf16, #tpu.memory_space<vmem>>, %arg4: memref<128x16xbf16, #tpu.memory_space<vmem>>, %arg5: memref<128x16xbf16, #tpu.memory_space<vmem>>, %arg6: memref<128x16xf32, #tpu.memory_space<vmem>>) attributes {dimension_semantics = [#tpu.dimension_semantics<parallel>, #tpu.dimension_semantics<parallel>, #tpu.dimension_semantics<arbitrary>], iteration_bounds = array<i64: 1, 1, 1>, scalar_prefetch = 0 : i64, scratch_operands = 1 : i64, tpu.core_type = #tpu.core_type<tc>, window_params = [{transform_indices = @transform_0, window_bounds = array<i64: 128, 128>}, {transform_indices = @transform_1, window_bounds = array<i64: 128, 16>}, {transform_indices = @transform_2, window_bounds = array<i64: 128, 16>}]} {
    %c0_i32 = arith.constant 0 : i32
    %0 = arith.cmpi eq, %arg2, %c0_i32 : i32
    %1 = arith.extui %0 : i1 to i32
    %c0_i32_0 = arith.constant 0 : i32
    %2 = arith.cmpi ne, %1, %c0_i32_0 : i32
    scf.if %2 {
      %cst_12 = arith.constant 0.000000e+00 : f32
      %17 = vector.broadcast %cst_12 : f32 to vector<128x16xf32>
      %c0_13 = arith.constant 0 : index
      %c0_14 = arith.constant 0 : index
      %18 = vector.load %arg6[%c0_13, %c0_14] : memref<128x16xf32, #tpu.memory_space<vmem>>, vector<128x16xf32>
      tpu.vector_store %arg6[%c0_13, %c0_14], %17 {strides = array<i32>} : memref<128x16xf32, #tpu.memory_space<vmem>>, vector<128x16xf32>,
    } else {
    }
    %c0 = arith.constant 0 : index
    %c0_1 = arith.constant 0 : index
    %3 = vector.load %arg3[%c0, %c0_1] : memref<128x128xbf16, #tpu.memory_space<vmem>>, vector<128x128xbf16>
    %cst = arith.constant 0.000000e+00 : bf16
    %4 = vector.broadcast %cst : bf16 to vector<128x128xbf16>
    %5 = arith.cmpf oge, %3, %4 : vector<128x128xbf16>
    %cst_2 = arith.constant 2.001950e-01 : bf16
    %6 = vector.broadcast %cst_2 : bf16 to vector<128x128xbf16>
    %7 = arith.mulf %6, %3 : vector<128x128xbf16>
    %8 = arith.select %5, %3, %7 : vector<128x128xi1>, vector<128x128xbf16>
    %c0_3 = arith.constant 0 : index
    %c0_4 = arith.constant 0 : index
    %9 = vector.load %arg6[%c0_3, %c0_4] : memref<128x16xf32, #tpu.memory_space<vmem>>, vector<128x16xf32>
    %c0_5 = arith.constant 0 : index
    %c0_6 = arith.constant 0 : index
    %10 = vector.load %arg4[%c0_5, %c0_6] : memref<128x16xbf16, #tpu.memory_space<vmem>>, vector<128x16xbf16>
    %cst_7 = arith.constant dense<0.000000e+00> : vector<128x16xf32>
    %11 = tpu.matmul %8, %10, %cst_7 {dimension_numbers = #tpu.dot_dimension_numbers<[1], [0], [0], [1], [0, 0, 1, 1], [], []>} : vector<128x128xbf16>, vector<128x16xbf16>, vector<128x16xf32> -> vector<128x16xf32>
    %12 = arith.addf %9, %11 : vector<128x16xf32>
    %c0_8 = arith.constant 0 : index
    %c0_9 = arith.constant 0 : index
    %13 = vector.load %arg6[%c0_8, %c0_9] : memref<128x16xf32, #tpu.memory_space<vmem>>, vector<128x16xf32>
    tpu.vector_store %arg6[%c0_8, %c0_9], %12 {strides = array<i32>} : memref<128x16xf32, #tpu.memory_space<vmem>>, vector<128x16xf32>,
    %c0_i32_10 = arith.constant 0 : i32
    %14 = arith.cmpi eq, %arg2, %c0_i32_10 : i32
    %15 = arith.extui %14 : i1 to i32
    %c0_i32_11 = arith.constant 0 : i32
    %16 = arith.cmpi ne, %15, %c0_i32_11 : i32
    scf.if %16 {
      %c0_12 = arith.constant 0 : index
      %c0_13 = arith.constant 0 : index
      %17 = vector.load %arg6[%c0_12, %c0_13] : memref<128x16xf32, #tpu.memory_space<vmem>>, vector<128x16xf32>
      %cst_14 = arith.constant 0.000000e+00 : f32
      %18 = vector.broadcast %cst_14 : f32 to vector<128x16xf32>
      %19 = arith.maximumf %17, %18 : vector<128x16xf32>
      %20 = arith.truncf %19 : vector<128x16xf32> to vector<128x16xbf16>
      %c0_15 = arith.constant 0 : index
      %c0_16 = arith.constant 0 : index
      %21 = vector.load %arg5[%c0_15, %c0_16] : memref<128x16xbf16, #tpu.memory_space<vmem>>, vector<128x16xbf16>
      tpu.vector_store %arg5[%c0_15, %c0_16], %20 {strides = array<i32>} : memref<128x16xbf16, #tpu.memory_space<vmem>>, vector<128x16xbf16>,
    } else {
    }
    return
  }
  func.func @transform_0(%arg0: i32, %arg1: i32, %arg2: i32) -> (i32, i32) {
    %c0_i32 = arith.constant 0 : i32
    return %arg0, %arg2 : i32, i32
  }
  func.func @transform_1(%arg0: i32, %arg1: i32, %arg2: i32) -> (i32, i32) {
    %c0_i32 = arith.constant 0 : i32
    return %arg2, %arg1 : i32, i32
  }
  func.func @transform_2(%arg0: i32, %arg1: i32, %arg2: i32) -> (i32, i32) {
    %c0_i32 = arith.constant 0 : i32
    return %arg0, %arg1 : i32, i32
  }
}

module attributes {stable_mosaic.version = 11 : i64} {
  func.func @_upconv_kernel(%arg0: i32, %arg1: i32, %arg2: memref<1x82x16xbf16, #tpu.memory_space<vmem>>, %arg3: memref<144x32xbf16, #tpu.memory_space<vmem>>, %arg4: memref<64x2xbf16, #tpu.memory_space<vmem>>, %arg5: memref<1x64x32xbf16, #tpu.memory_space<vmem>>) attributes {dimension_semantics = [#tpu.dimension_semantics<parallel>, #tpu.dimension_semantics<parallel>], iteration_bounds = array<i64: 2, 1>, scalar_prefetch = 0 : i64, scratch_operands = 0 : i64, tpu.core_type = #tpu.core_type<tc>, window_params = [{transform_indices = @transform_0, window_bounds = array<i64: 1, 82, 16>}, {transform_indices = @transform_1, window_bounds = array<i64: 144, 32>}, {pipeline_mode = #tpu.pipeline_mode<synchronous>, transform_indices = @transform_2, window_bounds = array<i64: 64, 2>}, {transform_indices = @transform_3, window_bounds = array<i64: 1, 64, 32>}]} {
    %c0 = arith.constant 0 : index
    %c0_0 = arith.constant 0 : index
    %0 = vector.load %arg4[%c0, %c0_0] : memref<64x2xbf16, #tpu.memory_space<vmem>>, vector<64x1xbf16>
    %c0_1 = arith.constant 0 : index
    %c1 = arith.constant 1 : index
    %1 = vector.load %arg4[%c0_1, %c1] : memref<64x2xbf16, #tpu.memory_space<vmem>>, vector<64x1xbf16>
    %cst = arith.constant 0.000000e+00 : f32
    %2 = vector.broadcast %cst : f32 to vector<64x32xf32>
    %c0_2 = arith.constant 0 : index
    %c0_3 = arith.constant 0 : index
    %c0_4 = arith.constant 0 : index
    %3 = vector.load %arg2[%c0_2, %c0_3, %c0_4] : memref<1x82x16xbf16, #tpu.memory_space<vmem>>, vector<1x64x16xbf16>
    %4 = vector.shape_cast %3 : vector<1x64x16xbf16> to vector<64x16xbf16>
    %5 = vector.broadcast %0 : vector<64x1xbf16> to vector<64x16xbf16>
    %6 = arith.mulf %4, %5 : vector<64x16xbf16>
    %c0_5 = arith.constant 0 : index
    %c0_6 = arith.constant 0 : index
    %7 = vector.load %arg3[%c0_5, %c0_6] : memref<144x32xbf16, #tpu.memory_space<vmem>>, vector<16x32xbf16>
    %cst_7 = arith.constant dense<0.000000e+00> : vector<64x32xf32>
    %8 = tpu.matmul %6, %7, %cst_7 {dimension_numbers = #tpu.dot_dimension_numbers<[1], [0], [0], [1], [0, 0, 1, 1], [], []>} : vector<64x16xbf16>, vector<16x32xbf16>, vector<64x32xf32> -> vector<64x32xf32>
    %9 = arith.addf %2, %8 : vector<64x32xf32>
    %c0_8 = arith.constant 0 : index
    %c1_9 = arith.constant 1 : index
    %c0_10 = arith.constant 0 : index
    %10 = vector.load %arg2[%c0_8, %c1_9, %c0_10] : memref<1x82x16xbf16, #tpu.memory_space<vmem>>, vector<1x64x16xbf16>
    %11 = vector.shape_cast %10 : vector<1x64x16xbf16> to vector<64x16xbf16>
    %c16 = arith.constant 16 : index
    %c0_11 = arith.constant 0 : index
    %12 = vector.load %arg3[%c16, %c0_11] : memref<144x32xbf16, #tpu.memory_space<vmem>>, vector<16x32xbf16>
    %cst_12 = arith.constant dense<0.000000e+00> : vector<64x32xf32>
    %13 = tpu.matmul %11, %12, %cst_12 {dimension_numbers = #tpu.dot_dimension_numbers<[1], [0], [0], [1], [0, 0, 1, 1], [], []>} : vector<64x16xbf16>, vector<16x32xbf16>, vector<64x32xf32> -> vector<64x32xf32>
    %14 = arith.addf %9, %13 : vector<64x32xf32>
    %c0_13 = arith.constant 0 : index
    %c2 = arith.constant 2 : index
    %c0_14 = arith.constant 0 : index
    %15 = vector.load %arg2[%c0_13, %c2, %c0_14] : memref<1x82x16xbf16, #tpu.memory_space<vmem>>, vector<1x64x16xbf16>
    %16 = vector.shape_cast %15 : vector<1x64x16xbf16> to vector<64x16xbf16>
    %17 = vector.broadcast %1 : vector<64x1xbf16> to vector<64x16xbf16>
    %18 = arith.mulf %16, %17 : vector<64x16xbf16>
    %c32 = arith.constant 32 : index
    %c0_15 = arith.constant 0 : index
    %19 = vector.load %arg3[%c32, %c0_15] : memref<144x32xbf16, #tpu.memory_space<vmem>>, vector<16x32xbf16>
    %cst_16 = arith.constant dense<0.000000e+00> : vector<64x32xf32>
    %20 = tpu.matmul %18, %19, %cst_16 {dimension_numbers = #tpu.dot_dimension_numbers<[1], [0], [0], [1], [0, 0, 1, 1], [], []>} : vector<64x16xbf16>, vector<16x32xbf16>, vector<64x32xf32> -> vector<64x32xf32>
    %21 = arith.addf %14, %20 : vector<64x32xf32>
    %c0_17 = arith.constant 0 : index
    %c8 = arith.constant 8 : index
    %c0_18 = arith.constant 0 : index
    %22 = vector.load %arg2[%c0_17, %c8, %c0_18] : memref<1x82x16xbf16, #tpu.memory_space<vmem>>, vector<1x64x16xbf16>
    %23 = vector.shape_cast %22 : vector<1x64x16xbf16> to vector<64x16xbf16>
    %24 = vector.broadcast %0 : vector<64x1xbf16> to vector<64x16xbf16>
    %25 = arith.mulf %23, %24 : vector<64x16xbf16>
    %c48 = arith.constant 48 : index
    %c0_19 = arith.constant 0 : index
    %26 = vector.load %arg3[%c48, %c0_19] : memref<144x32xbf16, #tpu.memory_space<vmem>>, vector<16x32xbf16>
    %cst_20 = arith.constant dense<0.000000e+00> : vector<64x32xf32>
    %27 = tpu.matmul %25, %26, %cst_20 {dimension_numbers = #tpu.dot_dimension_numbers<[1], [0], [0], [1], [0, 0, 1, 1], [], []>} : vector<64x16xbf16>, vector<16x32xbf16>, vector<64x32xf32> -> vector<64x32xf32>
    %28 = arith.addf %21, %27 : vector<64x32xf32>
    %c0_21 = arith.constant 0 : index
    %c9 = arith.constant 9 : index
    %c0_22 = arith.constant 0 : index
    %29 = vector.load %arg2[%c0_21, %c9, %c0_22] : memref<1x82x16xbf16, #tpu.memory_space<vmem>>, vector<1x64x16xbf16>
    %30 = vector.shape_cast %29 : vector<1x64x16xbf16> to vector<64x16xbf16>
    %c64 = arith.constant 64 : index
    %c0_23 = arith.constant 0 : index
    %31 = vector.load %arg3[%c64, %c0_23] : memref<144x32xbf16, #tpu.memory_space<vmem>>, vector<16x32xbf16>
    %cst_24 = arith.constant dense<0.000000e+00> : vector<64x32xf32>
    %32 = tpu.matmul %30, %31, %cst_24 {dimension_numbers = #tpu.dot_dimension_numbers<[1], [0], [0], [1], [0, 0, 1, 1], [], []>} : vector<64x16xbf16>, vector<16x32xbf16>, vector<64x32xf32> -> vector<64x32xf32>
    %33 = arith.addf %28, %32 : vector<64x32xf32>
    %c0_25 = arith.constant 0 : index
    %c10 = arith.constant 10 : index
    %c0_26 = arith.constant 0 : index
    %34 = vector.load %arg2[%c0_25, %c10, %c0_26] : memref<1x82x16xbf16, #tpu.memory_space<vmem>>, vector<1x64x16xbf16>
    %35 = vector.shape_cast %34 : vector<1x64x16xbf16> to vector<64x16xbf16>
    %36 = vector.broadcast %1 : vector<64x1xbf16> to vector<64x16xbf16>
    %37 = arith.mulf %35, %36 : vector<64x16xbf16>
    %c80 = arith.constant 80 : index
    %c0_27 = arith.constant 0 : index
    %38 = vector.load %arg3[%c80, %c0_27] : memref<144x32xbf16, #tpu.memory_space<vmem>>, vector<16x32xbf16>
    %cst_28 = arith.constant dense<0.000000e+00> : vector<64x32xf32>
    %39 = tpu.matmul %37, %38, %cst_28 {dimension_numbers = #tpu.dot_dimension_numbers<[1], [0], [0], [1], [0, 0, 1, 1], [], []>} : vector<64x16xbf16>, vector<16x32xbf16>, vector<64x32xf32> -> vector<64x32xf32>
    %40 = arith.addf %33, %39 : vector<64x32xf32>
    %c0_29 = arith.constant 0 : index
    %c16_30 = arith.constant 16 : index
    %c0_31 = arith.constant 0 : index
    %41 = vector.load %arg2[%c0_29, %c16_30, %c0_31] : memref<1x82x16xbf16, #tpu.memory_space<vmem>>, vector<1x64x16xbf16>
    %42 = vector.shape_cast %41 : vector<1x64x16xbf16> to vector<64x16xbf16>
    %43 = vector.broadcast %0 : vector<64x1xbf16> to vector<64x16xbf16>
    %44 = arith.mulf %42, %43 : vector<64x16xbf16>
    %c96 = arith.constant 96 : index
    %c0_32 = arith.constant 0 : index
    %45 = vector.load %arg3[%c96, %c0_32] : memref<144x32xbf16, #tpu.memory_space<vmem>>, vector<16x32xbf16>
    %cst_33 = arith.constant dense<0.000000e+00> : vector<64x32xf32>
    %46 = tpu.matmul %44, %45, %cst_33 {dimension_numbers = #tpu.dot_dimension_numbers<[1], [0], [0], [1], [0, 0, 1, 1], [], []>} : vector<64x16xbf16>, vector<16x32xbf16>, vector<64x32xf32> -> vector<64x32xf32>
    %47 = arith.addf %40, %46 : vector<64x32xf32>
    %c0_34 = arith.constant 0 : index
    %c17 = arith.constant 17 : index
    %c0_35 = arith.constant 0 : index
    %48 = vector.load %arg2[%c0_34, %c17, %c0_35] : memref<1x82x16xbf16, #tpu.memory_space<vmem>>, vector<1x64x16xbf16>
    %49 = vector.shape_cast %48 : vector<1x64x16xbf16> to vector<64x16xbf16>
    %c112 = arith.constant 112 : index
    %c0_36 = arith.constant 0 : index
    %50 = vector.load %arg3[%c112, %c0_36] : memref<144x32xbf16, #tpu.memory_space<vmem>>, vector<16x32xbf16>
    %cst_37 = arith.constant dense<0.000000e+00> : vector<64x32xf32>
    %51 = tpu.matmul %49, %50, %cst_37 {dimension_numbers = #tpu.dot_dimension_numbers<[1], [0], [0], [1], [0, 0, 1, 1], [], []>} : vector<64x16xbf16>, vector<16x32xbf16>, vector<64x32xf32> -> vector<64x32xf32>
    %52 = arith.addf %47, %51 : vector<64x32xf32>
    %c0_38 = arith.constant 0 : index
    %c18 = arith.constant 18 : index
    %c0_39 = arith.constant 0 : index
    %53 = vector.load %arg2[%c0_38, %c18, %c0_39] : memref<1x82x16xbf16, #tpu.memory_space<vmem>>, vector<1x64x16xbf16>
    %54 = vector.shape_cast %53 : vector<1x64x16xbf16> to vector<64x16xbf16>
    %55 = vector.broadcast %1 : vector<64x1xbf16> to vector<64x16xbf16>
    %56 = arith.mulf %54, %55 : vector<64x16xbf16>
    %c128 = arith.constant 128 : index
    %c0_40 = arith.constant 0 : index
    %57 = vector.load %arg3[%c128, %c0_40] : memref<144x32xbf16, #tpu.memory_space<vmem>>, vector<16x32xbf16>
    %cst_41 = arith.constant dense<0.000000e+00> : vector<64x32xf32>
    %58 = tpu.matmul %56, %57, %cst_41 {dimension_numbers = #tpu.dot_dimension_numbers<[1], [0], [0], [1], [0, 0, 1, 1], [], []>} : vector<64x16xbf16>, vector<16x32xbf16>, vector<64x32xf32> -> vector<64x32xf32>
    %59 = arith.addf %52, %58 : vector<64x32xf32>
    %60 = arith.truncf %59 : vector<64x32xf32> to vector<64x32xbf16>
    %c0_42 = arith.constant 0 : index
    %c0_43 = arith.constant 0 : index
    %c0_44 = arith.constant 0 : index
    %61 = vector.load %arg5[%c0_42, %c0_43, %c0_44] : memref<1x64x32xbf16, #tpu.memory_space<vmem>>, vector<1x64x32xbf16>
    %62 = vector.shape_cast %61 : vector<1x64x32xbf16> to vector<64x32xbf16>
    %63 = vector.shape_cast %60 : vector<64x32xbf16> to vector<1x64x32xbf16>
    tpu.vector_store %arg5[%c0_42, %c0_43, %c0_44], %63 {strides = array<i32>} : memref<1x64x32xbf16, #tpu.memory_space<vmem>>, vector<1x64x32xbf16>,
    return
  }
  func.func @transform_0(%arg0: i32, %arg1: i32) -> (i32, i32, i32) {
    %c0_i32 = arith.constant 0 : i32
    %c0_i32_0 = arith.constant 0 : i32
    %c0_i32_1 = arith.constant 0 : i32
    return %arg0, %c0_i32, %c0_i32_0 : i32, i32, i32
  }
  func.func @transform_1(%arg0: i32, %arg1: i32) -> (i32, i32) {
    %c0_i32 = arith.constant 0 : i32
    %c0_i32_0 = arith.constant 0 : i32
    return %c0_i32, %arg1 : i32, i32
  }
  func.func @transform_2(%arg0: i32, %arg1: i32) -> (i32, i32) {
    %c0_i32 = arith.constant 0 : i32
    %c0_i32_0 = arith.constant 0 : i32
    %c0_i32_1 = arith.constant 0 : i32
    return %c0_i32, %c0_i32_0 : i32, i32
  }
  func.func @transform_3(%arg0: i32, %arg1: i32) -> (i32, i32, i32) {
    %c0_i32 = arith.constant 0 : i32
    %c0_i32_0 = arith.constant 0 : i32
    return %arg0, %c0_i32, %arg1 : i32, i32, i32
  }
}

module attributes {stable_mosaic.version = 11 : i64} {
  func.func @_rain_concat_blocked_kernel(%arg0: i32, %arg1: i32, %arg2: memref<1x8x256xf32, #tpu.memory_space<vmem>>, %arg3: memref<1x8x256xbf16, #tpu.memory_space<vmem>>, %arg4: memref<1x1x256xf32, #tpu.memory_space<vmem>>, %arg5: memref<8x4xf32, #tpu.memory_space<vmem>>, %arg6: memref<1x8x256xf32, #tpu.memory_space<vmem>>) attributes {dimension_semantics = [#tpu.dimension_semantics<parallel>, #tpu.dimension_semantics<parallel>], iteration_bounds = array<i64: 2, 2>, scalar_prefetch = 0 : i64, scratch_operands = 0 : i64, tpu.core_type = #tpu.core_type<tc>, window_params = [{transform_indices = @transform_0, window_bounds = array<i64: 1, 8, 256>}, {transform_indices = @transform_1, window_bounds = array<i64: 1, 8, 256>}, {transform_indices = @transform_2, window_bounds = array<i64: 1, 1, 256>}, {transform_indices = @transform_3, window_bounds = array<i64: 8, 4>}, {transform_indices = @transform_4, window_bounds = array<i64: 1, 8, 256>}]} {
    %c1_i32 = arith.constant 1 : i32
    %0 = arith.cmpi slt, %arg1, %c1_i32 : i32
    %1 = arith.extui %0 : i1 to i32
    %c0_i32 = arith.constant 0 : i32
    %2 = arith.cmpi ne, %1, %c0_i32 : i32
    scf.if %2 {
      %c0 = arith.constant 0 : index
      %c0_2 = arith.constant 0 : index
      %c0_3 = arith.constant 0 : index
      %6 = vector.load %arg2[%c0, %c0_2, %c0_3] : memref<1x8x256xf32, #tpu.memory_space<vmem>>, vector<1x8x256xf32>
      %7 = vector.shape_cast %6 : vector<1x8x256xf32> to vector<8x256xf32>
      %c0_4 = arith.constant 0 : index
      %c0_5 = arith.constant 0 : index
      %c0_6 = arith.constant 0 : index
      %8 = vector.load %arg6[%c0_4, %c0_5, %c0_6] : memref<1x8x256xf32, #tpu.memory_space<vmem>>, vector<1x8x256xf32>
      %9 = vector.shape_cast %8 : vector<1x8x256xf32> to vector<8x256xf32>
      %10 = vector.shape_cast %7 : vector<8x256xf32> to vector<1x8x256xf32>
      tpu.vector_store %arg6[%c0_4, %c0_5, %c0_6], %10 {strides = array<i32>} : memref<1x8x256xf32, #tpu.memory_space<vmem>>, vector<1x8x256xf32>,
    } else {
    }
    %c1_i32_0 = arith.constant 1 : i32
    %3 = arith.cmpi sge, %arg1, %c1_i32_0 : i32
    %4 = arith.extui %3 : i1 to i32
    %c0_i32_1 = arith.constant 0 : i32
    %5 = arith.cmpi ne, %4, %c0_i32_1 : i32
    scf.if %5 {
      %c0 = arith.constant 0 : index
      %c0_2 = arith.constant 0 : index
      %c0_3 = arith.constant 0 : index
      %6 = vector.load %arg3[%c0, %c0_2, %c0_3] : memref<1x8x256xbf16, #tpu.memory_space<vmem>>, vector<1x8x256xbf16>
      %7 = vector.shape_cast %6 : vector<1x8x256xbf16> to vector<8x256xbf16>
      %8 = arith.extf %7 : vector<8x256xbf16> to vector<8x256xf32>
      %c0_4 = arith.constant 0 : index
      %c0_5 = arith.constant 0 : index
      %c0_6 = arith.constant 0 : index
      %9 = vector.load %arg4[%c0_4, %c0_5, %c0_6] : memref<1x1x256xf32, #tpu.memory_space<vmem>>, vector<1x1x256xf32>
      %10 = vector.shape_cast %9 : vector<1x1x256xf32> to vector<1x256xf32>
      %c0_7 = arith.constant 0 : index
      %c0_8 = arith.constant 0 : index
      %11 = vector.load %arg5[%c0_7, %c0_8] : memref<8x4xf32, #tpu.memory_space<vmem>>, vector<8x1xf32>
      %cst = arith.constant 1.000000e+00 : f32
      %12 = vector.broadcast %cst : f32 to vector<8x1xf32>
      %13 = arith.addf %12, %11 : vector<8x1xf32>
      %c0_9 = arith.constant 0 : index
      %c1 = arith.constant 1 : index
      %14 = vector.load %arg5[%c0_9, %c1] : memref<8x4xf32, #tpu.memory_space<vmem>>, vector<8x1xf32>
      %c0_10 = arith.constant 0 : index
      %c2 = arith.constant 2 : index
      %15 = vector.load %arg5[%c0_10, %c2] : memref<8x4xf32, #tpu.memory_space<vmem>>, vector<8x1xf32>
      %cst_11 = arith.constant 1.000000e+00 : f32
      %16 = vector.broadcast %cst_11 : f32 to vector<8x1xf32>
      %17 = arith.addf %16, %15 : vector<8x1xf32>
      %c0_12 = arith.constant 0 : index
      %c3 = arith.constant 3 : index
      %18 = vector.load %arg5[%c0_12, %c3] : memref<8x4xf32, #tpu.memory_space<vmem>>, vector<8x1xf32>
      %cst_13 = arith.constant dense<0.000000e+00> : vector<1xf32>
      %19 = vector.multi_reduction <add>, %10, %cst_13 [1] : vector<1x256xf32> to vector<1xf32>
      %20 = vector.shape_cast %19 : vector<1xf32> to vector<1x1xf32>
      %cst_14 = arith.constant 2.560000e+02 : f32
      %21 = vector.broadcast %cst_14 : f32 to vector<1x1xf32>
      %22 = arith.subf %21, %20 : vector<1x1xf32>
      %23 = arith.mulf %8, %8 : vector<8x256xf32>
      %24 = vector.broadcast %10 : vector<1x256xf32> to vector<8x256xf32>
      %25 = arith.mulf %8, %24 : vector<8x256xf32>
      %cst_15 = arith.constant dense<0.000000e+00> : vector<8xf32>
      %26 = vector.multi_reduction <add>, %25, %cst_15 [1] : vector<8x256xf32> to vector<8xf32>
      %27 = vector.shape_cast %26 : vector<8xf32> to vector<8x1xf32>
      %28 = vector.broadcast %10 : vector<1x256xf32> to vector<8x256xf32>
      %29 = arith.mulf %23, %28 : vector<8x256xf32>
      %cst_16 = arith.constant dense<0.000000e+00> : vector<8xf32>
      %30 = vector.multi_reduction <add>, %29, %cst_16 [1] : vector<8x256xf32> to vector<8xf32>
      %31 = vector.shape_cast %30 : vector<8xf32> to vector<8x1xf32>
      %cst_17 = arith.constant dense<0.000000e+00> : vector<8xf32>
      %32 = vector.multi_reduction <add>, %8, %cst_17 [1] : vector<8x256xf32> to vector<8xf32>
      %33 = vector.shape_cast %32 : vector<8xf32> to vector<8x1xf32>
      %cst_18 = arith.constant dense<0.000000e+00> : vector<8xf32>
      %34 = vector.multi_reduction <add>, %23, %cst_18 [1] : vector<8x256xf32> to vector<8xf32>
      %35 = vector.shape_cast %34 : vector<8xf32> to vector<8x1xf32>
      %36 = arith.subf %33, %27 : vector<8x1xf32>
      %37 = arith.subf %35, %31 : vector<8x1xf32>
      %cst_19 = arith.constant 9.99999974E-6 : f32
      %38 = vector.broadcast %cst_19 : f32 to vector<1x1xf32>
      %39 = arith.addf %20, %38 : vector<1x1xf32>
      %cst_20 = arith.constant 1.000000e+00 : f32
      %40 = vector.broadcast %cst_20 : f32 to vector<1x1xf32>
      %41 = arith.divf %40, %39 : vector<1x1xf32>
      %cst_21 = arith.constant 9.99999974E-6 : f32
      %42 = vector.broadcast %cst_21 : f32 to vector<1x1xf32>
      %43 = arith.addf %22, %42 : vector<1x1xf32>
      %cst_22 = arith.constant 1.000000e+00 : f32
      %44 = vector.broadcast %cst_22 : f32 to vector<1x1xf32>
      %45 = arith.divf %44, %43 : vector<1x1xf32>
      %46 = vector.broadcast %41 : vector<1x1xf32> to vector<8x1xf32>
      %47 = arith.mulf %27, %46 : vector<8x1xf32>
      %48 = vector.broadcast %45 : vector<1x1xf32> to vector<8x1xf32>
      %49 = arith.mulf %36, %48 : vector<8x1xf32>
      %cst_23 = arith.constant 2.000000e+00 : f32
      %50 = vector.broadcast %cst_23 : f32 to vector<8x1xf32>
      %51 = arith.mulf %50, %47 : vector<8x1xf32>
      %52 = arith.mulf %51, %27 : vector<8x1xf32>
      %53 = arith.subf %31, %52 : vector<8x1xf32>
      %54 = arith.mulf %47, %47 : vector<8x1xf32>
      %55 = vector.broadcast %20 : vector<1x1xf32> to vector<8x1xf32>
      %56 = arith.mulf %54, %55 : vector<8x1xf32>
      %57 = arith.addf %53, %56 : vector<8x1xf32>
      %58 = vector.broadcast %41 : vector<1x1xf32> to vector<8x1xf32>
      %59 = arith.mulf %57, %58 : vector<8x1xf32>
      %cst_24 = arith.constant 2.000000e+00 : f32
      %60 = vector.broadcast %cst_24 : f32 to vector<8x1xf32>
      %61 = arith.mulf %60, %49 : vector<8x1xf32>
      %62 = arith.mulf %61, %36 : vector<8x1xf32>
      %63 = arith.subf %37, %62 : vector<8x1xf32>
      %64 = arith.mulf %49, %49 : vector<8x1xf32>
      %65 = vector.broadcast %22 : vector<1x1xf32> to vector<8x1xf32>
      %66 = arith.mulf %64, %65 : vector<8x1xf32>
      %67 = arith.addf %63, %66 : vector<8x1xf32>
      %68 = vector.broadcast %45 : vector<1x1xf32> to vector<8x1xf32>
      %69 = arith.mulf %67, %68 : vector<8x1xf32>
      %cst_25 = arith.constant 9.99999974E-6 : f32
      %70 = vector.broadcast %cst_25 : f32 to vector<8x1xf32>
      %71 = arith.addf %69, %70 : vector<8x1xf32>
      %72 = math.rsqrt %71 : vector<8x1xf32>
      %cst_26 = arith.constant 9.99999974E-6 : f32
      %73 = vector.broadcast %cst_26 : f32 to vector<8x1xf32>
      %74 = arith.addf %59, %73 : vector<8x1xf32>
      %75 = math.rsqrt %74 : vector<8x1xf32>
      %cst_27 = arith.constant 9.99999974E-6 : f32
      %76 = vector.broadcast %cst_27 : f32 to vector<8x1xf32>
      %77 = arith.addf %69, %76 : vector<8x1xf32>
      %78 = arith.mulf %77, %72 : vector<8x1xf32>
      %79 = arith.mulf %72, %17 : vector<8x1xf32>
      %80 = arith.mulf %49, %79 : vector<8x1xf32>
      %81 = arith.subf %18, %80 : vector<8x1xf32>
      %82 = arith.mulf %75, %78 : vector<8x1xf32>
      %83 = arith.mulf %82, %13 : vector<8x1xf32>
      %84 = arith.mulf %47, %82 : vector<8x1xf32>
      %85 = arith.subf %49, %84 : vector<8x1xf32>
      %86 = arith.mulf %85, %13 : vector<8x1xf32>
      %87 = arith.addf %86, %14 : vector<8x1xf32>
      %88 = arith.subf %83, %79 : vector<8x1xf32>
      %89 = vector.broadcast %10 : vector<1x256xf32> to vector<8x256xf32>
      %90 = vector.broadcast %88 : vector<8x1xf32> to vector<8x256xf32>
      %91 = arith.mulf %89, %90 : vector<8x256xf32>
      %92 = vector.broadcast %79 : vector<8x1xf32> to vector<8x256xf32>
      %93 = arith.addf %92, %91 : vector<8x256xf32>
      %94 = arith.subf %87, %81 : vector<8x1xf32>
      %95 = vector.broadcast %10 : vector<1x256xf32> to vector<8x256xf32>
      %96 = vector.broadcast %94 : vector<8x1xf32> to vector<8x256xf32>
      %97 = arith.mulf %95, %96 : vector<8x256xf32>
      %98 = vector.broadcast %81 : vector<8x1xf32> to vector<8x256xf32>
      %99 = arith.addf %98, %97 : vector<8x256xf32>
      %100 = arith.mulf %8, %93 : vector<8x256xf32>
      %101 = arith.addf %100, %99 : vector<8x256xf32>
      %c0_28 = arith.constant 0 : index
      %c0_29 = arith.constant 0 : index
      %c0_30 = arith.constant 0 : index
      %102 = vector.load %arg6[%c0_28, %c0_29, %c0_30] : memref<1x8x256xf32, #tpu.memory_space<vmem>>, vector<1x8x256xf32>
      %103 = vector.shape_cast %102 : vector<1x8x256xf32> to vector<8x256xf32>
      %104 = vector.shape_cast %101 : vector<8x256xf32> to vector<1x8x256xf32>
      tpu.vector_store %arg6[%c0_28, %c0_29, %c0_30], %104 {strides = array<i32>} : memref<1x8x256xf32, #tpu.memory_space<vmem>>, vector<1x8x256xf32>,
    } else {
    }
    return
  }
  func.func @transform_0(%arg0: i32, %arg1: i32) -> (i32, i32, i32) {
    %c0_i32 = arith.constant 0 : i32
    %0 = arith.minsi %arg1, %c0_i32 : i32
    %c0_i32_0 = arith.constant 0 : i32
    %c0_i32_1 = arith.constant 0 : i32
    return %arg0, %0, %c0_i32_0 : i32, i32, i32
  }
  func.func @transform_1(%arg0: i32, %arg1: i32) -> (i32, i32, i32) {
    %c1_i32 = arith.constant 1 : i32
    %0 = arith.subi %arg1, %c1_i32 : i32
    %c0_i32 = arith.constant 0 : i32
    %1 = arith.maxsi %0, %c0_i32 : i32
    %c0_i32_0 = arith.constant 0 : i32
    %c0_i32_1 = arith.constant 0 : i32
    return %arg0, %1, %c0_i32_0 : i32, i32, i32
  }
  func.func @transform_2(%arg0: i32, %arg1: i32) -> (i32, i32, i32) {
    %c0_i32 = arith.constant 0 : i32
    %c0_i32_0 = arith.constant 0 : i32
    %c0_i32_1 = arith.constant 0 : i32
    return %arg0, %c0_i32, %c0_i32_0 : i32, i32, i32
  }
  func.func @transform_3(%arg0: i32, %arg1: i32) -> (i32, i32) {
    %c1_i32 = arith.constant 1 : i32
    %0 = arith.subi %arg1, %c1_i32 : i32
    %c0_i32 = arith.constant 0 : i32
    %1 = arith.maxsi %0, %c0_i32 : i32
    %c0_i32_0 = arith.constant 0 : i32
    %c0_i32_1 = arith.constant 0 : i32
    return %1, %c0_i32_0 : i32, i32
  }
  func.func @transform_4(%arg0: i32, %arg1: i32) -> (i32, i32, i32) {
    %c0_i32 = arith.constant 0 : i32
    %c0_i32_0 = arith.constant 0 : i32
    return %arg0, %arg1, %c0_i32 : i32, i32, i32
  }
}

</mosaic_0001>

<llo_original>
// kernel: unet_block_codec_innermost.3
$region0: #{unet_block_codec_innermost.3}
  #allocation0 [shape = 'u32[]', space=smem, size = 0x4, offset = 0x4, fixed_abs, tag = 'smem constant byte address 0x4 - core index']
  #allocation1 [shape = 'u32[144,128]{1,0:T(1,128)}', space=vmem, size = 0x12000, scoped, tag = 'internal scratch']
  #allocation2 [shape = 'f32[128,16]{1,0:T(8,128)}', space=vmem, size = 0x10000, scoped, tag = 'scratch operand']
  %s0 = inlined_call_operand.vmem [shape: bf16[128,128], index: 0, kind: input, shape index: {}]
  %s1 = inlined_call_operand.vmem [shape: bf16[128,16], index: 1, kind: input, shape index: {}]
  %s2 = inlined_call_operand.vmem [shape: bf16[128,16], index: 2, kind: output, shape index: {}]
  %s3 = sld [smem:[#allocation0]]
  $region26: #{unet_block_codec_innermost.3} parent=0
    _
  %s5 = ssub.s32 1, %s3
  %s6 = scalar_select 0, %s5, %s3
  // Predicated region
  $region2: #{unet_block_codec_innermost.3} parent=0 // pred_check
    _
  $region3: #{unet_block_codec_innermost.3} parent=0 // pred_check_branch
    %8 = sbr.rel (0) target = $region5
  $region4: #{unet_block_codec_innermost.3} parent=0 // pred_region
    _
  $region5: #{unet_block_codec_innermost.3} parent=0 // pred_fallthru
    _
  // Predicated region
  $region6: #{unet_block_codec_innermost.3} parent=0 // pred_check
    _
  $region7: #{unet_block_codec_innermost.3} parent=0 // pred_check_branch
    %10 = sbr.rel (0) target = $region9
  $region8: #{unet_block_codec_innermost.3} parent=0 // pred_region
    _
  $region9: #{unet_block_codec_innermost.3} parent=0 // pred_fallthru
    _
  %p13 = scmp.eq.s32.totalorder 0, 0
  // Predicated region
  $region10: #{unet_block_codec_innermost.3} parent=0 // pred_check
    %p14 = pneg %p13
  $region11: #{unet_block_codec_innermost.3} parent=0 // pred_check_branch
    %16 = sbr.rel (%p14) target = $region13
  $region12: #{unet_block_codec_innermost.3} parent=0 // pred_region
    %vm17 = vcmask 130048
    %18 = vst.msk [vmem:[#allocation2] sm:$0xff] %vm17, 0.0
    %19 = vst.msk [vmem:[#allocation2 + $0x8] sm:$0xff] %vm17, 0.0
    %20 = vst.msk [vmem:[#allocation2 + $0x10] sm:$0xff] %vm17, 0.0
    %21 = vst.msk [vmem:[#allocation2 + $0x18] sm:$0xff] %vm17, 0.0
    %22 = vst.msk [vmem:[#allocation2 + $0x20] sm:$0xff] %vm17, 0.0
    %23 = vst.msk [vmem:[#allocation2 + $0x28] sm:$0xff] %vm17, 0.0
    %24 = vst.msk [vmem:[#allocation2 + $0x30] sm:$0xff] %vm17, 0.0
    %25 = vst.msk [vmem:[#allocation2 + $0x38] sm:$0xff] %vm17, 0.0
    %26 = vst.msk [vmem:[#allocation2 + $0x40] sm:$0xff] %vm17, 0.0
    %27 = vst.msk [vmem:[#allocation2 + $0x48] sm:$0xff] %vm17, 0.0
    %28 = vst.msk [vmem:[#allocation2 + $0x50] sm:$0xff] %vm17, 0.0
    %29 = vst.msk [vmem:[#allocation2 + $0x58] sm:$0xff] %vm17, 0.0
    %30 = vst.msk [vmem:[#allocation2 + $0x60] sm:$0xff] %vm17, 0.0
    %31 = vst.msk [vmem:[#allocation2 + $0x68] sm:$0xff] %vm17, 0.0
    %32 = vst.msk [vmem:[#allocation2 + $0x70] sm:$0xff] %vm17, 0.0
    %33 = vst.msk [vmem:[#allocation2 + $0x78] sm:$0xff] %vm17, 0.0
  $region13: #{unet_block_codec_innermost.3} parent=0 // pred_fallthru
    _
  %v34 = vld [vmem:[%s0] sm:$0xf]
  %v35 = vld [vmem:[%s0 + $0x4] sm:$0xf]
  %v36 = vld [vmem:[%s0 + $0x8] sm:$0xf]
  %v37 = vld [vmem:[%s0 + $0xc] sm:$0xf]
  %v38 = vld [vmem:[%s0 + $0x10] sm:$0xf]
  %v39 = vld [vmem:[%s0 + $0x14] sm:$0xf]
  %v40 = vld [vmem:[%s0 + $0x18] sm:$0xf]
  %v41 = vld [vmem:[%s0 + $0x1c] sm:$0xf]
  %v42 = vld [vmem:[%s0 + $0x20] sm:$0xf]
  %v43 = vld [vmem:[%s0 + $0x24] sm:$0xf]
  %v44 = vld [vmem:[%s0 + $0x28] sm:$0xf]
  %v45 = vld [vmem:[%s0 + $0x2c] sm:$0xf]
  %v46 = vld [vmem:[%s0 + $0x30] sm:$0xf]
  %v47 = vld [vmem:[%s0 + $0x34] sm:$0xf]
  %v48 = vld [vmem:[%s0 + $0x38] sm:$0xf]
  %v49 = vld [vmem:[%s0 + $0x3c] sm:$0xf]
  %vm50 = vcmp.ge.bf16.partialorder %v34, 0
  %vm51 = vcmp.ge.bf16.partialorder %v35, 0
  %vm52 = vcmp.ge.bf16.partialorder %v36, 0
  %vm53 = vcmp.ge.bf16.partialorder %v37, 0
  %vm54 = vcmp.ge.bf16.partialorder %v38, 0
  %vm55 = vcmp.ge.bf16.partialorder %v39, 0
  %vm56 = vcmp.ge.bf16.partialorder %v40, 0
  %vm57 = vcmp.ge.bf16.partialorder %v41, 0
  %vm58 = vcmp.ge.bf16.partialorder %v42, 0
  %vm59 = vcmp.ge.bf16.partialorder %v43, 0
  %vm60 = vcmp.ge.bf16.partialorder %v44, 0
  %vm61 = vcmp.ge.bf16.partialorder %v45, 0
  %vm62 = vcmp.ge.bf16.partialorder %v46, 0
  %vm63 = vcmp.ge.bf16.partialorder %v47, 0
  %vm64 = vcmp.ge.bf16.partialorder %v48, 0
  %vm65 = vcmp.ge.bf16.partialorder %v49, 0
  %v66 = vmul.bf16 %v34, 1045249613
  %v67 = vmul.bf16 %v35, 1045249613
  %v68 = vmul.bf16 %v36, 1045249613
  %v69 = vmul.bf16 %v37, 1045249613
  %v70 = vmul.bf16 %v38, 1045249613
  %v71 = vmul.bf16 %v39, 1045249613
  %v72 = vmul.bf16 %v40, 1045249613
  %v73 = vmul.bf16 %v41, 1045249613
  %v74 = vmul.bf16 %v42, 1045249613
  %v75 = vmul.bf16 %v43, 1045249613
  %v76 = vmul.bf16 %v44, 1045249613
  %v77 = vmul.bf16 %v45, 1045249613
  %v78 = vmul.bf16 %v46, 1045249613
  %v79 = vmul.bf16 %v47, 1045249613
  %v80 = vmul.bf16 %v48, 1045249613
  %v81 = vmul.bf16 %v49, 1045249613
  %v82 = vsel %vm50, %v34, %v66
  %v83 = vsel %vm51, %v35, %v67
  %v84 = vsel %vm52, %v36, %v68
  %v85 = vsel %vm53, %v37, %v69
  %v86 = vsel %vm54, %v38, %v70
  %v87 = vsel %vm55, %v39, %v71
  %v88 = vsel %vm56, %v40, %v72
  %v89 = vsel %vm57, %v41, %v73
  %v90 = vsel %vm58, %v42, %v74
  %v91 = vsel %vm59, %v43, %v75
  %v92 = vsel %vm60, %v44, %v76
  %v93 = vsel %vm61, %v45, %v77
  %v94 = vsel %vm62, %v46, %v78
  %v95 = vsel %vm63, %v47, %v79
  %v96 = vsel %vm64, %v48, %v80
  %v97 = vsel %vm65, %v49, %v81
  %v98 = vld [vmem:[#allocation2] sm:$0xff]
  %v99 = vld [vmem:[#allocation2 + $0x8] sm:$0xff]
  %v100 = vld [vmem:[#allocation2 + $0x10] sm:$0xff]
  %v101 = vld [vmem:[#allocation2 + $0x18] sm:$0xff]
  %v102 = vld [vmem:[#allocation2 + $0x20] sm:$0xff]
  %v103 = vld [vmem:[#allocation2 + $0x28] sm:$0xff]
  %v104 = vld [vmem:[#allocation2 + $0x30] sm:$0xff]
  %v105 = vld [vmem:[#allocation2 + $0x38] sm:$0xff]
  %v106 = vld [vmem:[#allocation2 + $0x40] sm:$0xff]
  %v107 = vld [vmem:[#allocation2 + $0x48] sm:$0xff]
  %v108 = vld [vmem:[#allocation2 + $0x50] sm:$0xff]
  %v109 = vld [vmem:[#allocation2 + $0x58] sm:$0xff]
  %v110 = vld [vmem:[#allocation2 + $0x60] sm:$0xff]
  %v111 = vld [vmem:[#allocation2 + $0x68] sm:$0xff]
  %v112 = vld [vmem:[#allocation2 + $0x70] sm:$0xff]
  %v113 = vld [vmem:[#allocation2 + $0x78] sm:$0xff]
  %v114 = vld [vmem:[%s1] sm:$0xf]
  %v115 = vld [vmem:[%s1 + $0x4] sm:$0xf]
  %v116 = vld [vmem:[%s1 + $0x8] sm:$0xf]
  %v117 = vld [vmem:[%s1 + $0xc] sm:$0xf]
  %v118 = vld [vmem:[%s1 + $0x10] sm:$0xf]
  %v119 = vld [vmem:[%s1 + $0x14] sm:$0xf]
  %v120 = vld [vmem:[%s1 + $0x18] sm:$0xf]
  %v121 = vld [vmem:[%s1 + $0x1c] sm:$0xf]
  %v122 = vld [vmem:[%s1 + $0x20] sm:$0xf]
  %v123 = vld [vmem:[%s1 + $0x24] sm:$0xf]
  %v124 = vld [vmem:[%s1 + $0x28] sm:$0xf]
  %v125 = vld [vmem:[%s1 + $0x2c] sm:$0xf]
  %v126 = vld [vmem:[%s1 + $0x30] sm:$0xf]
  %v127 = vld [vmem:[%s1 + $0x34] sm:$0xf]
  %v128 = vld [vmem:[%s1 + $0x38] sm:$0xf]
  %v129 = vld [vmem:[%s1 + $0x3c] sm:$0xf]
  %v146 = vunpack.c.l.b16 %v82
  %v147 = vunpack.c.l.b16 %v83
  %v148 = vunpack.c.l.b16 %v84
  %v149 = vunpack.c.l.b16 %v85
  %v150 = vunpack.c.l.b16 %v86
  %v151 = vunpack.c.l.b16 %v87
  %v152 = vunpack.c.l.b16 %v88
  %v153 = vunpack.c.l.b16 %v89
  %v154 = vunpack.c.l.b16 %v90
  %v155 = vunpack.c.l.b16 %v91
  %v156 = vunpack.c.l.b16 %v92
  %v157 = vunpack.c.l.b16 %v93
  %v158 = vunpack.c.l.b16 %v94
  %v159 = vunpack.c.l.b16 %v95
  %v160 = vunpack.c.l.b16 %v96
  %v161 = vunpack.c.l.b16 %v97
  %v162 = vpack.c.b16 %v147, %v146
  %v163 = vpack.c.b16 %v149, %v148
  %v164 = vpack.c.b16 %v151, %v150
  %v165 = vpack.c.b16 %v153, %v152
  %v166 = vpack.c.b16 %v155, %v154
  %v167 = vpack.c.b16 %v157, %v156
  %v168 = vpack.c.b16 %v159, %v158
  %v169 = vpack.c.b16 %v161, %v160
  %v194 = vunpack.c.l.b16 %v114
  %v195 = vunpack.c.l.b16 %v115
  %v196 = vunpack.c.l.b16 %v116
  %v197 = vunpack.c.l.b16 %v117
  %v198 = vunpack.c.l.b16 %v118
  %v199 = vunpack.c.l.b16 %v119
  %v200 = vunpack.c.l.b16 %v120
  %v201 = vunpack.c.l.b16 %v121
  %v202 = vunpack.c.l.b16 %v122
  %v203 = vunpack.c.l.b16 %v123
  %v204 = vunpack.c.l.b16 %v124
  %v205 = vunpack.c.l.b16 %v125
  %v206 = vunpack.c.l.b16 %v126
  %v207 = vunpack.c.l.b16 %v127
  %v208 = vunpack.c.l.b16 %v128
  %v209 = vunpack.c.l.b16 %v129
  %v210 = vpack.c.b16 %v195, %v194
  %v211 = vpack.c.b16 %v197, %v196
  %v212 = vpack.c.b16 %v199, %v198
  %v213 = vpack.c.b16 %v201, %v200
  %v214 = vpack.c.b16 %v203, %v202
  %v215 = vpack.c.b16 %v205, %v204
  %v216 = vpack.c.b16 %v207, %v206
  %v217 = vpack.c.b16 %v209, %v208
  %226 = vmatprep.subr.bf16.mxu0 0
  %227 = vmatpush1.bf16.msra.mxu0 %v210
  %228 = vmatprep.subr.bf16.mxu0 0
  %229 = vmatpush1.bf16.msra.mxu0 %v211
  %230 = vmatprep.subr.bf16.mxu0 0
  %231 = vmatpush1.bf16.msra.mxu0 %v212
  %232 = vmatprep.subr.bf16.mxu0 0
  %233 = vmatpush1.bf16.msra.mxu0 %v213
  %234 = vmatprep.subr.bf16.mxu0 0
  %235 = vmatpush1.bf16.msra.mxu0 %v214
  %236 = vmatprep.subr.bf16.mxu0 0
  %237 = vmatpush1.bf16.msra.mxu0 %v215
  %238 = vmatprep.subr.bf16.mxu0 0
  %239 = vmatpush1.bf16.msra.mxu0 %v216
  %240 = vmatprep.subr.bf16.mxu0 0
  %241 = vmatpush1.bf16.msra.mxu0 %v217
  %242 = vmatprep.subr.bf16.mxu0 0
  %243 = vmatpush1.bf16.msra.mxu0 0
  %244 = vmatprep.subr.bf16.mxu0 0
  %245 = vmatpush1.bf16.msra.mxu0 0
  %246 = vmatprep.subr.bf16.mxu0 0
  %247 = vmatpush1.bf16.msra.mxu0 0
  %248 = vmatprep.subr.bf16.mxu0 0
  %249 = vmatpush1.bf16.msra.mxu0 0
  %250 = vmatprep.subr.bf16.mxu0 0
  %251 = vmatpush1.bf16.msra.mxu0 0
  %252 = vmatprep.subr.bf16.mxu0 0
  %253 = vmatpush1.bf16.msra.mxu0 0
  %254 = vmatprep.subr.bf16.mxu0 0
  %255 = vmatpush1.bf16.msra.mxu0 0
  %256 = vmatprep.subr.bf16.mxu0 0
  %257 = vmatpush1.bf16.msra.mxu0 0
  %258 = vmatprep.mubr.bf16.mxu0 0
  %259 = vmatmul.mubr.bf16.gmra.mrb[0].mxu0 %v162
  %v260 = vpop.f32.mrb[0].mxu0
  %v261 = vadd.f32 0.0, %v260
  %v262 = vpop.f32.mrb[0].mxu0
  %v263 = vpop.f32.mrb[0].mxu0
  %v264 = vadd.f32 0.0, %v263
  %v265 = vpop.f32.mrb[0].mxu0
  %266 = vmatprep.mubr.bf16.mxu0 0
  %267 = vmatmul.mubr.bf16.gmra.mrb[0].mxu0 %v163
  %v268 = vpop.f32.mrb[0].mxu0
  %v269 = vadd.f32 0.0, %v268
  %v270 = vpop.f32.mrb[0].mxu0
  %v271 = vpop.f32.mrb[0].mxu0
  %v272 = vadd.f32 0.0, %v271
  %v273 = vpop.f32.mrb[0].mxu0
  %274 = vmatprep.mubr.bf16.mxu0 0
  %275 = vmatmul.mubr.bf16.gmra.mrb[0].mxu0 %v164
  %v276 = vpop.f32.mrb[0].mxu0
  %v277 = vadd.f32 0.0, %v276
  %v278 = vpop.f32.mrb[0].mxu0
  %v279 = vpop.f32.mrb[0].mxu0
  %v280 = vadd.f32 0.0, %v279
  %v281 = vpop.f32.mrb[0].mxu0
  %282 = vmatprep.mubr.bf16.mxu0 0
  %283 = vmatmul.mubr.bf16.gmra.mrb[0].mxu0 %v165
  %v284 = vpop.f32.mrb[0].mxu0
  %v285 = vadd.f32 0.0, %v284
  %v286 = vpop.f32.mrb[0].mxu0
  %v287 = vpop.f32.mrb[0].mxu0
  %v288 = vadd.f32 0.0, %v287
  %v289 = vpop.f32.mrb[0].mxu0
  %290 = vmatprep.mubr.bf16.mxu0 0
  %291 = vmatmul.mubr.bf16.gmra.mrb[0].mxu0 %v166
  %v292 = vpop.f32.mrb[0].mxu0
  %v293 = vadd.f32 0.0, %v292
  %v294 = vpop.f32.mrb[0].mxu0
  %v295 = vpop.f32.mrb[0].mxu0
  %v296 = vadd.f32 0.0, %v295
  %v297 = vpop.f32.mrb[0].mxu0
  %298 = vmatprep.mubr.bf16.mxu0 0
  %299 = vmatmul.mubr.bf16.gmra.mrb[0].mxu0 %v167
  %v300 = vpop.f32.mrb[0].mxu0
  %v301 = vadd.f32 0.0, %v300
  %v302 = vpop.f32.mrb[0].mxu0
  %v303 = vpop.f32.mrb[0].mxu0
  %v304 = vadd.f32 0.0, %v303
  %v305 = vpop.f32.mrb[0].mxu0
  %306 = vmatprep.mubr.bf16.mxu0 0
  %307 = vmatmul.mubr.bf16.gmra.mrb[0].mxu0 %v168
  %v308 = vpop.f32.mrb[0].mxu0
  %v309 = vadd.f32 0.0, %v308
  %v310 = vpop.f32.mrb[0].mxu0
  %v311 = vpop.f32.mrb[0].mxu0
  %v312 = vadd.f32 0.0, %v311
  %v313 = vpop.f32.mrb[0].mxu0
  %314 = vmatprep.mubr.bf16.mxu0 0
  %315 = vmatmul.mubr.bf16.gmra.mrb[0].mxu0 %v169
  %v316 = vpop.f32.mrb[0].mxu0
  %v317 = vadd.f32 0.0, %v316
  %v318 = vpop.f32.mrb[0].mxu0
  %v319 = vpop.f32.mrb[0].mxu0
  %v320 = vadd.f32 0.0, %v319
  %v321 = vpop.f32.mrb[0].mxu0
  %322 = vdwg.mxu0
  %v323 = vadd.f32 %v98, %v261
  %v324 = vadd.f32 %v99, %v264
  %v325 = vadd.f32 %v100, %v269
  %v326 = vadd.f32 %v101, %v272
  %v327 = vadd.f32 %v102, %v277
  %v328 = vadd.f32 %v103, %v280
  %v329 = vadd.f32 %v104, %v285
  %v330 = vadd.f32 %v105, %v288
  %v331 = vadd.f32 %v106, %v293
  %v332 = vadd.f32 %v107, %v296
  %v333 = vadd.f32 %v108, %v301
  %v334 = vadd.f32 %v109, %v304
  %v335 = vadd.f32 %v110, %v309
  %v336 = vadd.f32 %v111, %v312
  %v337 = vadd.f32 %v112, %v317
  %v338 = vadd.f32 %v113, %v320
  %vm339 = vcmask 130048
  %340 = vst.msk [vmem:[#allocation2] sm:$0xff] %vm339, %v323
  %341 = vst.msk [vmem:[#allocation2 + $0x8] sm:$0xff] %vm339, %v324
  %342 = vst.msk [vmem:[#allocation2 + $0x10] sm:$0xff] %vm339, %v325
  %343 = vst.msk [vmem:[#allocation2 + $0x18] sm:$0xff] %vm339, %v326
  %344 = vst.msk [vmem:[#allocation2 + $0x20] sm:$0xff] %vm339, %v327
  %345 = vst.msk [vmem:[#allocation2 + $0x28] sm:$0xff] %vm339, %v328
  %346 = vst.msk [vmem:[#allocation2 + $0x30] sm:$0xff] %vm339, %v329
  %347 = vst.msk [vmem:[#allocation2 + $0x38] sm:$0xff] %vm339, %v330
  %348 = vst.msk [vmem:[#allocation2 + $0x40] sm:$0xff] %vm339, %v331
  %349 = vst.msk [vmem:[#allocation2 + $0x48] sm:$0xff] %vm339, %v332
  %350 = vst.msk [vmem:[#allocation2 + $0x50] sm:$0xff] %vm339, %v333
  %351 = vst.msk [vmem:[#allocation2 + $0x58] sm:$0xff] %vm339, %v334
  %352 = vst.msk [vmem:[#allocation2 + $0x60] sm:$0xff] %vm339, %v335
  %353 = vst.msk [vmem:[#allocation2 + $0x68] sm:$0xff] %vm339, %v336
  %354 = vst.msk [vmem:[#allocation2 + $0x70] sm:$0xff] %vm339, %v337
  %355 = vst.msk [vmem:[#allocation2 + $0x78] sm:$0xff] %vm339, %v338
  // Predicated region
  $region14: #{unet_block_codec_innermost.3} parent=0 // pred_check
    %p356 = pneg %p13
  $region15: #{unet_block_codec_innermost.3} parent=0 // pred_check_branch
    %358 = sbr.rel (%p356) target = $region17
  $region16: #{unet_block_codec_innermost.3} parent=0 // pred_region
    %v359 = vld [vmem:[#allocation2] sm:$0xff]
    %v360 = vld [vmem:[#allocation2 + $0x8] sm:$0xff]
    %v361 = vld [vmem:[#allocation2 + $0x10] sm:$0xff]
    %v362 = vld [vmem:[#allocation2 + $0x18] sm:$0xff]
    %v363 = vld [vmem:[#allocation2 + $0x20] sm:$0xff]
    %v364 = vld [vmem:[#allocation2 + $0x28] sm:$0xff]
    %v365 = vld [vmem:[#allocation2 + $0x30] sm:$0xff]
    %v366 = vld [vmem:[#allocation2 + $0x38] sm:$0xff]
    %v367 = vld [vmem:[#allocation2 + $0x40] sm:$0xff]
    %v368 = vld [vmem:[#allocation2 + $0x48] sm:$0xff]
    %v369 = vld [vmem:[#allocation2 + $0x50] sm:$0xff]
    %v370 = vld [vmem:[#allocation2 + $0x58] sm:$0xff]
    %v371 = vld [vmem:[#allocation2 + $0x60] sm:$0xff]
    %v372 = vld [vmem:[#allocation2 + $0x68] sm:$0xff]
    %v373 = vld [vmem:[#allocation2 + $0x70] sm:$0xff]
    %v374 = vld [vmem:[#allocation2 + $0x78] sm:$0xff]
    %v375 = vmax.f32 %v359, 0.0
    %v376 = vmax.f32 %v360, 0.0
    %v377 = vmax.f32 %v361, 0.0
    %v378 = vmax.f32 %v362, 0.0
    %v379 = vmax.f32 %v363, 0.0
    %v380 = vmax.f32 %v364, 0.0
    %v381 = vmax.f32 %v365, 0.0
    %v382 = vmax.f32 %v366, 0.0
    %v383 = vmax.f32 %v367, 0.0
    %v384 = vmax.f32 %v368, 0.0
    %v385 = vmax.f32 %v369, 0.0
    %v386 = vmax.f32 %v370, 0.0
    %v387 = vmax.f32 %v371, 0.0
    %v388 = vmax.f32 %v372, 0.0
    %v389 = vmax.f32 %v373, 0.0
    %v390 = vmax.f32 %v374, 0.0
    %v391 = vpack.c.bf16 %v376, %v375
    %v392 = vpack.c.bf16 %v378, %v377
    %v393 = vpack.c.bf16 %v380, %v379
    %v394 = vpack.c.bf16 %v382, %v381
    %v395 = vpack.c.bf16 %v384, %v383
    %v396 = vpack.c.bf16 %v386, %v385
    %v397 = vpack.c.bf16 %v388, %v387
    %v398 = vpack.c.bf16 %v390, %v389
    %v407 = vunpack.c.l.b16 %v391
    %v408 = vunpack.c.h.b16 %v391
    %v409 = vunpack.c.l.b16 %v392
    %v410 = vunpack.c.h.b16 %v392
    %v411 = vunpack.c.l.b16 %v393
    %v412 = vunpack.c.h.b16 %v393
    %v413 = vunpack.c.l.b16 %v394
    %v414 = vunpack.c.h.b16 %v394
    %v415 = vunpack.c.l.b16 %v395
    %v416 = vunpack.c.h.b16 %v395
    %v417 = vunpack.c.l.b16 %v396
    %v418 = vunpack.c.h.b16 %v396
    %v419 = vunpack.c.l.b16 %v397
    %v420 = vunpack.c.h.b16 %v397
    %v421 = vunpack.c.l.b16 %v398
    %v422 = vunpack.c.h.b16 %v398
    %v423 = vpack.c.b16 %v407, %v407
    %v424 = vpack.c.b16 %v408, %v408
    %v425 = vpack.c.b16 %v409, %v409
    %v426 = vpack.c.b16 %v410, %v410
    %v427 = vpack.c.b16 %v411, %v411
    %v428 = vpack.c.b16 %v412, %v412
    %v429 = vpack.c.b16 %v413, %v413
    %v430 = vpack.c.b16 %v414, %v414
    %v431 = vpack.c.b16 %v415, %v415
    %v432 = vpack.c.b16 %v416, %v416
    %v433 = vpack.c.b16 %v417, %v417
    %v434 = vpack.c.b16 %v418, %v418
    %v435 = vpack.c.b16 %v419, %v419
    %v436 = vpack.c.b16 %v420, %v420
    %v437 = vpack.c.b16 %v421, %v421
    %v438 = vpack.c.b16 %v422, %v422
    %vm455 = vcmask 125952
    %456 = vst.msk [vmem:[%s2] sm:$0xf] %vm455, %v423
    %457 = vst.msk [vmem:[%s2 + $0x4] sm:$0xf] %vm455, %v424
    %458 = vst.msk [vmem:[%s2 + $0x8] sm:$0xf] %vm455, %v425
    %459 = vst.msk [vmem:[%s2 + $0xc] sm:$0xf] %vm455, %v426
    %460 = vst.msk [vmem:[%s2 + $0x10] sm:$0xf] %vm455, %v427
    %461 = vst.msk [vmem:[%s2 + $0x14] sm:$0xf] %vm455, %v428
    %462 = vst.msk [vmem:[%s2 + $0x18] sm:$0xf] %vm455, %v429
    %463 = vst.msk [vmem:[%s2 + $0x1c] sm:$0xf] %vm455, %v430
    %464 = vst.msk [vmem:[%s2 + $0x20] sm:$0xf] %vm455, %v431
    %465 = vst.msk [vmem:[%s2 + $0x24] sm:$0xf] %vm455, %v432
    %466 = vst.msk [vmem:[%s2 + $0x28] sm:$0xf] %vm455, %v433
    %467 = vst.msk [vmem:[%s2 + $0x2c] sm:$0xf] %vm455, %v434
    %468 = vst.msk [vmem:[%s2 + $0x30] sm:$0xf] %vm455, %v435
    %469 = vst.msk [vmem:[%s2 + $0x34] sm:$0xf] %vm455, %v436
    %470 = vst.msk [vmem:[%s2 + $0x38] sm:$0xf] %vm455, %v437
    %471 = vst.msk [vmem:[%s2 + $0x3c] sm:$0xf] %vm455, %v438
  $region17: #{unet_block_codec_innermost.3} parent=0 // pred_fallthru
    _
  // Predicated region
  $region18: #{unet_block_codec_innermost.3} parent=0 // pred_check
    _
  $region19: #{unet_block_codec_innermost.3} parent=0 // pred_check_branch
    %473 = sbr.rel (0) target = $region21
  $region20: #{unet_block_codec_innermost.3} parent=0 // pred_region
    _
  $region21: #{unet_block_codec_innermost.3} parent=0 // pred_fallthru
    _
  // Predicated region
  $region22: #{unet_block_codec_innermost.3} parent=0 // pred_check
    _
  $region23: #{unet_block_codec_innermost.3} parent=0 // pred_check_branch
    %475 = sbr.rel (0) target = $region25
  $region24: #{unet_block_codec_innermost.3} parent=0 // pred_region
    _
  $region25: #{unet_block_codec_innermost.3} parent=0 // pred_fallthru
    _

// kernel: unet_block_codec_innermost.4
$region0: #{unet_block_codec_innermost.4}
  #allocation0 [shape = 'u32[]', space=smem, size = 0x4, offset = 0x4, fixed_abs, tag = 'smem constant byte address 0x4 - core index']
  #allocation1 [shape = 'u32[144,128]{1,0:T(1,128)}', space=vmem, size = 0x12000, scoped, tag = 'internal scratch']
  %s0 = inlined_call_operand.vmem [shape: bf16[2,82,16], index: 0, kind: input, shape index: {}]
  %s1 = inlined_call_operand.vmem [shape: bf16[144,32], index: 1, kind: input, shape index: {}]
  %s2 = inlined_call_operand.vmem [shape: bf16[64,2], index: 2, kind: input, shape index: {}]
  %s3 = inlined_call_operand.vmem [shape: bf16[2,64,32], index: 3, kind: output, shape index: {}]
  %s4 = sld [smem:[#allocation0]]
  $region45: #{unet_block_codec_innermost.4} parent=0
    _
  %s6 = ssub.s32 1, %s4
  %s7 = scalar_select 0, %s6, %s4
  loop: start=0, step=1, limit=4
  $region2: #{unet_block_codec_innermost.4} parent=0 // loop_pre_header
    _
  $region3: #{unet_block_codec_innermost.4} parent=0 // loop_header
    %s9 = sphi 0, %s13
    %p10 = scmp.ge.s32.totalorder %s9, 4
    %s16 = sphi 0, %s28
    %s17 = sphi 0, %s24
    %s18 = sphi 0, %s16
    %s19 = sphi 0, %s17
    %s20 = sphi 0, %s18
    %s21 = sphi 0, %s19
    %s31 = sphi 0, %s33
    %s34 = sphi 0, %s31
    %s35 = sphi 0, %s34
    %s51 = sphi 0, %s35
    %s57 = sphi 0, %s59
    %s60 = sphi 0, %s57
    %s61 = sphi 0, %s60
    %s77 = sphi 0, %s61
    %s81 = sphi 0, %s81
    %s83 = sphi 0, %s81
    %s84 = sphi 0, %s83
    %s98 = sphi 0, %s84
    %s106 = sphi 0, %s108
    %s109 = sphi 0, %s106
    %s110 = sphi 0, %s109
    %s126 = sphi 0, %s110
  $region4: #{unet_block_codec_innermost.4} parent=0 // loop_header_branch
    %12 = sbr.rel (%p10) target = $region8
  $region5: #{unet_block_codec_innermost.4} parent=0 // loop_body
    %s14 = ssub.s32 %s9, 1
    %s15 = ssub.s32 %s9, 2
    %s22 = sadd.s32 1, %s17
    %p23 = scmp.ge.s32.totalorder %s22, 1
    %s24 = scalar_select %p23, 0, %s22
    %s25 = sadd.s32 1, %s16
    %s26 = scalar_select %p23, %s25, %s16
    %p27 = scmp.ge.s32.totalorder %s26, 2
    %s28 = scalar_select %p27, 0, %s26
    %s29 = ssub.s32 %s16, %s28
    %p30 = scmp.eq.s32.totalorder %s29, 0
    %s32 = sadd.s32 %s31, 1
    %s33 = scalar_select %p30, %s31, %s32
    %p36 = pneg %p30
    %p37 = scmp.eq.s32.totalorder %s9, 1
    %p38 = por %p36, %p37
    %p39 = scmp.ne.s32.totalorder %s31, %s34
    %p40 = scmp.eq.s32.totalorder %s9, 0
    %p41 = por %p39, %p40
    %p42 = scmp.ne.s32.totalorder %s31, %s34
    %p43 = scmp.eq.s32.totalorder %s14, 1
    %p44 = por %p42, %p43
    %p45 = scmp.ne.s32.totalorder %s34, %s35
    %p46 = scmp.eq.s32.totalorder %s14, 0
    %p47 = por %p45, %p46
    %p48 = scmp.ne.s32.totalorder %s34, %s35
    %p49 = scmp.eq.s32.totalorder %s15, 1
    %p50 = por %p48, %p49
    %p52 = scmp.ne.s32.totalorder %s35, %s51
    %p53 = scmp.eq.s32.totalorder %s15, 0
    %p54 = por %p52, %p53
    %s55 = ssub.s32 %s17, %s24
    %p56 = scmp.eq.s32.totalorder %s55, 0
    %s58 = sadd.s32 %s57, 1
    %s59 = scalar_select %p56, %s57, %s58
    %p62 = pneg %p56
    %p63 = scmp.eq.s32.totalorder %s9, 1
    %p64 = por %p62, %p63
    %p65 = scmp.ne.s32.totalorder %s57, %s60
    %p66 = scmp.eq.s32.totalorder %s9, 0
    %p67 = por %p65, %p66
    %p68 = scmp.ne.s32.totalorder %s57, %s60
    %p69 = scmp.eq.s32.totalorder %s14, 1
    %p70 = por %p68, %p69
    %p71 = scmp.ne.s32.totalorder %s60, %s61
    %p72 = scmp.eq.s32.totalorder %s14, 0
    %p73 = por %p71, %p72
    %p74 = scmp.ne.s32.totalorder %s60, %s61
    %p75 = scmp.eq.s32.totalorder %s15, 1
    %p76 = por %p74, %p75
    %p78 = scmp.ne.s32.totalorder %s61, %s77
    %p79 = scmp.eq.s32.totalorder %s15, 0
    %p80 = por %p78, %p79
    %s82 = sadd.s32 %s81, 1
    %p85 = scmp.eq.s32.totalorder %s9, 1
    %p86 = scmp.ne.s32.totalorder %s81, %s83
    %p87 = scmp.eq.s32.totalorder %s9, 0
    %p88 = por %p86, %p87
    %p89 = scmp.ne.s32.totalorder %s81, %s83
    %p90 = scmp.eq.s32.totalorder %s14, 1
    %p91 = por %p89, %p90
    %p92 = scmp.ne.s32.totalorder %s83, %s84
    %p93 = scmp.eq.s32.totalorder %s14, 0
    %p94 = por %p92, %p93
    %p95 = scmp.ne.s32.totalorder %s83, %s84
    %p96 = scmp.eq.s32.totalorder %s15, 1
    %p97 = por %p95, %p96
    %p99 = scmp.ne.s32.totalorder %s84, %s98
    %p100 = scmp.eq.s32.totalorder %s15, 0
    %p101 = por %p99, %p100
    %s102 = ssub.s32 %s16, %s28
    %s103 = ssub.s32 %s17, %s24
    %s104 = sor.u32 %s102, %s103
    %p105 = scmp.eq.s32.totalorder %s104, 0
    %s107 = sadd.s32 %s106, 1
    %s108 = scalar_select %p105, %s106, %s107
    %p111 = pneg %p105
    %p112 = scmp.eq.s32.totalorder %s9, 1
    %p113 = por %p111, %p112
    %p114 = scmp.ne.s32.totalorder %s106, %s109
    %p115 = scmp.eq.s32.totalorder %s9, 0
    %p116 = por %p114, %p115
    %p117 = scmp.ne.s32.totalorder %s106, %s109
    %p118 = scmp.eq.s32.totalorder %s14, 1
    %p119 = por %p117, %p118
    %p120 = scmp.ne.s32.totalorder %s109, %s110
    %p121 = scmp.eq.s32.totalorder %s14, 0
    %p122 = por %p120, %p121
    %p123 = scmp.ne.s32.totalorder %s109, %s110
    %p124 = scmp.eq.s32.totalorder %s15, 1
    %p125 = por %p123, %p124
    %p127 = scmp.ne.s32.totalorder %s110, %s126
    %p128 = scmp.eq.s32.totalorder %s15, 0
    %p129 = por %p127, %p128
    %p130 = scmp.le.s32.totalorder 1, %s9
    %p131 = scmp.lt.s32.totalorder %s9, 3
    %p132 = pnand %p130, %p131
    %p133 = pneg %p132
    // Predicated region
    $region9: #{unet_block_codec_innermost.4} parent=5 // pred_check
      _
    $region10: #{unet_block_codec_innermost.4} parent=5 // pred_check_branch
      %135 = sbr.rel (%p132) target = $region12
    $region11: #{unet_block_codec_innermost.4} parent=5 // pred_region
      %s136 = ssub.s32 %s9, 1
      // Predicated region
      $region13: #{unet_block_codec_innermost.4} parent=11 // pred_check
        %p137 = pneg %p73
      $region14: #{unet_block_codec_innermost.4} parent=11 // pred_check_branch
        %139 = sbr.rel (%p137) target = $region16
      $region15: #{unet_block_codec_innermost.4} parent=11 // pred_region
        %p140 = scmp.lt.s32.totalorder %s19, 0
        %s141 = scalar_select %p140, %s19, 0
        %s142 = smul.addr %s141, 4
        %s143 = scalar_lea.vmem %s1, %s142
      $region16: #{unet_block_codec_innermost.4} parent=11 // pred_fallthru
        _
      // Predicated region
      $region17: #{unet_block_codec_innermost.4} parent=11 // pred_check
        %p144 = pneg %p94
      $region18: #{unet_block_codec_innermost.4} parent=11 // pred_check_branch
        %146 = sbr.rel (%p144) target = $region20
      $region19: #{unet_block_codec_innermost.4} parent=11 // pred_region
        _
      $region20: #{unet_block_codec_innermost.4} parent=11 // pred_fallthru
        _
    $region12: #{unet_block_codec_innermost.4} parent=5 // pred_fallthru
      _
    %p147 = scmp.lt.s32.totalorder %s9, 2
    // Predicated region
    $region21: #{unet_block_codec_innermost.4} parent=5 // pred_check
      %p148 = pneg %p147
    $region22: #{unet_block_codec_innermost.4} parent=5 // pred_check_branch
      %150 = sbr.rel (%p148) target = $region24
    $region23: #{unet_block_codec_innermost.4} parent=5 // pred_region
      // Predicated region
      $region25: #{unet_block_codec_innermost.4} parent=23 // pred_check
        %p151 = pneg %p41
      $region26: #{unet_block_codec_innermost.4} parent=23 // pred_check_branch
        %153 = sbr.rel (%p151) target = $region28
      $region27: #{unet_block_codec_innermost.4} parent=23 // pred_region
        %p154 = scmp.lt.s32.totalorder %s16, 1
        %s155 = scalar_select %p154, %s16, 1
        %s156 = smul.addr %s155, 11
        %s157 = smul.addr %s156, 4
        %s158 = scalar_lea.vmem %s0, %s157
      $region28: #{unet_block_codec_innermost.4} parent=23 // pred_fallthru
        _
    $region24: #{unet_block_codec_innermost.4} parent=5 // pred_fallthru
      _
    %p159 = scmp.le.s32.totalorder 1, %s9
    %p160 = scmp.lt.s32.totalorder %s9, 3
    %p161 = pnand %p159, %p160
    %p162 = pneg %p161
    // Predicated region
    $region29: #{unet_block_codec_innermost.4} parent=5 // pred_check
      _
    $region30: #{unet_block_codec_innermost.4} parent=5 // pred_check_branch
      %164 = sbr.rel (%p161) target = $region32
    $region31: #{unet_block_codec_innermost.4} parent=5 // pred_region
      %s165 = ssub.s32 %s9, 1
      %p166 = scmp.lt.s32.totalorder %s18, 1
      %s167 = scalar_select %p166, %s18, 1
      %s168 = smul.addr %s167, 11
      %s169 = smul.addr %s168, 4
      %s170 = scalar_lea.vmem %s0, %s169
      %p171 = pneg %p47
      %p172 = pneg %p44
      %p173 = scmp.lt.s32.totalorder %s19, 0
      %s174 = scalar_select %p173, %s19, 0
      %s175 = smul.addr %s174, 4
      %s176 = scalar_lea.vmem %s1, %s175
      %p177 = pneg %p73
      %p178 = pneg %p70
      %p179 = pneg %p94
      %p180 = pneg %p91
      %p181 = pneg %p122
      %p182 = pneg %p119
      %p183 = scmp.lt.s32.totalorder %s18, 1
      %s184 = scalar_select %p183, %s18, 1
      %p185 = scmp.lt.s32.totalorder %s19, 0
      %s186 = scalar_select %p185, %s19, 0
      %s187 = smul.addr %s184, 8
      %s188 = sadd.s32 %s186, %s187
      %s189 = smul.addr %s188, 4
      %s190 = scalar_lea.vmem %s3, %s189
      %p191 = scmp.lt.s32.totalorder %s18, 1
      %s192 = scalar_select %p191, %s18, 1
      %s193 = smul.addr %s192, 11
      %s194 = smul.addr %s193, 4
      %s195 = scalar_lea.vmem %s0, %s194
      %p196 = scmp.lt.s32.totalorder %s19, 0
      %s197 = scalar_select %p196, %s19, 0
      %s198 = smul.addr %s197, 4
      %s199 = scalar_lea.vmem %s1, %s198
      %p200 = scmp.lt.s32.totalorder %s18, 1
      %s201 = scalar_select %p200, %s18, 1
      %p202 = scmp.lt.s32.totalorder %s19, 0
      %s203 = scalar_select %p202, %s19, 0
      %s204 = smul.addr %s201, 8
      %s205 = sadd.s32 %s203, %s204
      %s206 = smul.addr %s205, 4
      %s207 = scalar_lea.vmem %s3, %s206
      %v209 = vld [vmem:[%s2] sm:$0xf]
      %v210 = vld [vmem:[%s2 + $0x4] sm:$0xf]
      %v211 = vld [vmem:[%s2 + $0x8] sm:$0xf]
      %v212 = vld [vmem:[%s2 + $0xc] sm:$0xf]
      %v213 = vld [vmem:[%s2 + $0x10] sm:$0xf]
      %v214 = vld [vmem:[%s2 + $0x14] sm:$0xf]
      %v215 = vld [vmem:[%s2 + $0x18] sm:$0xf]
      %v216 = vld [vmem:[%s2 + $0x1c] sm:$0xf]
      %v217 = vld [vmem:[%s195] sm:$0xf]
      %v218 = vld [vmem:[%s195 + $0x4] sm:$0xf]
      %v219 = vld [vmem:[%s195 + $0x8] sm:$0xf]
      %v220 = vld [vmem:[%s195 + $0xc] sm:$0xf]
      %v221 = vld [vmem:[%s195 + $0x10] sm:$0xf]
      %v222 = vld [vmem:[%s195 + $0x14] sm:$0xf]
      %v223 = vld [vmem:[%s195 + $0x18] sm:$0xf]
      %v224 = vld [vmem:[%s195 + $0x1c] sm:$0xf]
      %226 = vset.pattern.permute.xlu0 0
      %227 = vperm.xlu0 %226, %v209
      %v228 = vpop.permute.xlu0 %227
      %v231 = vunpack.c.l.s4 839922192
      %v232 = vunpack.c.0.s8 %v231
      %v233 = vlaneseq
      %v234 = vshrl.u32 %v233, 7
      %v235 = vsub.s32 %v232, %v234
      %v236 = vrot.slane %v228, %v235
      %238 = vset.pattern.permute.xlu0 0
      %239 = vperm.xlu0 %238, %v210
      %v240 = vpop.permute.xlu0 %239
      %v243 = vunpack.c.l.s4 839922192
      %v244 = vunpack.c.0.s8 %v243
      %v245 = vlaneseq
      %v246 = vshrl.u32 %v245, 7
      %v247 = vsub.s32 %v244, %v246
      %v248 = vrot.slane %v240, %v247
      %250 = vset.pattern.permute.xlu0 0
      %251 = vperm.xlu0 %250, %v211
      %v252 = vpop.permute.xlu0 %251
      %v255 = vunpack.c.l.s4 839922192
      %v256 = vunpack.c.0.s8 %v255
      %v257 = vlaneseq
      %v258 = vshrl.u32 %v257, 7
      %v259 = vsub.s32 %v256, %v258
      %v260 = vrot.slane %v252, %v259
      %262 = vset.pattern.permute.xlu0 0
      %263 = vperm.xlu0 %262, %v212
      %v264 = vpop.permute.xlu0 %263
      %v267 = vunpack.c.l.s4 839922192
      %v268 = vunpack.c.0.s8 %v267
      %v269 = vlaneseq
      %v270 = vshrl.u32 %v269, 7
      %v271 = vsub.s32 %v268, %v270
      %v272 = vrot.slane %v264, %v271
      %274 = vset.pattern.permute.xlu0 0
      %275 = vperm.xlu0 %274, %v213
      %v276 = vpop.permute.xlu0 %275
      %v279 = vunpack.c.l.s4 839922192
      %v280 = vunpack.c.0.s8 %v279
      %v281 = vlaneseq
      %v282 = vshrl.u32 %v281, 7
      %v283 = vsub.s32 %v280, %v282
      %v284 = vrot.slane %v276, %v283
      %286 = vset.pattern.permute.xlu0 0
      %287 = vperm.xlu0 %286, %v214
      %v288 = vpop.permute.xlu0 %287
      %v291 = vunpack.c.l.s4 839922192
      %v292 = vunpack.c.0.s8 %v291
      %v293 = vlaneseq
      %v294 = vshrl.u32 %v293, 7
      %v295 = vsub.s32 %v292, %v294
      %v296 = vrot.slane %v288, %v295
      %298 = vset.pattern.permute.xlu0 0
      %299 = vperm.xlu0 %298, %v215
      %v300 = vpop.permute.xlu0 %299
      %v303 = vunpack.c.l.s4 839922192
      %v304 = vunpack.c.0.s8 %v303
      %v305 = vlaneseq
      %v306 = vshrl.u32 %v305, 7
      %v307 = vsub.s32 %v304, %v306
      %v308 = vrot.slane %v300, %v307
      %310 = vset.pattern.permute.xlu0 0
      %311 = vperm.xlu0 %310, %v216
      %v312 = vpop.permute.xlu0 %311
      %v315 = vunpack.c.l.s4 839922192
      %v316 = vunpack.c.0.s8 %v315
      %v317 = vlaneseq
      %v318 = vshrl.u32 %v317, 7
      %v319 = vsub.s32 %v316, %v318
      %v320 = vrot.slane %v312, %v319
      %v321 = vmul.bf16 %v217, %v236
      %v322 = vmul.bf16 %v218, %v248
      %v323 = vmul.bf16 %v219, %v260
      %v324 = vmul.bf16 %v220, %v272
      %v325 = vmul.bf16 %v221, %v284
      %v326 = vmul.bf16 %v222, %v296
      %v327 = vmul.bf16 %v223, %v308
      %v328 = vmul.bf16 %v224, %v320
      %v329 = vld [vmem:[%s199] sm:$0xf]
      %v330 = vld [vmem:[%s199 + $0x4] sm:$0xf]
      %v331 = vld [vmem:[%s195] sm:$0xf]
      %v332 = vld [vmem:[%s195 + $0x4] sm:$0xf]
      %v333 = vld [vmem:[%s195 + $0x8] sm:$0xf]
      %v334 = vld [vmem:[%s195 + $0xc] sm:$0xf]
      %v335 = vld [vmem:[%s195 + $0x10] sm:$0xf]
      %v336 = vld [vmem:[%s195 + $0x14] sm:$0xf]
      %v337 = vld [vmem:[%s195 + $0x18] sm:$0xf]
      %v338 = vld [vmem:[%s195 + $0x1c] sm:$0xf]
      %v339 = vld [vmem:[%s195 + $0x20] sm:$0x1]
      %v340 = vld [vmem:[%s199 + $0x8] sm:$0xf]
      %v341 = vld [vmem:[%s199 + $0xc] sm:$0xf]
      %v351 = vunpack.c.l.b16 %v331
      %v352 = vunpack.c.l.b16 %v332
      %v353 = vunpack.c.l.b16 %v333
      %v354 = vunpack.c.l.b16 %v334
      %v355 = vunpack.c.l.b16 %v335
      %v356 = vunpack.c.l.b16 %v336
      %v357 = vunpack.c.l.b16 %v337
      %v358 = vunpack.c.l.b16 %v338
      %v359 = vunpack.c.l.b16 %v339
      %v360 = vpack.c.b16 %v352, %v351
      %v361 = vpack.c.b16 %v354, %v353
      %v362 = vpack.c.b16 %v356, %v355
      %v363 = vpack.c.b16 %v358, %v357
      %v364 = vpack.c.b16 %v359, %v359
      %vm365 = vsmask.f32 7424
      %v367 = vshrl.u32 %v360, 16
      %v369 = vshll.u32 %v360, 16
      %v371 = vrot.slane %v369, 1
      %v372 = vor.u32 %v367, %v371
      %v374 = vshll.u32 %v361, 16
      %v376 = vrot.slane %v374, 1
      %v377 = vsel %vm365, %v372, %v376
      %v378 = vshrl.u32 %v361, 16
      %v380 = vor.u32 %v378, %v376
      %v382 = vshll.u32 %v362, 16
      %v384 = vrot.slane %v382, 1
      %v385 = vsel %vm365, %v380, %v384
      %v386 = vshrl.u32 %v362, 16
      %v388 = vor.u32 %v386, %v384
      %v390 = vshll.u32 %v363, 16
      %v392 = vrot.slane %v390, 1
      %v393 = vsel %vm365, %v388, %v392
      %v394 = vshrl.u32 %v363, 16
      %v396 = vor.u32 %v394, %v392
      %v398 = vshll.u32 %v364, 16
      %v400 = vrot.slane %v398, 1
      %v401 = vsel %vm365, %v396, %v400
      %v404 = vunpack.c.l.b16 %v340
      %v405 = vunpack.c.l.b16 %v341
      %v406 = vpack.c.b16 %v405, %v404
      %vm408 = vcmask 130048
      %v410 = vsel %vm408, %v377, 0
      %v413 = vsel %vm408, %v385, 0
      %v416 = vsel %vm408, %v393, 0
      %v419 = vsel %vm408, %v401, 0
      %421 = vmatprep.subr.bf16.mxu0 0
      %422 = vmatpush1.bf16.msra.mxu0 %v406
      %423 = vmatprep.subr.bf16.mxu0 0
      %424 = vmatpush1.bf16.msra.mxu0 0
      %425 = vmatprep.subr.bf16.mxu0 0
      %426 = vmatpush1.bf16.msra.mxu0 0
      %427 = vmatprep.subr.bf16.mxu0 0
      %428 = vmatpush1.bf16.msra.mxu0 0
      %429 = vmatprep.subr.bf16.mxu0 0
      %430 = vmatpush1.bf16.msra.mxu0 0
      %431 = vmatprep.subr.bf16.mxu0 0
      %432 = vmatpush1.bf16.msra.mxu0 0
      %433 = vmatprep.subr.bf16.mxu0 0
      %434 = vmatpush1.bf16.msra.mxu0 0
      %435 = vmatprep.subr.bf16.mxu0 0
      %436 = vmatpush1.bf16.msra.mxu0 0
      %437 = vmatprep.subr.bf16.mxu0 0
      %438 = vmatpush1.bf16.msra.mxu0 0
      %439 = vmatprep.subr.bf16.mxu0 0
      %440 = vmatpush1.bf16.msra.mxu0 0
      %441 = vmatprep.subr.bf16.mxu0 0
      %442 = vmatpush1.bf16.msra.mxu0 0
      %443 = vmatprep.subr.bf16.mxu0 0
      %444 = vmatpush1.bf16.msra.mxu0 0
      %445 = vmatprep.subr.bf16.mxu0 0
      %446 = vmatpush1.bf16.msra.mxu0 0
      %447 = vmatprep.subr.bf16.mxu0 0
      %448 = vmatpush1.bf16.msra.mxu0 0
      %449 = vmatprep.subr.bf16.mxu0 0
      %450 = vmatpush1.bf16.msra.mxu0 0
      %451 = vmatprep.subr.bf16.mxu0 0
      %452 = vmatpush1.bf16.msra.mxu0 0
      %453 = vmatprep.mubr.bf16.mxu0 0
      %454 = vmatmul.mubr.bf16.gmra.mrb[0].mxu0 %v410
      %v455 = vpop.f32.mrb[0].mxu0
      %v456 = vadd.f32 0.0, %v455
      %v457 = vpop.f32.mrb[0].mxu0
      %v458 = vpop.f32.mrb[0].mxu0
      %v459 = vadd.f32 0.0, %v458
      %v460 = vpop.f32.mrb[0].mxu0
      %461 = vmatprep.mubr.bf16.mxu0 0
      %462 = vmatmul.mubr.bf16.gmra.mrb[0].mxu0 %v413
      %v463 = vpop.f32.mrb[0].mxu0
      %v464 = vadd.f32 0.0, %v463
      %v465 = vpop.f32.mrb[0].mxu0
      %v466 = vpop.f32.mrb[0].mxu0
      %v467 = vadd.f32 0.0, %v466
      %v468 = vpop.f32.mrb[0].mxu0
      %469 = vmatprep.mubr.bf16.mxu0 0
      %470 = vmatmul.mubr.bf16.gmra.mrb[0].mxu0 %v416
      %v471 = vpop.f32.mrb[0].mxu0
      %v472 = vadd.f32 0.0, %v471
      %v473 = vpop.f32.mrb[0].mxu0
      %v474 = vpop.f32.mrb[0].mxu0
      %v475 = vadd.f32 0.0, %v474
      %v476 = vpop.f32.mrb[0].mxu0
      %477 = vmatprep.mubr.bf16.mxu0 0
      %478 = vmatmul.mubr.bf16.gmra.mrb[0].mxu0 %v419
      %v479 = vpop.f32.mrb[0].mxu0
      %v480 = vadd.f32 0.0, %v479
      %v481 = vpop.f32.mrb[0].mxu0
      %v482 = vpop.f32.mrb[0].mxu0
      %v483 = vadd.f32 0.0, %v482
      %v484 = vpop.f32.mrb[0].mxu0
      %485 = vdwg.mxu0
      %v494 = vunpack.c.l.b16 %v321
      %v495 = vunpack.c.l.b16 %v322
      %v496 = vunpack.c.l.b16 %v323
      %v497 = vunpack.c.l.b16 %v324
      %v498 = vunpack.c.l.b16 %v325
      %v499 = vunpack.c.l.b16 %v326
      %v500 = vunpack.c.l.b16 %v327
      %v501 = vunpack.c.l.b16 %v328
      %v502 = vpack.c.b16 %v495, %v494
      %v503 = vpack.c.b16 %v497, %v496
      %v504 = vpack.c.b16 %v499, %v498
      %v505 = vpack.c.b16 %v501, %v500
      %v508 = vunpack.c.l.b16 %v329
      %v509 = vunpack.c.l.b16 %v330
      %v510 = vpack.c.b16 %v509, %v508
      %v513 = vsel %vm408, %v502, 0
      %v516 = vsel %vm408, %v503, 0
      %v519 = vsel %vm408, %v504, 0
      %v522 = vsel %vm408, %v505, 0
      %524 = vmatprep.subr.bf16.mxu0 0
      %525 = vmatpush1.bf16.msra.mxu0 %v510
      %526 = vmatprep.subr.bf16.mxu0 0
      %527 = vmatpush1.bf16.msra.mxu0 0
      %528 = vmatprep.subr.bf16.mxu0 0
      %529 = vmatpush1.bf16.msra.mxu0 0
      %530 = vmatprep.subr.bf16.mxu0 0
      %531 = vmatpush1.bf16.msra.mxu0 0
      %532 = vmatprep.subr.bf16.mxu0 0
      %533 = vmatpush1.bf16.msra.mxu0 0
      %534 = vmatprep.subr.bf16.mxu0 0
      %535 = vmatpush1.bf16.msra.mxu0 0
      %536 = vmatprep.subr.bf16.mxu0 0
      %537 = vmatpush1.bf16.msra.mxu0 0
      %538 = vmatprep.subr.bf16.mxu0 0
      %539 = vmatpush1.bf16.msra.mxu0 0
      %540 = vmatprep.subr.bf16.mxu0 0
      %541 = vmatpush1.bf16.msra.mxu0 0
      %542 = vmatprep.subr.bf16.mxu0 0
      %543 = vmatpush1.bf16.msra.mxu0 0
      %544 = vmatprep.subr.bf16.mxu0 0
      %545 = vmatpush1.bf16.msra.mxu0 0
      %546 = vmatprep.subr.bf16.mxu0 0
      %547 = vmatpush1.bf16.msra.mxu0 0
      %548 = vmatprep.subr.bf16.mxu0 0
      %549 = vmatpush1.bf16.msra.mxu0 0
      %550 = vmatprep.subr.bf16.mxu0 0
      %551 = vmatpush1.bf16.msra.mxu0 0
      %552 = vmatprep.subr.bf16.mxu0 0
      %553 = vmatpush1.bf16.msra.mxu0 0
      %554 = vmatprep.subr.bf16.mxu0 0
      %555 = vmatpush1.bf16.msra.mxu0 0
      %556 = vmatprep.mubr.bf16.mxu0 0
      %557 = vmatmul.mubr.bf16.gmra.mrb[0].mxu0 %v513
      %v558 = vpop.f32.mrb[0].mxu0
      %v559 = vadd.f32 %v456, %v558
      %v560 = vpop.f32.mrb[0].mxu0
      %v561 = vpop.f32.mrb[0].mxu0
      %v562 = vadd.f32 %v459, %v561
      %v563 = vpop.f32.mrb[0].mxu0
      %564 = vmatprep.mubr.bf16.mxu0 0
      %565 = vmatmul.mubr.bf16.gmra.mrb[0].mxu0 %v516
      %v566 = vpop.f32.mrb[0].mxu0
      %v567 = vadd.f32 %v464, %v566
      %v568 = vpop.f32.mrb[0].mxu0
      %v569 = vpop.f32.mrb[0].mxu0
      %v570 = vadd.f32 %v467, %v569
      %v571 = vpop.f32.mrb[0].mxu0
      %572 = vmatprep.mubr.bf16.mxu0 0
      %573 = vmatmul.mubr.bf16.gmra.mrb[0].mxu0 %v519
      %v574 = vpop.f32.mrb[0].mxu0
      %v575 = vadd.f32 %v472, %v574
      %v576 = vpop.f32.mrb[0].mxu0
      %v577 = vpop.f32.mrb[0].mxu0
      %v578 = vadd.f32 %v475, %v577
      %v579 = vpop.f32.mrb[0].mxu0
      %580 = vmatprep.mubr.bf16.mxu0 0
      %581 = vmatmul.mubr.bf16.gmra.mrb[0].mxu0 %v522
      %v582 = vpop.f32.mrb[0].mxu0
      %v583 = vadd.f32 %v480, %v582
      %v584 = vpop.f32.mrb[0].mxu0
      %v585 = vpop.f32.mrb[0].mxu0
      %v586 = vadd.f32 %v483, %v585
      %v587 = vpop.f32.mrb[0].mxu0
      %588 = vdwg.mxu0
      %v589 = vld [vmem:[%s195] sm:$0xe]
      %590 = vset.pattern.permute.xlu0 1
      %591 = vperm.xlu0 %590, %v209
      %v592 = vpop.permute.xlu0 %591
      %v595 = vunpack.c.l.s4 839922192
      %v596 = vunpack.c.0.s8 %v595
      %v597 = vlaneseq
      %v598 = vshrl.u32 %v597, 7
      %v599 = vsub.s32 %v596, %v598
      %v600 = vrot.slane %v592, %v599
      %601 = vset.pattern.permute.xlu0 1
      %602 = vperm.xlu0 %601, %v210
      %v603 = vpop.permute.xlu0 %602
      %v606 = vunpack.c.l.s4 839922192
      %v607 = vunpack.c.0.s8 %v606
      %v608 = vlaneseq
      %v609 = vshrl.u32 %v608, 7
      %v610 = vsub.s32 %v607, %v609
      %v611 = vrot.slane %v603, %v610
      %612 = vset.pattern.permute.xlu0 1
      %613 = vperm.xlu0 %612, %v211
      %v614 = vpop.permute.xlu0 %613
      %v617 = vunpack.c.l.s4 839922192
      %v618 = vunpack.c.0.s8 %v617
      %v619 = vlaneseq
      %v620 = vshrl.u32 %v619, 7
      %v621 = vsub.s32 %v618, %v620
      %v622 = vrot.slane %v614, %v621
      %623 = vset.pattern.permute.xlu0 1
      %624 = vperm.xlu0 %623, %v212
      %v625 = vpop.permute.xlu0 %624
      %v628 = vunpack.c.l.s4 839922192
      %v629 = vunpack.c.0.s8 %v628
      %v630 = vlaneseq
      %v631 = vshrl.u32 %v630, 7
      %v632 = vsub.s32 %v629, %v631
      %v633 = vrot.slane %v625, %v632
      %634 = vset.pattern.permute.xlu0 1
      %635 = vperm.xlu0 %634, %v213
      %v636 = vpop.permute.xlu0 %635
      %v639 = vunpack.c.l.s4 839922192
      %v640 = vunpack.c.0.s8 %v639
      %v641 = vlaneseq
      %v642 = vshrl.u32 %v641, 7
      %v643 = vsub.s32 %v640, %v642
      %v644 = vrot.slane %v636, %v643
      %645 = vset.pattern.permute.xlu0 1
      %646 = vperm.xlu0 %645, %v214
      %v647 = vpop.permute.xlu0 %646
      %v650 = vunpack.c.l.s4 839922192
      %v651 = vunpack.c.0.s8 %v650
      %v652 = vlaneseq
      %v653 = vshrl.u32 %v652, 7
      %v654 = vsub.s32 %v651, %v653
      %v655 = vrot.slane %v647, %v654
      %656 = vset.pattern.permute.xlu0 1
      %657 = vperm.xlu0 %656, %v215
      %v658 = vpop.permute.xlu0 %657
      %v661 = vunpack.c.l.s4 839922192
      %v662 = vunpack.c.0.s8 %v661
      %v663 = vlaneseq
      %v664 = vshrl.u32 %v663, 7
      %v665 = vsub.s32 %v662, %v664
      %v666 = vrot.slane %v658, %v665
      %667 = vset.pattern.permute.xlu0 1
      %668 = vperm.xlu0 %667, %v216
      %v669 = vpop.permute.xlu0 %668
      %v672 = vunpack.c.l.s4 839922192
      %v673 = vunpack.c.0.s8 %v672
      %v674 = vlaneseq
      %v675 = vshrl.u32 %v674, 7
      %v676 = vsub.s32 %v673, %v675
      %v677 = vrot.slane %v669, %v676
      %vm686 = vcmask 1040384
      %vm687 = vcmask 1044484
      %vm688 = vmor %vm686, %vm687
      %v689 = vrot.slane %v600, 7
      %v690 = vrot.slane %v689, 4
      %v691 = vrot.slane %v611, 7
      %v692 = vsel %vm688, %v690, %v691
      %v693 = vrot.slane %v691, 4
      %v694 = vrot.slane %v622, 7
      %v695 = vsel %vm688, %v693, %v694
      %v696 = vrot.slane %v694, 4
      %v697 = vrot.slane %v633, 7
      %v698 = vsel %vm688, %v696, %v697
      %v699 = vrot.slane %v697, 4
      %v700 = vrot.slane %v644, 7
      %v701 = vsel %vm688, %v699, %v700
      %v702 = vrot.slane %v700, 4
      %v703 = vrot.slane %v655, 7
      %v704 = vsel %vm688, %v702, %v703
      %v705 = vrot.slane %v703, 4
      %v706 = vrot.slane %v666, 7
      %v707 = vsel %vm688, %v705, %v706
      %v708 = vrot.slane %v706, 4
      %v709 = vrot.slane %v677, 7
      %v710 = vsel %vm688, %v708, %v709
      %v711 = vrot.slane %v709, 4
      %v721 = vmul.bf16 %v589, %v689
      %v722 = vmul.bf16 %v332, %v692
      %v723 = vmul.bf16 %v333, %v695
      %v724 = vmul.bf16 %v334, %v698
      %v725 = vmul.bf16 %v335, %v701
      %v726 = vmul.bf16 %v336, %v704
      %v727 = vmul.bf16 %v337, %v707
      %v728 = vmul.bf16 %v338, %v710
      %v729 = vmul.bf16 %v339, %v711
      %v730 = vld [vmem:[%s199 + $0x10] sm:$0xf]
      %v731 = vld [vmem:[%s199 + $0x14] sm:$0xf]
      %v741 = vunpack.c.l.b16 %v721
      %v742 = vunpack.c.l.b16 %v722
      %v743 = vunpack.c.l.b16 %v723
      %v744 = vunpack.c.l.b16 %v724
      %v745 = vunpack.c.l.b16 %v725
      %v746 = vunpack.c.l.b16 %v726
      %v747 = vunpack.c.l.b16 %v727
      %v748 = vunpack.c.l.b16 %v728
      %v749 = vunpack.c.l.b16 %v729
      %v750 = vpack.c.b16 %v742, %v741
      %v751 = vpack.c.b16 %v744, %v743
      %v752 = vpack.c.b16 %v746, %v745
      %v753 = vpack.c.b16 %v748, %v747
      %v754 = vpack.c.b16 %v749, %v749
      %vm755 = vcmask 1046528
      %v756 = vrot.slane %v750, 1
      %v757 = vrot.slane %v751, 1
      %v758 = vsel %vm755, %v756, %v757
      %v759 = vrot.slane %v752, 1
      %v760 = vsel %vm755, %v757, %v759
      %v761 = vrot.slane %v753, 1
      %v762 = vsel %vm755, %v759, %v761
      %v763 = vrot.slane %v754, 1
      %v764 = vsel %vm755, %v761, %v763
      %v767 = vunpack.c.l.b16 %v730
      %v768 = vunpack.c.l.b16 %v731
      %v769 = vpack.c.b16 %v768, %v767
      %v772 = vsel %vm408, %v758, 0
      %v775 = vsel %vm408, %v760, 0
      %v778 = vsel %vm408, %v762, 0
      %v781 = vsel %vm408, %v764, 0
      %783 = vmatprep.subr.bf16.mxu0 0
      %784 = vmatpush1.bf16.msra.mxu0 %v769
      %785 = vmatprep.subr.bf16.mxu0 0
      %786 = vmatpush1.bf16.msra.mxu0 0
      %787 = vmatprep.subr.bf16.mxu0 0
      %788 = vmatpush1.bf16.msra.mxu0 0
      %789 = vmatprep.subr.bf16.mxu0 0
      %790 = vmatpush1.bf16.msra.mxu0 0
      %791 = vmatprep.subr.bf16.mxu0 0
      %792 = vmatpush1.bf16.msra.mxu0 0
      %793 = vmatprep.subr.bf16.mxu0 0
      %794 = vmatpush1.bf16.msra.mxu0 0
      %795 = vmatprep.subr.bf16.mxu0 0
      %796 = vmatpush1.bf16.msra.mxu0 0
      %797 = vmatprep.subr.bf16.mxu0 0
      %798 = vmatpush1.bf16.msra.mxu0 0
      %799 = vmatprep.subr.bf16.mxu0 0
      %800 = vmatpush1.bf16.msra.mxu0 0
      %801 = vmatprep.subr.bf16.mxu0 0
      %802 = vmatpush1.bf16.msra.mxu0 0
      %803 = vmatprep.subr.bf16.mxu0 0
      %804 = vmatpush1.bf16.msra.mxu0 0
      %805 = vmatprep.subr.bf16.mxu0 0
      %806 = vmatpush1.bf16.msra.mxu0 0
      %807 = vmatprep.subr.bf16.mxu0 0
      %808 = vmatpush1.bf16.msra.mxu0 0
      %809 = vmatprep.subr.bf16.mxu0 0
      %810 = vmatpush1.bf16.msra.mxu0 0
      %811 = vmatprep.subr.bf16.mxu0 0
      %812 = vmatpush1.bf16.msra.mxu0 0
      %813 = vmatprep.subr.bf16.mxu0 0
      %814 = vmatpush1.bf16.msra.mxu0 0
      %815 = vmatprep.mubr.bf16.mxu0 0
      %816 = vmatmul.mubr.bf16.gmra.mrb[0].mxu0 %v772
      %v817 = vpop.f32.mrb[0].mxu0
      %v818 = vadd.f32 0.0, %v817
      %v819 = vpop.f32.mrb[0].mxu0
      %v820 = vpop.f32.mrb[0].mxu0
      %v821 = vadd.f32 0.0, %v820
      %v822 = vpop.f32.mrb[0].mxu0
      %823 = vmatprep.mubr.bf16.mxu0 0
      %824 = vmatmul.mubr.bf16.gmra.mrb[0].mxu0 %v775
      %v825 = vpop.f32.mrb[0].mxu0
      %v826 = vadd.f32 0.0, %v825
      %v827 = vpop.f32.mrb[0].mxu0
      %v828 = vpop.f32.mrb[0].mxu0
      %v829 = vadd.f32 0.0, %v828
      %v830 = vpop.f32.mrb[0].mxu0
      %831 = vmatprep.mubr.bf16.mxu0 0
      %832 = vmatmul.mubr.bf16.gmra.mrb[0].mxu0 %v778
      %v833 = vpop.f32.mrb[0].mxu0
      %v834 = vadd.f32 0.0, %v833
      %v835 = vpop.f32.mrb[0].mxu0
      %v836 = vpop.f32.mrb[0].mxu0
      %v837 = vadd.f32 0.0, %v836
      %v838 = vpop.f32.mrb[0].mxu0
      %839 = vmatprep.mubr.bf16.mxu0 0
      %840 = vmatmul.mubr.bf16.gmra.mrb[0].mxu0 %v781
      %v841 = vpop.f32.mrb[0].mxu0
      %v842 = vadd.f32 0.0, %v841
      %v843 = vpop.f32.mrb[0].mxu0
      %v844 = vpop.f32.mrb[0].mxu0
      %v845 = vadd.f32 0.0, %v844
      %v846 = vpop.f32.mrb[0].mxu0
      %847 = vdwg.mxu0
      %v848 = vadd.f32 %v559, %v818
      %v849 = vadd.f32 %v562, %v821
      %v850 = vadd.f32 %v567, %v826
      %v851 = vadd.f32 %v570, %v829
      %v852 = vadd.f32 %v575, %v834
      %v853 = vadd.f32 %v578, %v837
      %v854 = vadd.f32 %v583, %v842
      %v855 = vadd.f32 %v586, %v845
      %v856 = vld [vmem:[%s195 + $0x20] sm:$0xf]
      %v857 = vmul.bf16 %v332, %v236
      %v858 = vmul.bf16 %v333, %v248
      %v859 = vmul.bf16 %v334, %v260
      %v860 = vmul.bf16 %v335, %v272
      %v861 = vmul.bf16 %v336, %v284
      %v862 = vmul.bf16 %v337, %v296
      %v863 = vmul.bf16 %v338, %v308
      %v864 = vmul.bf16 %v856, %v320
      %v865 = vld [vmem:[%s199 + $0x18] sm:$0xf]
      %v866 = vld [vmem:[%s199 + $0x1c] sm:$0xf]
      %v875 = vunpack.c.l.b16 %v857
      %v876 = vunpack.c.l.b16 %v858
      %v877 = vunpack.c.l.b16 %v859
      %v878 = vunpack.c.l.b16 %v860
      %v879 = vunpack.c.l.b16 %v861
      %v880 = vunpack.c.l.b16 %v862
      %v881 = vunpack.c.l.b16 %v863
      %v882 = vunpack.c.l.b16 %v864
      %v883 = vpack.c.b16 %v876, %v875
      %v884 = vpack.c.b16 %v878, %v877
      %v885 = vpack.c.b16 %v880, %v879
      %v886 = vpack.c.b16 %v882, %v881
      %v889 = vunpack.c.l.b16 %v865
      %v890 = vunpack.c.l.b16 %v866
      %v891 = vpack.c.b16 %v890, %v889
      %v894 = vsel %vm408, %v883, 0
      %v897 = vsel %vm408, %v884, 0
      %v900 = vsel %vm408, %v885, 0
      %v903 = vsel %vm408, %v886, 0
      %905 = vmatprep.subr.bf16.mxu0 0
      %906 = vmatpush1.bf16.msra.mxu0 %v891
      %907 = vmatprep.subr.bf16.mxu0 0
      %908 = vmatpush1.bf16.msra.mxu0 0
      %909 = vmatprep.subr.bf16.mxu0 0
      %910 = vmatpush1.bf16.msra.mxu0 0
      %911 = vmatprep.subr.bf16.mxu0 0
      %912 = vmatpush1.bf16.msra.mxu0 0
      %913 = vmatprep.subr.bf16.mxu0 0
      %914 = vmatpush1.bf16.msra.mxu0 0
      %915 = vmatprep.subr.bf16.mxu0 0
      %916 = vmatpush1.bf16.msra.mxu0 0
      %917 = vmatprep.subr.bf16.mxu0 0
      %918 = vmatpush1.bf16.msra.mxu0 0
      %919 = vmatprep.subr.bf16.mxu0 0
      %920 = vmatpush1.bf16.msra.mxu0 0
      %921 = vmatprep.subr.bf16.mxu0 0
      %922 = vmatpush1.bf16.msra.mxu0 0
      %923 = vmatprep.subr.bf16.mxu0 0
      %924 = vmatpush1.bf16.msra.mxu0 0
      %925 = vmatprep.subr.bf16.mxu0 0
      %926 = vmatpush1.bf16.msra.mxu0 0
      %927 = vmatprep.subr.bf16.mxu0 0
      %928 = vmatpush1.bf16.msra.mxu0 0
      %929 = vmatprep.subr.bf16.mxu0 0
      %930 = vmatpush1.bf16.msra.mxu0 0
      %931 = vmatprep.subr.bf16.mxu0 0
      %932 = vmatpush1.bf16.msra.mxu0 0
      %933 = vmatprep.subr.bf16.mxu0 0
      %934 = vmatpush1.bf16.msra.mxu0 0
      %935 = vmatprep.subr.bf16.mxu0 0
      %936 = vmatpush1.bf16.msra.mxu0 0
      %937 = vmatprep.mubr.bf16.mxu0 0
      %938 = vmatmul.mubr.bf16.gmra.mrb[0].mxu0 %v894
      %v939 = vpop.f32.mrb[0].mxu0
      %v940 = vadd.f32 0.0, %v939
      %v941 = vpop.f32.mrb[0].mxu0
      %v942 = vpop.f32.mrb[0].mxu0
      %v943 = vadd.f32 0.0, %v942
      %v944 = vpop.f32.mrb[0].mxu0
      %945 = vmatprep.mubr.bf16.mxu0 0
      %946 = vmatmul.mubr.bf16.gmra.mrb[0].mxu0 %v897
      %v947 = vpop.f32.mrb[0].mxu0
      %v948 = vadd.f32 0.0, %v947
      %v949 = vpop.f32.mrb[0].mxu0
      %v950 = vpop.f32.mrb[0].mxu0
      %v951 = vadd.f32 0.0, %v950
      %v952 = vpop.f32.mrb[0].mxu0
      %953 = vmatprep.mubr.bf16.mxu0 0
      %954 = vmatmul.mubr.bf16.gmra.mrb[0].mxu0 %v900
      %v955 = vpop.f32.mrb[0].mxu0
      %v956 = vadd.f32 0.0, %v955
      %v957 = vpop.f32.mrb[0].mxu0
      %v958 = vpop.f32.mrb[0].mxu0
      %v959 = vadd.f32 0.0, %v958
      %v960 = vpop.f32.mrb[0].mxu0
      %961 = vmatprep.mubr.bf16.mxu0 0
      %962 = vmatmul.mubr.bf16.gmra.mrb[0].mxu0 %v903
      %v963 = vpop.f32.mrb[0].mxu0
      %v964 = vadd.f32 0.0, %v963
      %v965 = vpop.f32.mrb[0].mxu0
      %v966 = vpop.f32.mrb[0].mxu0
      %v967 = vadd.f32 0.0, %v966
      %v968 = vpop.f32.mrb[0].mxu0
      %969 = vdwg.mxu0
      %v970 = vadd.f32 %v848, %v940
      %v971 = vadd.f32 %v849, %v943
      %v972 = vadd.f32 %v850, %v948
      %v973 = vadd.f32 %v851, %v951
      %v974 = vadd.f32 %v852, %v956
      %v975 = vadd.f32 %v853, %v959
      %v976 = vadd.f32 %v854, %v964
      %v977 = vadd.f32 %v855, %v967
      %v978 = vld [vmem:[%s195 + $0x4] sm:$0xf]
      %v979 = vld [vmem:[%s195 + $0x8] sm:$0xf]
      %v980 = vld [vmem:[%s195 + $0xc] sm:$0xf]
      %v981 = vld [vmem:[%s195 + $0x10] sm:$0xf]
      %v982 = vld [vmem:[%s195 + $0x14] sm:$0xf]
      %v983 = vld [vmem:[%s195 + $0x18] sm:$0xf]
      %v984 = vld [vmem:[%s195 + $0x1c] sm:$0xf]
      %v985 = vld [vmem:[%s195 + $0x20] sm:$0xf]
      %v986 = vld [vmem:[%s195 + $0x24] sm:$0x1]
      %v987 = vld [vmem:[%s199 + $0x20] sm:$0xf]
      %v988 = vld [vmem:[%s199 + $0x24] sm:$0xf]
      %v998 = vunpack.c.l.b16 %v978
      %v999 = vunpack.c.l.b16 %v979
      %v1000 = vunpack.c.l.b16 %v980
      %v1001 = vunpack.c.l.b16 %v981
      %v1002 = vunpack.c.l.b16 %v982
      %v1003 = vunpack.c.l.b16 %v983
      %v1004 = vunpack.c.l.b16 %v984
      %v1005 = vunpack.c.l.b16 %v985
      %v1006 = vunpack.c.l.b16 %v986
      %v1007 = vpack.c.b16 %v999, %v998
      %v1008 = vpack.c.b16 %v1001, %v1000
      %v1009 = vpack.c.b16 %v1003, %v1002
      %v1010 = vpack.c.b16 %v1005, %v1004
      %v1011 = vpack.c.b16 %v1006, %v1006
      %v1013 = vshrl.u32 %v1007, 16
      %v1015 = vshll.u32 %v1007, 16
      %v1017 = vrot.slane %v1015, 1
      %v1018 = vor.u32 %v1013, %v1017
      %v1020 = vshll.u32 %v1008, 16
      %v1022 = vrot.slane %v1020, 1
      %v1023 = vsel %vm365, %v1018, %v1022
      %v1024 = vshrl.u32 %v1008, 16
      %v1026 = vor.u32 %v1024, %v1022
      %v1028 = vshll.u32 %v1009, 16
      %v1030 = vrot.slane %v1028, 1
      %v1031 = vsel %vm365, %v1026, %v1030
      %v1032 = vshrl.u32 %v1009, 16
      %v1034 = vor.u32 %v1032, %v1030
      %v1036 = vshll.u32 %v1010, 16
      %v1038 = vrot.slane %v1036, 1
      %v1039 = vsel %vm365, %v1034, %v1038
      %v1040 = vshrl.u32 %v1010, 16
      %v1042 = vor.u32 %v1040, %v1038
      %v1044 = vshll.u32 %v1011, 16
      %v1046 = vrot.slane %v1044, 1
      %v1047 = vsel %vm365, %v1042, %v1046
      %v1050 = vunpack.c.l.b16 %v987
      %v1051 = vunpack.c.l.b16 %v988
      %v1052 = vpack.c.b16 %v1051, %v1050
      %v1055 = vsel %vm408, %v1023, 0
      %v1058 = vsel %vm408, %v1031, 0
      %v1061 = vsel %vm408, %v1039, 0
      %v1064 = vsel %vm408, %v1047, 0
      %1066 = vmatprep.subr.bf16.mxu0 0
      %1067 = vmatpush1.bf16.msra.mxu0 %v1052
      %1068 = vmatprep.subr.bf16.mxu0 0
      %1069 = vmatpush1.bf16.msra.mxu0 0
      %1070 = vmatprep.subr.bf16.mxu0 0
      %1071 = vmatpush1.bf16.msra.mxu0 0
      %1072 = vmatprep.subr.bf16.mxu0 0
      %1073 = vmatpush1.bf16.msra.mxu0 0
      %1074 = vmatprep.subr.bf16.mxu0 0
      %1075 = vmatpush1.bf16.msra.mxu0 0
      %1076 = vmatprep.subr.bf16.mxu0 0
      %1077 = vmatpush1.bf16.msra.mxu0 0
      %1078 = vmatprep.subr.bf16.mxu0 0
      %1079 = vmatpush1.bf16.msra.mxu0 0
      %1080 = vmatprep.subr.bf16.mxu0 0
      %1081 = vmatpush1.bf16.msra.mxu0 0
      %1082 = vmatprep.subr.bf16.mxu0 0
      %1083 = vmatpush1.bf16.msra.mxu0 0
      %1084 = vmatprep.subr.bf16.mxu0 0
      %1085 = vmatpush1.bf16.msra.mxu0 0
      %1086 = vmatprep.subr.bf16.mxu0 0
      %1087 = vmatpush1.bf16.msra.mxu0 0
      %1088 = vmatprep.subr.bf16.mxu0 0
      %1089 = vmatpush1.bf16.msra.mxu0 0
      %1090 = vmatprep.subr.bf16.mxu0 0
      %1091 = vmatpush1.bf16.msra.mxu0 0
      %1092 = vmatprep.subr.bf16.mxu0 0
      %1093 = vmatpush1.bf16.msra.mxu0 0
      %1094 = vmatprep.subr.bf16.mxu0 0
      %1095 = vmatpush1.bf16.msra.mxu0 0
      %1096 = vmatprep.subr.bf16.mxu0 0
      %1097 = vmatpush1.bf16.msra.mxu0 0
      %1098 = vmatprep.mubr.bf16.mxu0 0
      %1099 = vmatmul.mubr.bf16.gmra.mrb[0].mxu0 %v1055
      %v1100 = vpop.f32.mrb[0].mxu0
      %v1101 = vadd.f32 0.0, %v1100
      %v1102 = vpop.f32.mrb[0].mxu0
      %v1103 = vpop.f32.mrb[0].mxu0
      %v1104 = vadd.f32 0.0, %v1103
      %v1105 = vpop.f32.mrb[0].mxu0
      %1106 = vmatprep.mubr.bf16.mxu0 0
      %1107 = vmatmul.mubr.bf16.gmra.mrb[0].mxu0 %v1058
      %v1108 = vpop.f32.mrb[0].mxu0
      %v1109 = vadd.f32 0.0, %v1108
      %v1110 = vpop.f32.mrb[0].mxu0
      %v1111 = vpop.f32.mrb[0].mxu0
      %v1112 = vadd.f32 0.0, %v1111
      %v1113 = vpop.f32.mrb[0].mxu0
      %1114 = vmatprep.mubr.bf16.mxu0 0
      %1115 = vmatmul.mubr.bf16.gmra.mrb[0].mxu0 %v1061
      %v1116 = vpop.f32.mrb[0].mxu0
      %v1117 = vadd.f32 0.0, %v1116
      %v1118 = vpop.f32.mrb[0].mxu0
      %v1119 = vpop.f32.mrb[0].mxu0
      %v1120 = vadd.f32 0.0, %v1119
      %v1121 = vpop.f32.mrb[0].mxu0
      %1122 = vmatprep.mubr.bf16.mxu0 0
      %1123 = vmatmul.mubr.bf16.gmra.mrb[0].mxu0 %v1064
      %v1124 = vpop.f32.mrb[0].mxu0
      %v1125 = vadd.f32 0.0, %v1124
      %v1126 = vpop.f32.mrb[0].mxu0
      %v1127 = vpop.f32.mrb[0].mxu0
      %v1128 = vadd.f32 0.0, %v1127
      %v1129 = vpop.f32.mrb[0].mxu0
      %1130 = vdwg.mxu0
      %v1131 = vadd.f32 %v970, %v1101
      %v1132 = vadd.f32 %v971, %v1104
      %v1133 = vadd.f32 %v972, %v1109
      %v1134 = vadd.f32 %v973, %v1112
      %v1135 = vadd.f32 %v974, %v1117
      %v1136 = vadd.f32 %v975, %v1120
      %v1137 = vadd.f32 %v976, %v1125
      %v1138 = vadd.f32 %v977, %v1128
      %v1139 = vld [vmem:[%s195 + $0x4] sm:$0xe]
      %v1140 = vmul.bf16 %v1139, %v689
      %v1141 = vmul.bf16 %v979, %v692
      %v1142 = vmul.bf16 %v980, %v695
      %v1143 = vmul.bf16 %v981, %v698
      %v1144 = vmul.bf16 %v982, %v701
      %v1145 = vmul.bf16 %v983, %v704
      %v1146 = vmul.bf16 %v984, %v707
      %v1147 = vmul.bf16 %v985, %v710
      %v1148 = vmul.bf16 %v986, %v711
      %v1149 = vld [vmem:[%s199 + $0x28] sm:$0xf]
      %v1150 = vld [vmem:[%s199 + $0x2c] sm:$0xf]
      %v1160 = vunpack.c.l.b16 %v1140
      %v1161 = vunpack.c.l.b16 %v1141
      %v1162 = vunpack.c.l.b16 %v1142
      %v1163 = vunpack.c.l.b16 %v1143
      %v1164 = vunpack.c.l.b16 %v1144
      %v1165 = vunpack.c.l.b16 %v1145
      %v1166 = vunpack.c.l.b16 %v1146
      %v1167 = vunpack.c.l.b16 %v1147
      %v1168 = vunpack.c.l.b16 %v1148
      %v1169 = vpack.c.b16 %v1161, %v1160
      %v1170 = vpack.c.b16 %v1163, %v1162
      %v1171 = vpack.c.b16 %v1165, %v1164
      %v1172 = vpack.c.b16 %v1167, %v1166
      %v1173 = vpack.c.b16 %v1168, %v1168
      %v1174 = vrot.slane %v1169, 1
      %v1175 = vrot.slane %v1170, 1
      %v1176 = vsel %vm755, %v1174, %v1175
      %v1177 = vrot.slane %v1171, 1
      %v1178 = vsel %vm755, %v1175, %v1177
      %v1179 = vrot.slane %v1172, 1
      %v1180 = vsel %vm755, %v1177, %v1179
      %v1181 = vrot.slane %v1173, 1
      %v1182 = vsel %vm755, %v1179, %v1181
      %v1185 = vunpack.c.l.b16 %v1149
      %v1186 = vunpack.c.l.b16 %v1150
      %v1187 = vpack.c.b16 %v1186, %v1185
      %v1190 = vsel %vm408, %v1176, 0
      %v1193 = vsel %vm408, %v1178, 0
      %v1196 = vsel %vm408, %v1180, 0
      %v1199 = vsel %vm408, %v1182, 0
      %1201 = vmatprep.subr.bf16.mxu0 0
      %1202 = vmatpush1.bf16.msra.mxu0 %v1187
      %1203 = vmatprep.subr.bf16.mxu0 0
      %1204 = vmatpush1.bf16.msra.mxu0 0
      %1205 = vmatprep.subr.bf16.mxu0 0
      %1206 = vmatpush1.bf16.msra.mxu0 0
      %1207 = vmatprep.subr.bf16.mxu0 0
      %1208 = vmatpush1.bf16.msra.mxu0 0
      %1209 = vmatprep.subr.bf16.mxu0 0
      %1210 = vmatpush1.bf16.msra.mxu0 0
      %1211 = vmatprep.subr.bf16.mxu0 0
      %1212 = vmatpush1.bf16.msra.mxu0 0
      %1213 = vmatprep.subr.bf16.mxu0 0
      %1214 = vmatpush1.bf16.msra.mxu0 0
      %1215 = vmatprep.subr.bf16.mxu0 0
      %1216 = vmatpush1.bf16.msra.mxu0 0
      %1217 = vmatprep.subr.bf16.mxu0 0
      %1218 = vmatpush1.bf16.msra.mxu0 0
      %1219 = vmatprep.subr.bf16.mxu0 0
      %1220 = vmatpush1.bf16.msra.mxu0 0
      %1221 = vmatprep.subr.bf16.mxu0 0
      %1222 = vmatpush1.bf16.msra.mxu0 0
      %1223 = vmatprep.subr.bf16.mxu0 0
      %1224 = vmatpush1.bf16.msra.mxu0 0
      %1225 = vmatprep.subr.bf16.mxu0 0
      %1226 = vmatpush1.bf16.msra.mxu0 0
      %1227 = vmatprep.subr.bf16.mxu0 0
      %1228 = vmatpush1.bf16.msra.mxu0 0
      %1229 = vmatprep.subr.bf16.mxu0 0
      %1230 = vmatpush1.bf16.msra.mxu0 0
      %1231 = vmatprep.subr.bf16.mxu0 0
      %1232 = vmatpush1.bf16.msra.mxu0 0
      %1233 = vmatprep.mubr.bf16.mxu0 0
      %1234 = vmatmul.mubr.bf16.gmra.mrb[0].mxu0 %v1190
      %v1235 = vpop.f32.mrb[0].mxu0
      %v1236 = vadd.f32 0.0, %v1235
      %v1237 = vpop.f32.mrb[0].mxu0
      %v1238 = vpop.f32.mrb[0].mxu0
      %v1239 = vadd.f32 0.0, %v1238
      %v1240 = vpop.f32.mrb[0].mxu0
      %1241 = vmatprep.mubr.bf16.mxu0 0
      %1242 = vmatmul.mubr.bf16.gmra.mrb[0].mxu0 %v1193
      %v1243 = vpop.f32.mrb[0].mxu0
      %v1244 = vadd.f32 0.0, %v1243
      %v1245 = vpop.f32.mrb[0].mxu0
      %v1246 = vpop.f32.mrb[0].mxu0
      %v1247 = vadd.f32 0.0, %v1246
      %v1248 = vpop.f32.mrb[0].mxu0
      %1249 = vmatprep.mubr.bf16.mxu0 0
      %1250 = vmatmul.mubr.bf16.gmra.mrb[0].mxu0 %v1196
      %v1251 = vpop.f32.mrb[0].mxu0
      %v1252 = vadd.f32 0.0, %v1251
      %v1253 = vpop.f32.mrb[0].mxu0
      %v1254 = vpop.f32.mrb[0].mxu0
      %v1255 = vadd.f32 0.0, %v1254
      %v1256 = vpop.f32.mrb[0].mxu0
      %1257 = vmatprep.mubr.bf16.mxu0 0
      %1258 = vmatmul.mubr.bf16.gmra.mrb[0].mxu0 %v1199
      %v1259 = vpop.f32.mrb[0].mxu0
      %v1260 = vadd.f32 0.0, %v1259
      %v1261 = vpop.f32.mrb[0].mxu0
      %v1262 = vpop.f32.mrb[0].mxu0
      %v1263 = vadd.f32 0.0, %v1262
      %v1264 = vpop.f32.mrb[0].mxu0
      %1265 = vdwg.mxu0
      %v1266 = vadd.f32 %v1131, %v1236
      %v1267 = vadd.f32 %v1132, %v1239
      %v1268 = vadd.f32 %v1133, %v1244
      %v1269 = vadd.f32 %v1134, %v1247
      %v1270 = vadd.f32 %v1135, %v1252
      %v1271 = vadd.f32 %v1136, %v1255
      %v1272 = vadd.f32 %v1137, %v1260
      %v1273 = vadd.f32 %v1138, %v1263
      %v1274 = vld [vmem:[%s195 + $0x24] sm:$0xf]
      %v1275 = vmul.bf16 %v979, %v236
      %v1276 = vmul.bf16 %v980, %v248
      %v1277 = vmul.bf16 %v981, %v260
      %v1278 = vmul.bf16 %v982, %v272
      %v1279 = vmul.bf16 %v983, %v284
      %v1280 = vmul.bf16 %v984, %v296
      %v1281 = vmul.bf16 %v985, %v308
      %v1282 = vmul.bf16 %v1274, %v320
      %v1283 = vld [vmem:[%s199 + $0x30] sm:$0xf]
      %v1284 = vld [vmem:[%s199 + $0x34] sm:$0xf]
      %v1293 = vunpack.c.l.b16 %v1275
      %v1294 = vunpack.c.l.b16 %v1276
      %v1295 = vunpack.c.l.b16 %v1277
      %v1296 = vunpack.c.l.b16 %v1278
      %v1297 = vunpack.c.l.b16 %v1279
      %v1298 = vunpack.c.l.b16 %v1280
      %v1299 = vunpack.c.l.b16 %v1281
      %v1300 = vunpack.c.l.b16 %v1282
      %v1301 = vpack.c.b16 %v1294, %v1293
      %v1302 = vpack.c.b16 %v1296, %v1295
      %v1303 = vpack.c.b16 %v1298, %v1297
      %v1304 = vpack.c.b16 %v1300, %v1299
      %v1307 = vunpack.c.l.b16 %v1283
      %v1308 = vunpack.c.l.b16 %v1284
      %v1309 = vpack.c.b16 %v1308, %v1307
      %v1312 = vsel %vm408, %v1301, 0
      %v1315 = vsel %vm408, %v1302, 0
      %v1318 = vsel %vm408, %v1303, 0
      %v1321 = vsel %vm408, %v1304, 0
      %1323 = vmatprep.subr.bf16.mxu0 0
      %1324 = vmatpush1.bf16.msra.mxu0 %v1309
      %1325 = vmatprep.subr.bf16.mxu0 0
      %1326 = vmatpush1.bf16.msra.mxu0 0
      %1327 = vmatprep.subr.bf16.mxu0 0
      %1328 = vmatpush1.bf16.msra.mxu0 0
      %1329 = vmatprep.subr.bf16.mxu0 0
      %1330 = vmatpush1.bf16.msra.mxu0 0
      %1331 = vmatprep.subr.bf16.mxu0 0
      %1332 = vmatpush1.bf16.msra.mxu0 0
      %1333 = vmatprep.subr.bf16.mxu0 0
      %1334 = vmatpush1.bf16.msra.mxu0 0
      %1335 = vmatprep.subr.bf16.mxu0 0
      %1336 = vmatpush1.bf16.msra.mxu0 0
      %1337 = vmatprep.subr.bf16.mxu0 0
      %1338 = vmatpush1.bf16.msra.mxu0 0
      %1339 = vmatprep.subr.bf16.mxu0 0
      %1340 = vmatpush1.bf16.msra.mxu0 0
      %1341 = vmatprep.subr.bf16.mxu0 0
      %1342 = vmatpush1.bf16.msra.mxu0 0
      %1343 = vmatprep.subr.bf16.mxu0 0
      %1344 = vmatpush1.bf16.msra.mxu0 0
      %1345 = vmatprep.subr.bf16.mxu0 0
      %1346 = vmatpush1.bf16.msra.mxu0 0
      %1347 = vmatprep.subr.bf16.mxu0 0
      %1348 = vmatpush1.bf16.msra.mxu0 0
      %1349 = vmatprep.subr.bf16.mxu0 0
      %1350 = vmatpush1.bf16.msra.mxu0 0
      %1351 = vmatprep.subr.bf16.mxu0 0
      %1352 = vmatpush1.bf16.msra.mxu0 0
      %1353 = vmatprep.subr.bf16.mxu0 0
      %1354 = vmatpush1.bf16.msra.mxu0 0
      %1355 = vmatprep.mubr.bf16.mxu0 0
      %1356 = vmatmul.mubr.bf16.gmra.mrb[0].mxu0 %v1312
      %v1357 = vpop.f32.mrb[0].mxu0
      %v1358 = vadd.f32 0.0, %v1357
      %v1359 = vpop.f32.mrb[0].mxu0
      %v1360 = vpop.f32.mrb[0].mxu0
      %v1361 = vadd.f32 0.0, %v1360
      %v1362 = vpop.f32.mrb[0].mxu0
      %1363 = vmatprep.mubr.bf16.mxu0 0
      %1364 = vmatmul.mubr.bf16.gmra.mrb[0].mxu0 %v1315
      %v1365 = vpop.f32.mrb[0].mxu0
      %v1366 = vadd.f32 0.0, %v1365
      %v1367 = vpop.f32.mrb[0].mxu0
      %v1368 = vpop.f32.mrb[0].mxu0
      %v1369 = vadd.f32 0.0, %v1368
      %v1370 = vpop.f32.mrb[0].mxu0
      %1371 = vmatprep.mubr.bf16.mxu0 0
      %1372 = vmatmul.mubr.bf16.gmra.mrb[0].mxu0 %v1318
      %v1373 = vpop.f32.mrb[0].mxu0
      %v1374 = vadd.f32 0.0, %v1373
      %v1375 = vpop.f32.mrb[0].mxu0
      %v1376 = vpop.f32.mrb[0].mxu0
      %v1377 = vadd.f32 0.0, %v1376
      %v1378 = vpop.f32.mrb[0].mxu0
      %1379 = vmatprep.mubr.bf16.mxu0 0
      %1380 = vmatmul.mubr.bf16.gmra.mrb[0].mxu0 %v1321
      %v1381 = vpop.f32.mrb[0].mxu0
      %v1382 = vadd.f32 0.0, %v1381
      %v1383 = vpop.f32.mrb[0].mxu0
      %v1384 = vpop.f32.mrb[0].mxu0
      %v1385 = vadd.f32 0.0, %v1384
      %v1386 = vpop.f32.mrb[0].mxu0
      %1387 = vdwg.mxu0
      %v1388 = vadd.f32 %v1266, %v1358
      %v1389 = vadd.f32 %v1267, %v1361
      %v1390 = vadd.f32 %v1268, %v1366
      %v1391 = vadd.f32 %v1269, %v1369
      %v1392 = vadd.f32 %v1270, %v1374
      %v1393 = vadd.f32 %v1271, %v1377
      %v1394 = vadd.f32 %v1272, %v1382
      %v1395 = vadd.f32 %v1273, %v1385
      %v1396 = vld [vmem:[%s195 + $0x8] sm:$0xf]
      %v1397 = vld [vmem:[%s195 + $0xc] sm:$0xf]
      %v1398 = vld [vmem:[%s195 + $0x10] sm:$0xf]
      %v1399 = vld [vmem:[%s195 + $0x14] sm:$0xf]
      %v1400 = vld [vmem:[%s195 + $0x18] sm:$0xf]
      %v1401 = vld [vmem:[%s195 + $0x1c] sm:$0xf]
      %v1402 = vld [vmem:[%s195 + $0x20] sm:$0xf]
      %v1403 = vld [vmem:[%s195 + $0x24] sm:$0xf]
      %v1404 = vld [vmem:[%s195 + $0x28] sm:$0x1]
      %v1405 = vld [vmem:[%s199 + $0x38] sm:$0xf]
      %v1406 = vld [vmem:[%s199 + $0x3c] sm:$0xf]
      %v1416 = vunpack.c.l.b16 %v1396
      %v1417 = vunpack.c.l.b16 %v1397
      %v1418 = vunpack.c.l.b16 %v1398
      %v1419 = vunpack.c.l.b16 %v1399
      %v1420 = vunpack.c.l.b16 %v1400
      %v1421 = vunpack.c.l.b16 %v1401
      %v1422 = vunpack.c.l.b16 %v1402
      %v1423 = vunpack.c.l.b16 %v1403
      %v1424 = vunpack.c.l.b16 %v1404
      %v1425 = vpack.c.b16 %v1417, %v1416
      %v1426 = vpack.c.b16 %v1419, %v1418
      %v1427 = vpack.c.b16 %v1421, %v1420
      %v1428 = vpack.c.b16 %v1423, %v1422
      %v1429 = vpack.c.b16 %v1424, %v1424
      %v1431 = vshrl.u32 %v1425, 16
      %v1433 = vshll.u32 %v1425, 16
      %v1435 = vrot.slane %v1433, 1
      %v1436 = vor.u32 %v1431, %v1435
      %v1438 = vshll.u32 %v1426, 16
      %v1440 = vrot.slane %v1438, 1
      %v1441 = vsel %vm365, %v1436, %v1440
      %v1442 = vshrl.u32 %v1426, 16
      %v1444 = vor.u32 %v1442, %v1440
      %v1446 = vshll.u32 %v1427, 16
      %v1448 = vrot.slane %v1446, 1
      %v1449 = vsel %vm365, %v1444, %v1448
      %v1450 = vshrl.u32 %v1427, 16
      %v1452 = vor.u32 %v1450, %v1448
      %v1454 = vshll.u32 %v1428, 16
      %v1456 = vrot.slane %v1454, 1
      %v1457 = vsel %vm365, %v1452, %v1456
      %v1458 = vshrl.u32 %v1428, 16
      %v1460 = vor.u32 %v1458, %v1456
      %v1462 = vshll.u32 %v1429, 16
      %v1464 = vrot.slane %v1462, 1
      %v1465 = vsel %vm365, %v1460, %v1464
      %v1468 = vunpack.c.l.b16 %v1405
      %v1469 = vunpack.c.l.b16 %v1406
      %v1470 = vpack.c.b16 %v1469, %v1468
      %v1473 = vsel %vm408, %v1441, 0
      %v1476 = vsel %vm408, %v1449, 0
      %v1479 = vsel %vm408, %v1457, 0
      %v1482 = vsel %vm408, %v1465, 0
      %1484 = vmatprep.subr.bf16.mxu0 0
      %1485 = vmatpush1.bf16.msra.mxu0 %v1470
      %1486 = vmatprep.subr.bf16.mxu0 0
      %1487 = vmatpush1.bf16.msra.mxu0 0
      %1488 = vmatprep.subr.bf16.mxu0 0
      %1489 = vmatpush1.bf16.msra.mxu0 0
      %1490 = vmatprep.subr.bf16.mxu0 0
      %1491 = vmatpush1.bf16.msra.mxu0 0
      %1492 = vmatprep.subr.bf16.mxu0 0
      %1493 = vmatpush1.bf16.msra.mxu0 0
      %1494 = vmatprep.subr.bf16.mxu0 0
      %1495 = vmatpush1.bf16.msra.mxu0 0
      %1496 = vmatprep.subr.bf16.mxu0 0
      %1497 = vmatpush1.bf16.msra.mxu0 0
      %1498 = vmatprep.subr.bf16.mxu0 0
      %1499 = vmatpush1.bf16.msra.mxu0 0
      %1500 = vmatprep.subr.bf16.mxu0 0
      %1501 = vmatpush1.bf16.msra.mxu0 0
      %1502 = vmatprep.subr.bf16.mxu0 0
      %1503 = vmatpush1.bf16.msra.mxu0 0
      %1504 = vmatprep.subr.bf16.mxu0 0
      %1505 = vmatpush1.bf16.msra.mxu0 0
      %1506 = vmatprep.subr.bf16.mxu0 0
      %1507 = vmatpush1.bf16.msra.mxu0 0
      %1508 = vmatprep.subr.bf16.mxu0 0
      %1509 = vmatpush1.bf16.msra.mxu0 0
      %1510 = vmatprep.subr.bf16.mxu0 0
      %1511 = vmatpush1.bf16.msra.mxu0 0
      %1512 = vmatprep.subr.bf16.mxu0 0
      %1513 = vmatpush1.bf16.msra.mxu0 0
      %1514 = vmatprep.subr.bf16.mxu0 0
      %1515 = vmatpush1.bf16.msra.mxu0 0
      %1516 = vmatprep.mubr.bf16.mxu0 0
      %1517 = vmatmul.mubr.bf16.gmra.mrb[0].mxu0 %v1473
      %v1518 = vpop.f32.mrb[0].mxu0
      %v1519 = vadd.f32 0.0, %v1518
      %v1520 = vpop.f32.mrb[0].mxu0
      %v1521 = vpop.f32.mrb[0].mxu0
      %v1522 = vadd.f32 0.0, %v1521
      %v1523 = vpop.f32.mrb[0].mxu0
      %1524 = vmatprep.mubr.bf16.mxu0 0
      %1525 = vmatmul.mubr.bf16.gmra.mrb[0].mxu0 %v1476
      %v1526 = vpop.f32.mrb[0].mxu0
      %v1527 = vadd.f32 0.0, %v1526
      %v1528 = vpop.f32.mrb[0].mxu0
      %v1529 = vpop.f32.mrb[0].mxu0
      %v1530 = vadd.f32 0.0, %v1529
      %v1531 = vpop.f32.mrb[0].mxu0
      %1532 = vmatprep.mubr.bf16.mxu0 0
      %1533 = vmatmul.mubr.bf16.gmra.mrb[0].mxu0 %v1479
      %v1534 = vpop.f32.mrb[0].mxu0
      %v1535 = vadd.f32 0.0, %v1534
      %v1536 = vpop.f32.mrb[0].mxu0
      %v1537 = vpop.f32.mrb[0].mxu0
      %v1538 = vadd.f32 0.0, %v1537
      %v1539 = vpop.f32.mrb[0].mxu0
      %1540 = vmatprep.mubr.bf16.mxu0 0
      %1541 = vmatmul.mubr.bf16.gmra.mrb[0].mxu0 %v1482
      %v1542 = vpop.f32.mrb[0].mxu0
      %v1543 = vadd.f32 0.0, %v1542
      %v1544 = vpop.f32.mrb[0].mxu0
      %v1545 = vpop.f32.mrb[0].mxu0
      %v1546 = vadd.f32 0.0, %v1545
      %v1547 = vpop.f32.mrb[0].mxu0
      %1548 = vdwg.mxu0
      %v1549 = vadd.f32 %v1388, %v1519
      %v1550 = vadd.f32 %v1389, %v1522
      %v1551 = vadd.f32 %v1390, %v1527
      %v1552 = vadd.f32 %v1391, %v1530
      %v1553 = vadd.f32 %v1392, %v1535
      %v1554 = vadd.f32 %v1393, %v1538
      %v1555 = vadd.f32 %v1394, %v1543
      %v1556 = vadd.f32 %v1395, %v1546
      %v1557 = vld [vmem:[%s195 + $0x8] sm:$0xe]
      %v1558 = vmul.bf16 %v1557, %v689
      %v1559 = vmul.bf16 %v1397, %v692
      %v1560 = vmul.bf16 %v1398, %v695
      %v1561 = vmul.bf16 %v1399, %v698
      %v1562 = vmul.bf16 %v1400, %v701
      %v1563 = vmul.bf16 %v1401, %v704
      %v1564 = vmul.bf16 %v1402, %v707
      %v1565 = vmul.bf16 %v1403, %v710
      %v1566 = vmul.bf16 %v1404, %v711
      %v1567 = vld [vmem:[%s199 + $0x40] sm:$0xf]
      %v1568 = vld [vmem:[%s199 + $0x44] sm:$0xf]
      %v1578 = vunpack.c.l.b16 %v1558
      %v1579 = vunpack.c.l.b16 %v1559
      %v1580 = vunpack.c.l.b16 %v1560
      %v1581 = vunpack.c.l.b16 %v1561
      %v1582 = vunpack.c.l.b16 %v1562
      %v1583 = vunpack.c.l.b16 %v1563
      %v1584 = vunpack.c.l.b16 %v1564
      %v1585 = vunpack.c.l.b16 %v1565
      %v1586 = vunpack.c.l.b16 %v1566
      %v1587 = vpack.c.b16 %v1579, %v1578
      %v1588 = vpack.c.b16 %v1581, %v1580
      %v1589 = vpack.c.b16 %v1583, %v1582
      %v1590 = vpack.c.b16 %v1585, %v1584
      %v1591 = vpack.c.b16 %v1586, %v1586
      %v1592 = vrot.slane %v1587, 1
      %v1593 = vrot.slane %v1588, 1
      %v1594 = vsel %vm755, %v1592, %v1593
      %v1595 = vrot.slane %v1589, 1
      %v1596 = vsel %vm755, %v1593, %v1595
      %v1597 = vrot.slane %v1590, 1
      %v1598 = vsel %vm755, %v1595, %v1597
      %v1599 = vrot.slane %v1591, 1
      %v1600 = vsel %vm755, %v1597, %v1599
      %v1603 = vunpack.c.l.b16 %v1567
      %v1604 = vunpack.c.l.b16 %v1568
      %v1605 = vpack.c.b16 %v1604, %v1603
      %v1608 = vsel %vm408, %v1594, 0
      %v1611 = vsel %vm408, %v1596, 0
      %v1614 = vsel %vm408, %v1598, 0
      %v1617 = vsel %vm408, %v1600, 0
      %1619 = vmatprep.subr.bf16.mxu0 0
      %1620 = vmatpush1.bf16.msra.mxu0 %v1605
      %1621 = vmatprep.subr.bf16.mxu0 0
      %1622 = vmatpush1.bf16.msra.mxu0 0
      %1623 = vmatprep.subr.bf16.mxu0 0
      %1624 = vmatpush1.bf16.msra.mxu0 0
      %1625 = vmatprep.subr.bf16.mxu0 0
      %1626 = vmatpush1.bf16.msra.mxu0 0
      %1627 = vmatprep.subr.bf16.mxu0 0
      %1628 = vmatpush1.bf16.msra.mxu0 0
      %1629 = vmatprep.subr.bf16.mxu0 0
      %1630 = vmatpush1.bf16.msra.mxu0 0
      %1631 = vmatprep.subr.bf16.mxu0 0
      %1632 = vmatpush1.bf16.msra.mxu0 0
      %1633 = vmatprep.subr.bf16.mxu0 0
      %1634 = vmatpush1.bf16.msra.mxu0 0
      %1635 = vmatprep.subr.bf16.mxu0 0
      %1636 = vmatpush1.bf16.msra.mxu0 0
      %1637 = vmatprep.subr.bf16.mxu0 0
      %1638 = vmatpush1.bf16.msra.mxu0 0
      %1639 = vmatprep.subr.bf16.mxu0 0
      %1640 = vmatpush1.bf16.msra.mxu0 0
      %1641 = vmatprep.subr.bf16.mxu0 0
      %1642 = vmatpush1.bf16.msra.mxu0 0
      %1643 = vmatprep.subr.bf16.mxu0 0
      %1644 = vmatpush1.bf16.msra.mxu0 0
      %1645 = vmatprep.subr.bf16.mxu0 0
      %1646 = vmatpush1.bf16.msra.mxu0 0
      %1647 = vmatprep.subr.bf16.mxu0 0
      %1648 = vmatpush1.bf16.msra.mxu0 0
      %1649 = vmatprep.subr.bf16.mxu0 0
      %1650 = vmatpush1.bf16.msra.mxu0 0
      %1651 = vmatprep.mubr.bf16.mxu0 0
      %1652 = vmatmul.mubr.bf16.gmra.mrb[0].mxu0 %v1608
      %v1653 = vpop.f32.mrb[0].mxu0
      %v1654 = vadd.f32 0.0, %v1653
      %v1655 = vpop.f32.mrb[0].mxu0
      %v1656 = vpop.f32.mrb[0].mxu0
      %v1657 = vadd.f32 0.0, %v1656
      %v1658 = vpop.f32.mrb[0].mxu0
      %1659 = vmatprep.mubr.bf16.mxu0 0
      %1660 = vmatmul.mubr.bf16.gmra.mrb[0].mxu0 %v1611
      %v1661 = vpop.f32.mrb[0].mxu0
      %v1662 = vadd.f32 0.0, %v1661
      %v1663 = vpop.f32.mrb[0].mxu0
      %v1664 = vpop.f32.mrb[0].mxu0
      %v1665 = vadd.f32 0.0, %v1664
      %v1666 = vpop.f32.mrb[0].mxu0
      %1667 = vmatprep.mubr.bf16.mxu0 0
      %1668 = vmatmul.mubr.bf16.gmra.mrb[0].mxu0 %v1614
      %v1669 = vpop.f32.mrb[0].mxu0
      %v1670 = vadd.f32 0.0, %v1669
      %v1671 = vpop.f32.mrb[0].mxu0
      %v1672 = vpop.f32.mrb[0].mxu0
      %v1673 = vadd.f32 0.0, %v1672
      %v1674 = vpop.f32.mrb[0].mxu0
      %1675 = vmatprep.mubr.bf16.mxu0 0
      %1676 = vmatmul.mubr.bf16.gmra.mrb[0].mxu0 %v1617
      %v1677 = vpop.f32.mrb[0].mxu0
      %v1678 = vadd.f32 0.0, %v1677
      %v1679 = vpop.f32.mrb[0].mxu0
      %v1680 = vpop.f32.mrb[0].mxu0
      %v1681 = vadd.f32 0.0, %v1680
      %v1682 = vpop.f32.mrb[0].mxu0
      %1683 = vdwg.mxu0
      %v1684 = vadd.f32 %v1549, %v1654
      %v1685 = vadd.f32 %v1550, %v1657
      %v1686 = vadd.f32 %v1551, %v1662
      %v1687 = vadd.f32 %v1552, %v1665
      %v1688 = vadd.f32 %v1553, %v1670
      %v1689 = vadd.f32 %v1554, %v1673
      %v1690 = vadd.f32 %v1555, %v1678
      %v1691 = vadd.f32 %v1556, %v1681
      %v1692 = vpack.c.bf16 %v1685, %v1684
      %v1693 = vpack.c.bf16 %v1687, %v1686
      %v1694 = vpack.c.bf16 %v1689, %v1688
      %v1695 = vpack.c.bf16 %v1691, %v1690
      %v1700 = vunpack.c.l.b16 %v1692
      %v1701 = vunpack.c.h.b16 %v1692
      %v1702 = vunpack.c.l.b16 %v1693
      %v1703 = vunpack.c.h.b16 %v1693
      %v1704 = vunpack.c.l.b16 %v1694
      %v1705 = vunpack.c.h.b16 %v1694
      %v1706 = vunpack.c.l.b16 %v1695
      %v1707 = vunpack.c.h.b16 %v1695
      %v1708 = vpack.c.b16 %v1700, %v1700
      %v1709 = vpack.c.b16 %v1701, %v1701
      %v1710 = vpack.c.b16 %v1702, %v1702
      %v1711 = vpack.c.b16 %v1703, %v1703
      %v1712 = vpack.c.b16 %v1704, %v1704
      %v1713 = vpack.c.b16 %v1705, %v1705
      %v1714 = vpack.c.b16 %v1706, %v1706
      %v1715 = vpack.c.b16 %v1707, %v1707
      %vm1724 = vcmask 257024
      %1725 = vst.msk [vmem:[%s207] sm:$0xf] %vm1724, %v1708
      %1726 = vst.msk [vmem:[%s207 + $0x4] sm:$0xf] %vm1724, %v1709
      %1727 = vst.msk [vmem:[%s207 + $0x8] sm:$0xf] %vm1724, %v1710
      %1728 = vst.msk [vmem:[%s207 + $0xc] sm:$0xf] %vm1724, %v1711
      %1729 = vst.msk [vmem:[%s207 + $0x10] sm:$0xf] %vm1724, %v1712
      %1730 = vst.msk [vmem:[%s207 + $0x14] sm:$0xf] %vm1724, %v1713
      %1731 = vst.msk [vmem:[%s207 + $0x18] sm:$0xf] %vm1724, %v1714
      %1732 = vst.msk [vmem:[%s207 + $0x1c] sm:$0xf] %vm1724, %v1715
      %p1733 = scmp.lt.s32.totalorder %s18, 1
      %s1734 = scalar_select %p1733, %s18, 1
      %p1735 = scmp.lt.s32.totalorder %s19, 0
      %s1736 = scalar_select %p1735, %s19, 0
      %s1737 = smul.addr %s1734, 8
      %s1738 = sadd.s32 %s1736, %s1737
      %s1739 = smul.addr %s1738, 4
      %s1740 = scalar_lea.vmem %s3, %s1739
      // Predicated region
      $region33: #{unet_block_codec_innermost.4} parent=31 // pred_check
        %p1741 = pneg %p119
      $region34: #{unet_block_codec_innermost.4} parent=31 // pred_check_branch
        %1743 = sbr.rel (%p1741) target = $region36
      $region35: #{unet_block_codec_innermost.4} parent=31 // pred_region
        _
      $region36: #{unet_block_codec_innermost.4} parent=31 // pred_fallthru
        _
    $region32: #{unet_block_codec_innermost.4} parent=5 // pred_fallthru
      _
    %p1744 = scmp.le.s32.totalorder 2, %s9
    // Predicated region
    $region37: #{unet_block_codec_innermost.4} parent=5 // pred_check
      %p1745 = pneg %p1744
    $region38: #{unet_block_codec_innermost.4} parent=5 // pred_check_branch
      %1747 = sbr.rel (%p1745) target = $region40
    $region39: #{unet_block_codec_innermost.4} parent=5 // pred_region
      %s1748 = ssub.s32 %s9, 2
      // Predicated region
      $region41: #{unet_block_codec_innermost.4} parent=39 // pred_check
        %p1749 = pneg %p125
      $region42: #{unet_block_codec_innermost.4} parent=39 // pred_check_branch
        %1751 = sbr.rel (%p1749) target = $region44
      $region43: #{unet_block_codec_innermost.4} parent=39 // pred_region
        %p1752 = scmp.lt.s32.totalorder %s20, 1
        %s1753 = scalar_select %p1752, %s20, 1
        %p1754 = scmp.lt.s32.totalorder %s21, 0
        %s1755 = scalar_select %p1754, %s21, 0
        %s1756 = smul.addr %s1753, 8
        %s1757 = sadd.s32 %s1755, %s1756
        %s1758 = smul.addr %s1757, 4
        %s1759 = scalar_lea.vmem %s3, %s1758
      $region44: #{unet_block_codec_innermost.4} parent=39 // pred_fallthru
        _
    $region40: #{unet_block_codec_innermost.4} parent=5 // pred_fallthru
      _
  $region6: #{unet_block_codec_innermost.4} parent=0 // loop_footer
    %s13 = sadd.s32 1, %s9
  $region7: #{unet_block_codec_innermost.4} parent=0 // loop_footer_branch
    %8 = sbr.rel target = $region3
  $region8: #{unet_block_codec_innermost.4} parent=0 // loop_exit
    _

// kernel: unet_block_codec_innermost.5
$region0: #{unet_block_codec_innermost.5}
  #allocation0 [shape = 'u32[]', space=smem, size = 0x4, offset = 0x4, fixed_abs, tag = 'smem constant byte address 0x4 - core index']
  #allocation1 [shape = 'u32[144,128]{1,0:T(1,128)}', space=vmem, size = 0x12000, scoped, tag = 'internal scratch']
  %s0 = inlined_call_operand.vmem [shape: f32[2,8,256], index: 0, kind: input, shape index: {}]
  %s1 = inlined_call_operand.vmem [shape: bf16[2,8,256], index: 1, kind: input, shape index: {}]
  %s2 = inlined_call_operand.vmem [shape: f32[2,1,256], index: 2, kind: input, shape index: {}]
  %s3 = inlined_call_operand.vmem [shape: f32[8,4], index: 3, kind: input, shape index: {}]
  %s4 = inlined_call_operand.vmem [shape: f32[2,16,256], index: 4, kind: output, shape index: {}]
  %s5 = sld [smem:[#allocation0]]
  $region57: #{unet_block_codec_innermost.5} parent=0
    _
  %s7 = ssub.s32 1, %s5
  %s8 = scalar_select 0, %s7, %s5
  loop: start=0, step=1, limit=6
  $region2: #{unet_block_codec_innermost.5} parent=0 // loop_pre_header
    _
  $region3: #{unet_block_codec_innermost.5} parent=0 // loop_header
    %s10 = sphi 0, %s14
    %p11 = scmp.ge.s32.totalorder %s10, 6
    %s17 = sphi 0, %s29
    %s18 = sphi 0, %s25
    %s19 = sphi 0, %s17
    %s20 = sphi 0, %s18
    %s21 = sphi 0, %s19
    %s22 = sphi 0, %s20
    %s38 = sphi 0, %s40
    %s41 = sphi 0, %s38
    %s42 = sphi 0, %s41
    %s58 = sphi 0, %s42
    %s72 = sphi 0, %s74
    %s75 = sphi 0, %s72
    %s76 = sphi 0, %s75
    %s92 = sphi 0, %s76
    %s98 = sphi 0, %s100
    %s101 = sphi 0, %s98
    %s102 = sphi 0, %s101
    %s118 = sphi 0, %s102
    %s130 = sphi 0, %s132
    %s133 = sphi 0, %s130
    %s134 = sphi 0, %s133
    %s150 = sphi 0, %s134
    %s158 = sphi 0, %s160
    %s161 = sphi 0, %s158
    %s162 = sphi 0, %s161
    %s178 = sphi 0, %s162
  $region4: #{unet_block_codec_innermost.5} parent=0 // loop_header_branch
    %13 = sbr.rel (%p11) target = $region8
  $region5: #{unet_block_codec_innermost.5} parent=0 // loop_body
    %s15 = ssub.s32 %s10, 1
    %s16 = ssub.s32 %s10, 2
    %s23 = sadd.s32 1, %s18
    %p24 = scmp.ge.s32.totalorder %s23, 2
    %s25 = scalar_select %p24, 0, %s23
    %s26 = sadd.s32 1, %s17
    %s27 = scalar_select %p24, %s26, %s17
    %p28 = scmp.ge.s32.totalorder %s27, 2
    %s29 = scalar_select %p28, 0, %s27
    %p30 = scmp.lt.s32.totalorder %s18, 0
    %s31 = scalar_select %p30, %s18, 0
    %p32 = scmp.lt.s32.totalorder %s25, 0
    %s33 = scalar_select %p32, %s25, 0
    %s34 = ssub.s32 %s17, %s29
    %s35 = ssub.s32 %s31, %s33
    %s36 = sor.u32 %s34, %s35
    %p37 = scmp.eq.s32.totalorder %s36, 0
    %s39 = sadd.s32 %s38, 1
    %s40 = scalar_select %p37, %s38, %s39
    %p43 = pneg %p37
    %p44 = scmp.eq.s32.totalorder %s10, 3
    %p45 = por %p43, %p44
    %p46 = scmp.ne.s32.totalorder %s38, %s41
    %p47 = scmp.eq.s32.totalorder %s10, 0
    %p48 = por %p46, %p47
    %p49 = scmp.ne.s32.totalorder %s38, %s41
    %p50 = scmp.eq.s32.totalorder %s15, 3
    %p51 = por %p49, %p50
    %p52 = scmp.ne.s32.totalorder %s41, %s42
    %p53 = scmp.eq.s32.totalorder %s15, 0
    %p54 = por %p52, %p53
    %p55 = scmp.ne.s32.totalorder %s41, %s42
    %p56 = scmp.eq.s32.totalorder %s16, 3
    %p57 = por %p55, %p56
    %p59 = scmp.ne.s32.totalorder %s42, %s58
    %p60 = scmp.eq.s32.totalorder %s16, 0
    %p61 = por %p59, %p60
    %s62 = ssub.s32 %s18, 1
    %p63 = scmp.gt.s32.totalorder %s62, 0
    %s64 = scalar_select %p63, %s62, 0
    %s65 = ssub.s32 %s25, 1
    %p66 = scmp.gt.s32.totalorder %s65, 0
    %s67 = scalar_select %p66, %s65, 0
    %s68 = ssub.s32 %s17, %s29
    %s69 = ssub.s32 %s64, %s67
    %s70 = sor.u32 %s68, %s69
    %p71 = scmp.eq.s32.totalorder %s70, 0
    %s73 = sadd.s32 %s72, 1
    %s74 = scalar_select %p71, %s72, %s73
    %p77 = pneg %p71
    %p78 = scmp.eq.s32.totalorder %s10, 3
    %p79 = por %p77, %p78
    %p80 = scmp.ne.s32.totalorder %s72, %s75
    %p81 = scmp.eq.s32.totalorder %s10, 0
    %p82 = por %p80, %p81
    %p83 = scmp.ne.s32.totalorder %s72, %s75
    %p84 = scmp.eq.s32.totalorder %s15, 3
    %p85 = por %p83, %p84
    %p86 = scmp.ne.s32.totalorder %s75, %s76
    %p87 = scmp.eq.s32.totalorder %s15, 0
    %p88 = por %p86, %p87
    %p89 = scmp.ne.s32.totalorder %s75, %s76
    %p90 = scmp.eq.s32.totalorder %s16, 3
    %p91 = por %p89, %p90
    %p93 = scmp.ne.s32.totalorder %s76, %s92
    %p94 = scmp.eq.s32.totalorder %s16, 0
    %p95 = por %p93, %p94
    %s96 = ssub.s32 %s17, %s29
    %p97 = scmp.eq.s32.totalorder %s96, 0
    %s99 = sadd.s32 %s98, 1
    %s100 = scalar_select %p97, %s98, %s99
    %p103 = pneg %p97
    %p104 = scmp.eq.s32.totalorder %s10, 3
    %p105 = por %p103, %p104
    %p106 = scmp.ne.s32.totalorder %s98, %s101
    %p107 = scmp.eq.s32.totalorder %s10, 0
    %p108 = por %p106, %p107
    %p109 = scmp.ne.s32.totalorder %s98, %s101
    %p110 = scmp.eq.s32.totalorder %s15, 3
    %p111 = por %p109, %p110
    %p112 = scmp.ne.s32.totalorder %s101, %s102
    %p113 = scmp.eq.s32.totalorder %s15, 0
    %p114 = por %p112, %p113
    %p115 = scmp.ne.s32.totalorder %s101, %s102
    %p116 = scmp.eq.s32.totalorder %s16, 3
    %p117 = por %p115, %p116
    %p119 = scmp.ne.s32.totalorder %s102, %s118
    %p120 = scmp.eq.s32.totalorder %s16, 0
    %p121 = por %p119, %p120
    %s122 = ssub.s32 %s18, 1
    %p123 = scmp.gt.s32.totalorder %s122, 0
    %s124 = scalar_select %p123, %s122, 0
    %s125 = ssub.s32 %s25, 1
    %p126 = scmp.gt.s32.totalorder %s125, 0
    %s127 = scalar_select %p126, %s125, 0
    %s128 = ssub.s32 %s124, %s127
    %p129 = scmp.eq.s32.totalorder %s128, 0
    %s131 = sadd.s32 %s130, 1
    %s132 = scalar_select %p129, %s130, %s131
    %p135 = pneg %p129
    %p136 = scmp.eq.s32.totalorder %s10, 3
    %p137 = por %p135, %p136
    %p138 = scmp.ne.s32.totalorder %s130, %s133
    %p139 = scmp.eq.s32.totalorder %s10, 0
    %p140 = por %p138, %p139
    %p141 = scmp.ne.s32.totalorder %s130, %s133
    %p142 = scmp.eq.s32.totalorder %s15, 3
    %p143 = por %p141, %p142
    %p144 = scmp.ne.s32.totalorder %s133, %s134
    %p145 = scmp.eq.s32.totalorder %s15, 0
    %p146 = por %p144, %p145
    %p147 = scmp.ne.s32.totalorder %s133, %s134
    %p148 = scmp.eq.s32.totalorder %s16, 3
    %p149 = por %p147, %p148
    %p151 = scmp.ne.s32.totalorder %s134, %s150
    %p152 = scmp.eq.s32.totalorder %s16, 0
    %p153 = por %p151, %p152
    %s154 = ssub.s32 %s17, %s29
    %s155 = ssub.s32 %s18, %s25
    %s156 = sor.u32 %s154, %s155
    %p157 = scmp.eq.s32.totalorder %s156, 0
    %s159 = sadd.s32 %s158, 1
    %s160 = scalar_select %p157, %s158, %s159
    %p163 = pneg %p157
    %p164 = scmp.eq.s32.totalorder %s10, 3
    %p165 = por %p163, %p164
    %p166 = scmp.ne.s32.totalorder %s158, %s161
    %p167 = scmp.eq.s32.totalorder %s10, 0
    %p168 = por %p166, %p167
    %p169 = scmp.ne.s32.totalorder %s158, %s161
    %p170 = scmp.eq.s32.totalorder %s15, 3
    %p171 = por %p169, %p170
    %p172 = scmp.ne.s32.totalorder %s161, %s162
    %p173 = scmp.eq.s32.totalorder %s15, 0
    %p174 = por %p172, %p173
    %p175 = scmp.ne.s32.totalorder %s161, %s162
    %p176 = scmp.eq.s32.totalorder %s16, 3
    %p177 = por %p175, %p176
    %p179 = scmp.ne.s32.totalorder %s162, %s178
    %p180 = scmp.eq.s32.totalorder %s16, 0
    %p181 = por %p179, %p180
    %p182 = scmp.le.s32.totalorder 1, %s10
    %p183 = scmp.lt.s32.totalorder %s10, 5
    %p184 = pnand %p182, %p183
    %p185 = pneg %p184
    // Predicated region
    $region9: #{unet_block_codec_innermost.5} parent=5 // pred_check
      _
    $region10: #{unet_block_codec_innermost.5} parent=5 // pred_check_branch
      %187 = sbr.rel (%p184) target = $region12
    $region11: #{unet_block_codec_innermost.5} parent=5 // pred_region
      %s188 = ssub.s32 %s10, 1
    $region12: #{unet_block_codec_innermost.5} parent=5 // pred_fallthru
      _
    %p189 = scmp.lt.s32.totalorder %s10, 4
    // Predicated region
    $region13: #{unet_block_codec_innermost.5} parent=5 // pred_check
      %p190 = pneg %p189
    $region14: #{unet_block_codec_innermost.5} parent=5 // pred_check_branch
      %192 = sbr.rel (%p190) target = $region16
    $region15: #{unet_block_codec_innermost.5} parent=5 // pred_region
      // Predicated region
      $region17: #{unet_block_codec_innermost.5} parent=15 // pred_check
        %p193 = pneg %p48
      $region18: #{unet_block_codec_innermost.5} parent=15 // pred_check_branch
        %195 = sbr.rel (%p193) target = $region20
      $region19: #{unet_block_codec_innermost.5} parent=15 // pred_region
        %p196 = scmp.lt.s32.totalorder %s18, 0
        %s197 = scalar_select %p196, %s18, 0
        %p198 = scmp.lt.s32.totalorder %s17, 1
        %s199 = scalar_select %p198, %s17, 1
        %p200 = scmp.lt.s32.totalorder %s197, 0
        %s201 = scalar_select %p200, %s197, 0
        %s202 = smul.addr %s201, 2
        %s203 = smul.addr %s199, 2
        %s204 = sadd.s32 %s202, %s203
        %s205 = smul.addr %s204, 8
        %s206 = scalar_lea.vmem %s0, %s205
        %p207 = scmp.lt.s32.totalorder %s18, 0
        %s208 = scalar_select %p207, %s18, 0
      $region20: #{unet_block_codec_innermost.5} parent=15 // pred_fallthru
        _
      // Predicated region
      $region21: #{unet_block_codec_innermost.5} parent=15 // pred_check
        %p209 = pneg %p82
      $region22: #{unet_block_codec_innermost.5} parent=15 // pred_check_branch
        %211 = sbr.rel (%p209) target = $region24
      $region23: #{unet_block_codec_innermost.5} parent=15 // pred_region
        %s212 = ssub.s32 %s18, 1
        %p213 = scmp.gt.s32.totalorder %s212, 0
        %s214 = scalar_select %p213, %s212, 0
        %p215 = scmp.lt.s32.totalorder %s17, 1
        %s216 = scalar_select %p215, %s17, 1
        %p217 = scmp.lt.s32.totalorder %s214, 0
        %s218 = scalar_select %p217, %s214, 0
        %s219 = smul.addr %s218, 2
        %s220 = smul.addr %s216, 2
        %s221 = sadd.s32 %s219, %s220
        %s222 = smul.addr %s221, 4
        %s223 = scalar_lea.vmem %s1, %s222
        %s224 = ssub.s32 %s18, 1
        %p225 = scmp.gt.s32.totalorder %s224, 0
        %s226 = scalar_select %p225, %s224, 0
      $region24: #{unet_block_codec_innermost.5} parent=15 // pred_fallthru
        _
      // Predicated region
      $region25: #{unet_block_codec_innermost.5} parent=15 // pred_check
        %p227 = pneg %p108
      $region26: #{unet_block_codec_innermost.5} parent=15 // pred_check_branch
        %229 = sbr.rel (%p227) target = $region28
      $region27: #{unet_block_codec_innermost.5} parent=15 // pred_region
        %p230 = scmp.lt.s32.totalorder %s17, 1
        %s231 = scalar_select %p230, %s17, 1
        %s232 = smul.addr %s231, 2
        %s233 = scalar_lea.vmem %s2, %s232
      $region28: #{unet_block_codec_innermost.5} parent=15 // pred_fallthru
        _
      // Predicated region
      $region29: #{unet_block_codec_innermost.5} parent=15 // pred_check
        %p234 = pneg %p140
      $region30: #{unet_block_codec_innermost.5} parent=15 // pred_check_branch
        %236 = sbr.rel (%p234) target = $region32
      $region31: #{unet_block_codec_innermost.5} parent=15 // pred_region
        %s237 = ssub.s32 %s18, 1
        %p238 = scmp.gt.s32.totalorder %s237, 0
        %s239 = scalar_select %p238, %s237, 0
        %p240 = scmp.lt.s32.totalorder %s239, 0
        %s241 = scalar_select %p240, %s239, 0
        %s242 = smul.addr %s241, 8
        %s243 = scalar_lea.vmem %s3, %s242
        %s244 = ssub.s32 %s18, 1
        %p245 = scmp.gt.s32.totalorder %s244, 0
        %s246 = scalar_select %p245, %s244, 0
      $region32: #{unet_block_codec_innermost.5} parent=15 // pred_fallthru
        _
    $region16: #{unet_block_codec_innermost.5} parent=5 // pred_fallthru
      _
    %p247 = scmp.le.s32.totalorder 1, %s10
    %p248 = scmp.lt.s32.totalorder %s10, 5
    %p249 = pnand %p247, %p248
    %p250 = pneg %p249
    // Predicated region
    $region33: #{unet_block_codec_innermost.5} parent=5 // pred_check
      _
    $region34: #{unet_block_codec_innermost.5} parent=5 // pred_check_branch
      %252 = sbr.rel (%p249) target = $region36
    $region35: #{unet_block_codec_innermost.5} parent=5 // pred_region
      %s253 = ssub.s32 %s10, 1
      %p254 = scmp.lt.s32.totalorder %s20, 0
      %s255 = scalar_select %p254, %s20, 0
      %p256 = scmp.lt.s32.totalorder %s19, 1
      %s257 = scalar_select %p256, %s19, 1
      %p258 = scmp.lt.s32.totalorder %s255, 0
      %s259 = scalar_select %p258, %s255, 0
      %s260 = smul.addr %s259, 2
      %s261 = smul.addr %s257, 2
      %s262 = sadd.s32 %s260, %s261
      %s263 = smul.addr %s262, 8
      %s264 = scalar_lea.vmem %s0, %s263
      %p265 = pneg %p54
      %p266 = pneg %p51
      %s267 = ssub.s32 %s20, 1
      %p268 = scmp.gt.s32.totalorder %s267, 0
      %s269 = scalar_select %p268, %s267, 0
      %p270 = scmp.lt.s32.totalorder %s19, 1
      %s271 = scalar_select %p270, %s19, 1
      %p272 = scmp.lt.s32.totalorder %s269, 0
      %s273 = scalar_select %p272, %s269, 0
      %s274 = smul.addr %s273, 2
      %s275 = smul.addr %s271, 2
      %s276 = sadd.s32 %s274, %s275
      %s277 = smul.addr %s276, 4
      %s278 = scalar_lea.vmem %s1, %s277
      %p279 = pneg %p88
      %p280 = pneg %p85
      %p281 = scmp.lt.s32.totalorder %s19, 1
      %s282 = scalar_select %p281, %s19, 1
      %s283 = smul.addr %s282, 2
      %s284 = scalar_lea.vmem %s2, %s283
      %p285 = pneg %p114
      %p286 = pneg %p111
      %s287 = ssub.s32 %s20, 1
      %p288 = scmp.gt.s32.totalorder %s287, 0
      %s289 = scalar_select %p288, %s287, 0
      %p290 = scmp.lt.s32.totalorder %s289, 0
      %s291 = scalar_select %p290, %s289, 0
      %s292 = smul.addr %s291, 8
      %s293 = scalar_lea.vmem %s3, %s292
      %p294 = pneg %p146
      %p295 = pneg %p143
      %p296 = pneg %p174
      %p297 = pneg %p171
      %p298 = scmp.lt.s32.totalorder %s19, 1
      %s299 = scalar_select %p298, %s19, 1
      %p300 = scmp.lt.s32.totalorder %s20, 1
      %s301 = scalar_select %p300, %s20, 1
      %s302 = smul.addr %s301, 2
      %s303 = smul.addr %s299, 4
      %s304 = sadd.s32 %s302, %s303
      %s305 = smul.addr %s304, 8
      %s306 = scalar_lea.vmem %s4, %s305
      %p307 = scmp.lt.s32.totalorder %s20, 0
      %s308 = scalar_select %p307, %s20, 0
      %p309 = scmp.lt.s32.totalorder %s19, 1
      %s310 = scalar_select %p309, %s19, 1
      %p311 = scmp.lt.s32.totalorder %s308, 0
      %s312 = scalar_select %p311, %s308, 0
      %s313 = smul.addr %s312, 2
      %s314 = smul.addr %s310, 2
      %s315 = sadd.s32 %s313, %s314
      %s316 = smul.addr %s315, 8
      %s317 = scalar_lea.vmem %s0, %s316
      %p318 = scmp.lt.s32.totalorder %s20, 0
      %s319 = scalar_select %p318, %s20, 0
      %s320 = ssub.s32 %s20, 1
      %p321 = scmp.gt.s32.totalorder %s320, 0
      %s322 = scalar_select %p321, %s320, 0
      %p323 = scmp.lt.s32.totalorder %s19, 1
      %s324 = scalar_select %p323, %s19, 1
      %p325 = scmp.lt.s32.totalorder %s322, 0
      %s326 = scalar_select %p325, %s322, 0
      %s327 = smul.addr %s326, 2
      %s328 = smul.addr %s324, 2
      %s329 = sadd.s32 %s327, %s328
      %s330 = smul.addr %s329, 4
      %s331 = scalar_lea.vmem %s1, %s330
      %s332 = ssub.s32 %s20, 1
      %p333 = scmp.gt.s32.totalorder %s332, 0
      %s334 = scalar_select %p333, %s332, 0
      %p335 = scmp.lt.s32.totalorder %s19, 1
      %s336 = scalar_select %p335, %s19, 1
      %s337 = smul.addr %s336, 2
      %s338 = scalar_lea.vmem %s2, %s337
      %s339 = ssub.s32 %s20, 1
      %p340 = scmp.gt.s32.totalorder %s339, 0
      %s341 = scalar_select %p340, %s339, 0
      %p342 = scmp.lt.s32.totalorder %s341, 0
      %s343 = scalar_select %p342, %s341, 0
      %s344 = smul.addr %s343, 8
      %s345 = scalar_lea.vmem %s3, %s344
      %s346 = ssub.s32 %s20, 1
      %p347 = scmp.gt.s32.totalorder %s346, 0
      %s348 = scalar_select %p347, %s346, 0
      %p349 = scmp.lt.s32.totalorder %s19, 1
      %s350 = scalar_select %p349, %s19, 1
      %p351 = scmp.lt.s32.totalorder %s20, 1
      %s352 = scalar_select %p351, %s20, 1
      %s353 = smul.addr %s352, 2
      %s354 = smul.addr %s350, 4
      %s355 = sadd.s32 %s353, %s354
      %s356 = smul.addr %s355, 8
      %s357 = scalar_lea.vmem %s4, %s356
      %p358 = scmp.lt.s32.totalorder %s20, 1
      // Predicated region
      $region37: #{unet_block_codec_innermost.5} parent=35 // pred_check
        %p359 = pneg %p358
      $region38: #{unet_block_codec_innermost.5} parent=35 // pred_check_branch
        %361 = sbr.rel (%p359) target = $region40
      $region39: #{unet_block_codec_innermost.5} parent=35 // pred_region
        %v362 = vld [vmem:[%s317] sm:$0xff]
        %v363 = vld [vmem:[%s317 + $0x8] sm:$0xff]
        %364 = vst [vmem:[%s357] sm:$0xff] %v362
        %365 = vst [vmem:[%s357 + $0x8] sm:$0xff] %v363
      $region40: #{unet_block_codec_innermost.5} parent=35 // pred_fallthru
        _
      %p366 = scmp.ge.s32.totalorder %s20, 1
      // Predicated region
      $region41: #{unet_block_codec_innermost.5} parent=35 // pred_check
        %p367 = pneg %p366
      $region42: #{unet_block_codec_innermost.5} parent=35 // pred_check_branch
        %369 = sbr.rel (%p367) target = $region44
      $region43: #{unet_block_codec_innermost.5} parent=35 // pred_region
        %v370 = vld [vmem:[%s331] sm:$0xff]
        %v371 = vunpack.c.l.bf16 %v370
        %v372 = vunpack.c.h.bf16 %v370
        %v373 = vld [vmem:[%s338] sm:$0x3]
        %v374 = vld [vmem:[%s345] sm:$0xff]
        %v375 = vadd.f32 %v374, 1.0
        %v377 = vlaneseq
        %v378 = vshrl.u32 %v377, 7
        %v379 = vsub.s32 0, %v378
        %v380 = vrot.slane %v373, %v379
        %v381 = vlaneseq
        %v382 = vshrl.u32 %v381, 7
        %v383 = vsub.s32 1, %v382
        %v384 = vrot.slane %v373, %v383
        %vm387 = vcmask 1040384
        %v388 = vsel %vm387, %v380, 0.0
        %v389 = vsel %vm387, %v384, 0.0
        %v390 = vadd.f32 %v388, %v389
        %391 = vadd.xlane.f32.xlu0 %v390
        %v392 = vpop.xlane.xlu0 %391
        %v393 = vsub.f32 256.0, %v392
        %v394 = vmul.f32 %v371, %v371
        %v395 = vmul.f32 %v372, %v372
        %v396 = vmul.f32 %v371, %v380
        %v397 = vmul.f32 %v372, %v384
        %v398 = vadd.f32 %v396, %v397
        %399 = vadd.xlane.f32.xlu0 %v398
        %v400 = vpop.xlane.xlu0 %399
        %v401 = vmul.f32 %v394, %v380
        %v402 = vmul.f32 %v395, %v384
        %v403 = vadd.f32 %v401, %v402
        %404 = vadd.xlane.f32.xlu0 %v403
        %v405 = vpop.xlane.xlu0 %404
        %v406 = vadd.f32 %v371, %v372
        %407 = vadd.xlane.f32.xlu0 %v406
        %v408 = vpop.xlane.xlu0 %407
        %v409 = vadd.f32 %v394, %v395
        %410 = vadd.xlane.f32.xlu0 %v409
        %v411 = vpop.xlane.xlu0 %410
        %v412 = vsub.f32 %v408, %v400
        %v413 = vsub.f32 %v411, %v405
        %v414 = vadd.f32 %v392, 1e-05
        %v415 = vrcp.pop %v414
        %v416 = vmul.f32 1.0, %v415
        %v417 = vadd.f32 %v393, 1e-05
        %v418 = vrcp.pop %v417
        %v419 = vmul.f32 1.0, %v418
        %v420 = vlaneseq
        %v421 = vshrl.u32 %v420, 7
        %v422 = vsub.s32 0, %v421
        %v423 = vrot.slane %v416, %v422
        %v424 = vmul.f32 %v400, %v423
        %v425 = vlaneseq
        %v426 = vshrl.u32 %v425, 7
        %v427 = vsub.s32 0, %v426
        %v428 = vrot.slane %v419, %v427
        %v429 = vmul.f32 %v412, %v428
        %v430 = vmul.f32 %v424, 2.0
        %v431 = vmul.f32 %v430, %v400
        %v432 = vsub.f32 %v405, %v431
        %v433 = vmul.f32 %v424, %v424
        %v434 = vlaneseq
        %v435 = vshrl.u32 %v434, 7
        %v436 = vsub.s32 0, %v435
        %v437 = vrot.slane %v392, %v436
        %v438 = vmul.f32 %v433, %v437
        %v439 = vadd.f32 %v432, %v438
        %v440 = vmul.f32 %v439, %v423
        %v441 = vmul.f32 %v429, 2.0
        %v442 = vmul.f32 %v441, %v412
        %v443 = vsub.f32 %v413, %v442
        %v444 = vmul.f32 %v429, %v429
        %v445 = vlaneseq
        %v446 = vshrl.u32 %v445, 7
        %v447 = vsub.s32 0, %v446
        %v448 = vrot.slane %v393, %v447
        %v449 = vmul.f32 %v444, %v448
        %v450 = vadd.f32 %v443, %v449
        %v451 = vmul.f32 %v450, %v428
        %v452 = vadd.f32 %v451, 1e-05
        %v453 = vrsqrt.pop %v452
        %v454 = vadd.f32 %v440, 1e-05
        %v455 = vrsqrt.pop %v454
        %v456 = vmul.f32 %v452, %v453
        %v457 = vmul.f32 %v453, %v375
        %v458 = vmul.f32 %v429, %v457
        %460 = vrot.lane.b32.xlu0 %v458, 1
        %v461 = vpop.permute.xlu0 %460
        %v463 = vsub.f32 %v374, %v461
        %v464 = vmul.f32 %v455, %v456
        %v465 = vmul.f32 %v464, %v375
        %v466 = vmul.f32 %v424, %v464
        %v467 = vsub.f32 %v429, %v466
        %v468 = vmul.f32 %v467, %v375
        %470 = vrot.lane.b32.xlu0 %v374, 127
        %v471 = vpop.permute.xlu0 %470
        %v473 = vadd.f32 %v468, %v471
        %475 = vrot.lane.b32.xlu0 %v457, 126
        %v476 = vpop.permute.xlu0 %475
        %v478 = vsub.f32 %v465, %v476
        %480 = vset.pattern.permute.xlu0 0
        %481 = vperm.xlu0 %480, %v478
        %v482 = vpop.permute.xlu0 %481
        %v484 = vmul.f32 %v380, %v482
        %v485 = vmul.f32 %v384, %v482
        %486 = vset.pattern.permute.xlu0 2
        %487 = vperm.xlu0 %486, %v457
        %v488 = vpop.permute.xlu0 %487
        %v490 = vadd.f32 %v488, %v484
        %v491 = vadd.f32 %v488, %v485
        %493 = vrot.lane.b32.xlu0 %v463, 125
        %v494 = vpop.permute.xlu0 %493
        %v496 = vsub.f32 %v473, %v494
        %498 = vset.pattern.permute.xlu0 0
        %499 = vperm.xlu0 %498, %v496
        %v500 = vpop.permute.xlu0 %499
        %v502 = vmul.f32 %v380, %v500
        %v503 = vmul.f32 %v384, %v500
        %504 = vset.pattern.permute.xlu0 3
        %505 = vperm.xlu0 %504, %v463
        %v506 = vpop.permute.xlu0 %505
        %v508 = vadd.f32 %v506, %v502
        %v509 = vadd.f32 %v506, %v503
        %v510 = vmul.f32 %v371, %v490
        %v511 = vmul.f32 %v372, %v491
        %v512 = vadd.f32 %v510, %v508
        %v513 = vadd.f32 %v511, %v509
        %514 = vst [vmem:[%s357] sm:$0xff] %v512
        %515 = vst [vmem:[%s357 + $0x8] sm:$0xff] %v513
      $region44: #{unet_block_codec_innermost.5} parent=35 // pred_fallthru
        _
      %p516 = scmp.lt.s32.totalorder %s19, 1
      %s517 = scalar_select %p516, %s19, 1
      %p518 = scmp.lt.s32.totalorder %s20, 1
      %s519 = scalar_select %p518, %s20, 1
      %s520 = smul.addr %s519, 2
      %s521 = smul.addr %s517, 4
      %s522 = sadd.s32 %s520, %s521
      %s523 = smul.addr %s522, 8
      %s524 = scalar_lea.vmem %s4, %s523
      // Predicated region
      $region45: #{unet_block_codec_innermost.5} parent=35 // pred_check
        %p525 = pneg %p171
      $region46: #{unet_block_codec_innermost.5} parent=35 // pred_check_branch
        %527 = sbr.rel (%p525) target = $region48
      $region47: #{unet_block_codec_innermost.5} parent=35 // pred_region
        _
      $region48: #{unet_block_codec_innermost.5} parent=35 // pred_fallthru
        _
    $region36: #{unet_block_codec_innermost.5} parent=5 // pred_fallthru
      _
    %p528 = scmp.le.s32.totalorder 2, %s10
    // Predicated region
    $region49: #{unet_block_codec_innermost.5} parent=5 // pred_check
      %p529 = pneg %p528
    $region50: #{unet_block_codec_innermost.5} parent=5 // pred_check_branch
      %531 = sbr.rel (%p529) target = $region52
    $region51: #{unet_block_codec_innermost.5} parent=5 // pred_region
      %s532 = ssub.s32 %s10, 2
      // Predicated region
      $region53: #{unet_block_codec_innermost.5} parent=51 // pred_check
        %p533 = pneg %p177
      $region54: #{unet_block_codec_innermost.5} parent=51 // pred_check_branch
        %535 = sbr.rel (%p533) target = $region56
      $region55: #{unet_block_codec_innermost.5} parent=51 // pred_region
        %p536 = scmp.lt.s32.totalorder %s21, 1
        %s537 = scalar_select %p536, %s21, 1
        %p538 = scmp.lt.s32.totalorder %s22, 1
        %s539 = scalar_select %p538, %s22, 1
        %s540 = smul.addr %s539, 2
        %s541 = smul.addr %s537, 4
        %s542 = sadd.s32 %s540, %s541
        %s543 = smul.addr %s542, 8
        %s544 = scalar_lea.vmem %s4, %s543
      $region56: #{unet_block_codec_innermost.5} parent=51 // pred_fallthru
        _
    $region52: #{unet_block_codec_innermost.5} parent=5 // pred_fallthru
      _
  $region6: #{unet_block_codec_innermost.5} parent=0 // loop_footer
    %s14 = sadd.s32 1, %s10
  $region7: #{unet_block_codec_innermost.5} parent=0 // loop_footer_branch
    %9 = sbr.rel target = $region3
  $region8: #{unet_block_codec_innermost.5} parent=0 // loop_exit
    _

</llo_original>
